<compile_context>
chip_gen: v5e
topology: v5e:2x2
jax: 0.10.0
libtpu: 0.0.40
codegen_flags: <defaults>
</compile_context>

<pallas_src>
import functools

import numpy as np

import jax
import jax.numpy as jnp
from jax import lax
from jax.experimental import pallas as pl
from jax.experimental.pallas import tpu as pltpu


# ---------------------------------------------------------------------------
# Kernel
# ---------------------------------------------------------------------------
def _up_axis(v, axis, fast):
    """2x upsample along a non-minor axis: 5-tap binomial blur + interleave."""
    n = v.shape[axis]
    if n == 1:
        left = jnp.zeros_like(v) if fast else v
        right = jnp.zeros_like(v) if fast else v
    else:
        lo = lax.slice_in_dim(v, 0, 1, axis=axis)
        hi = lax.slice_in_dim(v, n - 1, n, axis=axis)
        if fast:                                   # zero borders (fast branch)
            lo = jnp.zeros_like(lo)
            hi = jnp.zeros_like(hi)
        left = jnp.concatenate(
            [lo, lax.slice_in_dim(v, 0, n - 1, axis=axis)], axis=axis)
        right = jnp.concatenate(
            [lax.slice_in_dim(v, 1, n, axis=axis), hi], axis=axis)
    even = 0.125 * left + 0.75 * v + 0.125 * right
    odd = 0.5 * (v + right)
    out = jnp.stack([even, odd], axis=axis + 1)    # (..., n, 2, ...)
    shape = list(v.shape)
    shape[axis] = 2 * n
    return out.reshape(shape)                      # parity interleave


def _upsample_kernel(x_ref, uw_ref, o_ref, *, fast):
    bc, d, h, w = x_ref.shape
    x = x_ref[...].astype(jnp.float32)

    # W (lane) axis: blur + 2x interleave as one small matmul -> lane-dense.
    y = jnp.dot(x.reshape(bc * d * h, w), uw_ref[...],
                precision=lax.Precision.HIGHEST,
                preferred_element_type=jnp.float32)
    y = y.reshape(bc, d, h, 2 * w)

    # H then D axes on the VPU.
    y = _up_axis(y, axis=2, fast=fast)             # (bc, d, 2h, 2w)
    y = _up_axis(y, axis=1, fast=fast)             # (bc, 2d, 2h, 2w)

    o_ref[...] = y.astype(o_ref.dtype)


# ---------------------------------------------------------------------------
# Host-side helpers
# ---------------------------------------------------------------------------
def _lane_up_matrix(w, fast):
    """(w, 2w) matrix: y[..., :] = x[..., :] @ U  == blur + 2x interleave on W."""
    u = np.zeros((w, 2 * w), dtype=np.float32)
    for m in range(w):
        # even output 2m : (x[m-1] + 6 x[m] + x[m+1]) / 8
        for dm, coef in ((-1, 0.125), (0, 0.75), (1, 0.125)):
            src = m + dm
            if 0 <= src < w:
                u[src, 2 * m] += coef
            elif not fast:                         # replicate border
                u[min(max(src, 0), w - 1), 2 * m] += coef
        # odd output 2m+1 : (x[m] + x[m+1]) / 2
        for dm, coef in ((0, 0.5), (1, 0.5)):
            src = m + dm
            if 0 <= src < w:
                u[src, 2 * m + 1] += coef
            elif not fast:
                u[min(max(src, 0), w - 1), 2 * m + 1] += coef
    return u


def _pick_block_channels(nc, out_slice_bytes, cap_bytes):
    """Largest divisor of nc whose output block stays under cap_bytes, and
    which keeps the grid length >= 2 (v7x has two TensorCores)."""
    cap = max(1, cap_bytes // max(1, out_slice_bytes))
    if nc >= 2:
        cap = min(cap, nc // 2)
    cap = min(max(cap, 1), nc)
    for bc in range(cap, 0, -1):
        if nc % bc == 0:
            return bc
    return 1


def upsample2x2x2(x, output_shape=None, *, fast=False, block_bytes_cap=2 << 20):
    """2x2x2 upsampling with a 5-tap binomial blur (Upsample2x2x2.forward).

    x: (N, C, D, H, W).  output_shape: optional 5-sequence like the torch
    module (each spatial dim must be 2*s-1 or 2*s, i.e. output_padding 0/1);
    default is the exact 2x volume.
    """
    n, c, d, h, w = x.shape
    if output_shape is not None:
        od, oh, ow = int(output_shape[2]), int(output_shape[3]), int(output_shape[4])
    else:
        od, oh, ow = 2 * d, 2 * h, 2 * w
    for o, s in ((od, d), (oh, h), (ow, w)):
        if not (2 * s - 1 <= o <= 2 * s):
            raise ValueError("output_shape implies output_padding outside {0,1}")

    nc = n * c
    x_flat = x.reshape(nc, d, h, w)                # free view, no transpose
    uw = jnp.asarray(_lane_up_matrix(w, fast))     # (w, 2w) f32, tiny

    out_slice_bytes = 8 * d * h * w * 4            # one slice's f32 output block
    bc = _pick_block_channels(nc, out_slice_bytes, block_bytes_cap)
    grid = (nc // bc,)

    m_in = nc * d * h * w
    itemsize = int(np.dtype(x.dtype).itemsize)
    cost = pl.CostEstimate(
        flops=int(4 * m_in * w + 7 * 2 * m_in + 7 * 4 * m_in),
        transcendentals=0,
        bytes_accessed=int(9 * m_in * itemsize + uw.size * 4),
    )

    out_full = pl.pallas_call(
        functools.partial(_upsample_kernel, fast=fast),
        out_shape=jax.ShapeDtypeStruct((nc, 2 * d, 2 * h, 2 * w), x.dtype),
        grid_spec=pltpu.PrefetchScalarGridSpec(
            num_scalar_prefetch=0,
            grid=grid,
            in_specs=[
                pl.BlockSpec((bc, d, h, w), lambda i: (i, 0, 0, 0)),
                pl.BlockSpec((w, 2 * w), lambda i: (0, 0)),   # resident weights
            ],
            out_specs=pl.BlockSpec((bc, 2 * d, 2 * h, 2 * w),
                                   lambda i: (i, 0, 0, 0)),
        ),
        compiler_params=pltpu.CompilerParams(
            dimension_semantics=("parallel",)),
        cost_estimate=cost,
    )(x_flat, uw)

    out = out_full.reshape(n, c, 2 * d, 2 * h, 2 * w)   # free view
    if (od, oh, ow) != (2 * d, 2 * h, 2 * w):
        # output_padding = 0 on an axis just drops the final plane.
        out = out[:, :, :od, :oh, :ow]
    return out


# ---------------------------------------------------------------------------
# Pure numpy reference (literal transposed-conv semantics of the torch module)
# ---------------------------------------------------------------------------
def _upsample_ref(x, out_dhw, fast=False):
    x = np.asarray(x, dtype=np.float64)
    n, c, d, h, w = x.shape
    k1 = np.asarray([1.0, 4.0, 6.0, 4.0, 1.0], dtype=np.float64)[:, None]
    k2 = k1 @ k1.T
    kern = (k1 @ k2.reshape(1, -1)).reshape(5, 5, 5)
    kern = kern / kern.sum() * 8.0                 # symmetric -> no flip needed
    op = (out_dhw[0] - (2 * d - 1), out_dhw[1] - (2 * h - 1), out_dhw[2] - (2 * w - 1))

    xr = x.reshape(n * c, d, h, w)
    if fast:
        pad_conv = 2
    else:
        xr = np.pad(xr, ((0, 0), (1, 1), (1, 1), (1, 1)), mode="edge")
        pad_conv = 4
    dd, hh, ww = xr.shape[1:]
    # zero-stuff (stride-2 transposed conv), pad by K-1-P low / K-1-P+op high.
    up = np.zeros((n * c, 2 * dd - 1, 2 * hh - 1, 2 * ww - 1), dtype=np.float64)
    up[:, ::2, ::2, ::2] = xr
    lo = 5 - 1 - pad_conv
    up = np.pad(up, ((0, 0), (lo, lo + op[0]), (lo, lo + op[1]), (lo, lo + op[2])))

    od, oh, ow = out_dhw
    y = np.zeros((n * c, od, oh, ow), dtype=np.float64)
    for a in range(5):
        for b in range(5):
            for cc in range(5):
                y += kern[a, b, cc] * up[:, a:a + od, b:b + oh, cc:cc + ow]
    return y.reshape(n, c, od, oh, ow)


if __name__ == "__main__":
    N, C, D, H, W = 2, 4, 8, 8, 8
    key = jax.random.PRNGKey(0)
    x = jax.random.normal(key, (N, C, D, H, W), dtype=jnp.float32)

    # Default call: exact 2x output (output_padding = 1 on every axis).
    out = jax.block_until_ready(upsample2x2x2(x))
    assert out.shape == (N, C, 2 * D, 2 * H, 2 * W)
    ref = _upsample_ref(x, (2 * D, 2 * H, 2 * W))
    err = float(np.max(np.abs(np.asarray(out, dtype=np.float64) - ref)))
    assert err < 1e-4, f"max abs err {err}"

    # Explicit output_shape (output_padding = 0 on D and W), like the module.
    oshape = (N, C, 2 * D - 1, 2 * H, 2 * W - 1)
    out2 = jax.block_until_ready(upsample2x2x2(x, output_shape=oshape))
    assert out2.shape == oshape
    ref2 = _upsample_ref(x, oshape[2:])
    err2 = float(np.max(np.abs(np.asarray(out2, dtype=np.float64) - ref2)))
    assert err2 < 1e-4, f"max abs err {err2}"

    print("KERNEL_OK")
</pallas_src>

<mosaic_0001>
module attributes {stable_mosaic.version = 11 : i64} {
  func.func @_upsample_kernel(%arg0: i32, %arg1: memref<4x8x8x8xf32, #tpu.memory_space<vmem>>, %arg2: memref<8x16xf32, #tpu.memory_space<vmem>>, %arg3: memref<4x16x16x16xf32, #tpu.memory_space<vmem>>) attributes {dimension_semantics = [#tpu.dimension_semantics<parallel>], iteration_bounds = array<i64: 2>, scalar_prefetch = 0 : i64, scratch_operands = 0 : i64, tpu.core_type = #tpu.core_type<tc>, window_params = [{transform_indices = @transform_0, window_bounds = array<i64: 4, 8, 8, 8>}, {pipeline_mode = #tpu.pipeline_mode<synchronous>, transform_indices = @transform_1, window_bounds = array<i64: 8, 16>}, {transform_indices = @transform_2, window_bounds = array<i64: 4, 16, 16, 16>}]} {
    %c0 = arith.constant 0 : index
    %c0_0 = arith.constant 0 : index
    %c0_1 = arith.constant 0 : index
    %c0_2 = arith.constant 0 : index
    %0 = vector.load %arg1[%c0, %c0_0, %c0_1, %c0_2] : memref<4x8x8x8xf32, #tpu.memory_space<vmem>>, vector<4x8x8x8xf32>
    %1 = vector.shape_cast %0 : vector<4x8x8x8xf32> to vector<256x8xf32>
    %c0_3 = arith.constant 0 : index
    %c0_4 = arith.constant 0 : index
    %2 = vector.load %arg2[%c0_3, %c0_4] : memref<8x16xf32, #tpu.memory_space<vmem>>, vector<8x16xf32>
    %cst = arith.constant dense<0.000000e+00> : vector<256x16xf32>
    %3 = tpu.matmul %1, %2, %cst {dimension_numbers = #tpu.dot_dimension_numbers<[1], [0], [0], [1], [0, 0, 1, 1], [], []>, precision = #tpu.contract_precision<fp32>} : vector<256x8xf32>, vector<8x16xf32>, vector<256x16xf32> -> vector<256x16xf32>
    %4 = vector.shape_cast %3 : vector<256x16xf32> to vector<4x8x8x16xf32>
    %5 = vector.extract_strided_slice %4 {offsets = [0, 0, 0, 0], sizes = [4, 8, 1, 16], strides = [1, 1, 1, 1]} : vector<4x8x8x16xf32> to vector<4x8x1x16xf32>
    %6 = vector.extract_strided_slice %4 {offsets = [0, 0, 7, 0], sizes = [4, 8, 1, 16], strides = [1, 1, 1, 1]} : vector<4x8x8x16xf32> to vector<4x8x1x16xf32>
    %7 = vector.extract_strided_slice %4 {offsets = [0, 0, 0, 0], sizes = [4, 8, 7, 16], strides = [1, 1, 1, 1]} : vector<4x8x8x16xf32> to vector<4x8x7x16xf32>
    %8 = tpu.concatenate %5, %7 in 2 : vector<4x8x1x16xf32>, vector<4x8x7x16xf32> -> vector<4x8x8x16xf32>
    %9 = vector.extract_strided_slice %4 {offsets = [0, 0, 1, 0], sizes = [4, 8, 7, 16], strides = [1, 1, 1, 1]} : vector<4x8x8x16xf32> to vector<4x8x7x16xf32>
    %10 = tpu.concatenate %9, %6 in 2 : vector<4x8x7x16xf32>, vector<4x8x1x16xf32> -> vector<4x8x8x16xf32>
    %cst_5 = arith.constant 1.250000e-01 : f32
    %11 = vector.broadcast %cst_5 : f32 to vector<4x8x8x16xf32>
    %12 = arith.mulf %11, %8 : vector<4x8x8x16xf32>
    %cst_6 = arith.constant 7.500000e-01 : f32
    %13 = vector.broadcast %cst_6 : f32 to vector<4x8x8x16xf32>
    %14 = arith.mulf %13, %4 : vector<4x8x8x16xf32>
    %15 = arith.addf %12, %14 : vector<4x8x8x16xf32>
    %cst_7 = arith.constant 1.250000e-01 : f32
    %16 = vector.broadcast %cst_7 : f32 to vector<4x8x8x16xf32>
    %17 = arith.mulf %16, %10 : vector<4x8x8x16xf32>
    %18 = arith.addf %15, %17 : vector<4x8x8x16xf32>
    %19 = arith.addf %4, %10 : vector<4x8x8x16xf32>
    %cst_8 = arith.constant 5.000000e-01 : f32
    %20 = vector.broadcast %cst_8 : f32 to vector<4x8x8x16xf32>
    %21 = arith.mulf %20, %19 : vector<4x8x8x16xf32>
    %22 = vector.shape_cast %18 : vector<4x8x8x16xf32> to vector<4x8x8x1x16xf32>
    %23 = vector.shape_cast %21 : vector<4x8x8x16xf32> to vector<4x8x8x1x16xf32>
    %24 = tpu.concatenate %22, %23 in 3 : vector<4x8x8x1x16xf32>, vector<4x8x8x1x16xf32> -> vector<4x8x8x2x16xf32>
    %25 = vector.shape_cast %24 : vector<4x8x8x2x16xf32> to vector<4x8x16x16xf32>
    %26 = vector.extract_strided_slice %25 {offsets = [0, 0, 0, 0], sizes = [4, 1, 16, 16], strides = [1, 1, 1, 1]} : vector<4x8x16x16xf32> to vector<4x1x16x16xf32>
    %27 = vector.extract_strided_slice %25 {offsets = [0, 7, 0, 0], sizes = [4, 1, 16, 16], strides = [1, 1, 1, 1]} : vector<4x8x16x16xf32> to vector<4x1x16x16xf32>
    %28 = vector.extract_strided_slice %25 {offsets = [0, 0, 0, 0], sizes = [4, 7, 16, 16], strides = [1, 1, 1, 1]} : vector<4x8x16x16xf32> to vector<4x7x16x16xf32>
    %29 = tpu.concatenate %26, %28 in 1 : vector<4x1x16x16xf32>, vector<4x7x16x16xf32> -> vector<4x8x16x16xf32>
    %30 = vector.extract_strided_slice %25 {offsets = [0, 1, 0, 0], sizes = [4, 7, 16, 16], strides = [1, 1, 1, 1]} : vector<4x8x16x16xf32> to vector<4x7x16x16xf32>
    %31 = tpu.concatenate %30, %27 in 1 : vector<4x7x16x16xf32>, vector<4x1x16x16xf32> -> vector<4x8x16x16xf32>
    %cst_9 = arith.constant 1.250000e-01 : f32
    %32 = vector.broadcast %cst_9 : f32 to vector<4x8x16x16xf32>
    %33 = arith.mulf %32, %29 : vector<4x8x16x16xf32>
    %cst_10 = arith.constant 7.500000e-01 : f32
    %34 = vector.broadcast %cst_10 : f32 to vector<4x8x16x16xf32>
    %35 = arith.mulf %34, %25 : vector<4x8x16x16xf32>
    %36 = arith.addf %33, %35 : vector<4x8x16x16xf32>
    %cst_11 = arith.constant 1.250000e-01 : f32
    %37 = vector.broadcast %cst_11 : f32 to vector<4x8x16x16xf32>
    %38 = arith.mulf %37, %31 : vector<4x8x16x16xf32>
    %39 = arith.addf %36, %38 : vector<4x8x16x16xf32>
    %40 = arith.addf %25, %31 : vector<4x8x16x16xf32>
    %cst_12 = arith.constant 5.000000e-01 : f32
    %41 = vector.broadcast %cst_12 : f32 to vector<4x8x16x16xf32>
    %42 = arith.mulf %41, %40 : vector<4x8x16x16xf32>
    %43 = vector.shape_cast %39 : vector<4x8x16x16xf32> to vector<4x8x1x16x16xf32>
    %44 = vector.shape_cast %42 : vector<4x8x16x16xf32> to vector<4x8x1x16x16xf32>
    %45 = tpu.concatenate %43, %44 in 2 : vector<4x8x1x16x16xf32>, vector<4x8x1x16x16xf32> -> vector<4x8x2x16x16xf32>
    %46 = vector.shape_cast %45 : vector<4x8x2x16x16xf32> to vector<4x16x16x16xf32>
    %c0_13 = arith.constant 0 : index
    %c0_14 = arith.constant 0 : index
    %c0_15 = arith.constant 0 : index
    %c0_16 = arith.constant 0 : index
    %47 = vector.load %arg3[%c0_13, %c0_14, %c0_15, %c0_16] : memref<4x16x16x16xf32, #tpu.memory_space<vmem>>, vector<4x16x16x16xf32>
    tpu.vector_store %arg3[%c0_13, %c0_14, %c0_15, %c0_16], %46 {strides = array<i32>} : memref<4x16x16x16xf32, #tpu.memory_space<vmem>>, vector<4x16x16x16xf32>,
    return
  }
  func.func @transform_0(%arg0: i32) -> (i32, i32, i32, i32) {
    %c0_i32 = arith.constant 0 : i32
    %c0_i32_0 = arith.constant 0 : i32
    %c0_i32_1 = arith.constant 0 : i32
    %c0_i32_2 = arith.constant 0 : i32
    return %arg0, %c0_i32, %c0_i32_0, %c0_i32_1 : i32, i32, i32, i32
  }
  func.func @transform_1(%arg0: i32) -> (i32, i32) {
    %c0_i32 = arith.constant 0 : i32
    %c0_i32_0 = arith.constant 0 : i32
    %c0_i32_1 = arith.constant 0 : i32
    return %c0_i32, %c0_i32_0 : i32, i32
  }
  func.func @transform_2(%arg0: i32) -> (i32, i32, i32, i32) {
    %c0_i32 = arith.constant 0 : i32
    %c0_i32_0 = arith.constant 0 : i32
    %c0_i32_1 = arith.constant 0 : i32
    %c0_i32_2 = arith.constant 0 : i32
    return %arg0, %c0_i32, %c0_i32_0, %c0_i32_1 : i32, i32, i32, i32
  }
}

</mosaic_0001>

<llo_original>
// kernel: tpu_custom_call.1
$region0: #{tpu_custom_call.1}
  #allocation0 [shape = 'u32[]', space=smem, size = 0x4, offset = 0x4, fixed_abs, tag = 'smem constant byte address 0x4 - core index']
  #allocation1 [shape = 'u32[72,128]{1,0:T(1,128)}', space=vmem, size = 0x9000, scoped, tag = 'internal scratch']
  %s0 = inlined_call_operand.hbm [shape: f32[8,8,8,8], index: 0, kind: input, shape index: {}]
  %s1 = inlined_call_operand.hbm [shape: f32[8,16], index: 1, kind: input, shape index: {}]
  %s2 = inlined_call_operand.hbm [shape: f32[8,16,16,16], index: 2, kind: output, shape index: {}]
  %s3 = sld [smem:[#allocation0]]
  $region49: #{tpu_custom_call.1} parent=0
    _
  %s5 = ssub.s32 1, %s3
  %s6 = scalar_select 0, %s5, %s3
  $region1: #{tpu_custom_call.1} parent=0
    #allocation2 [shape = 'u8[262144]{0}', space=vmem, size = 0x40000, scoped, tag = 'input window, operand 0']
    #allocation3 [shape = 's32[2]{0}', space=sflag, size = 0x8, scoped, tag = 'scoped memory for tpu_custom_call.1']
    #allocation4 [shape = 's32[2]{0}', space=sflag, size = 0x8, scoped, tag = 'scoped memory for tpu_custom_call.1']
    #allocation5 [shape = 'u8[4096]{0}', space=vmem, size = 0x1000, scoped, tag = 'input window, operand 1, single buffered']
    #allocation6 [shape = 's32[1]{0}', space=sflag, size = 0x4, scoped, tag = 'scoped memory for tpu_custom_call.1']
    #allocation7 [shape = 'u8[1048576]{0}', space=vmem, size = 0x100000, scoped, tag = 'output window, operand 0']
    %7 = vsyncpa [#allocation3], 0
    %s8 = scalar_lea.sflag [#allocation3], 1
    %9 = vsyncpa %s8, 0
    %10 = vsyncpa [#allocation6], 0
    %11 = vsyncpa [#allocation4], 0
    %s12 = scalar_lea.sflag [#allocation4], 1
    %13 = vsyncpa %s12, 0
    loop: start=0, step=1, limit=4
    $region2: #{tpu_custom_call.1} parent=1 // loop_pre_header
      _
    $region3: #{tpu_custom_call.1} parent=1 // loop_header
      %s15 = sphi 0, %s19
      %p16 = scmp.ge.s32.totalorder %s15, 4
      %s25 = sphi 0, %s27
      %s28 = sphi 0, %s25
      %s29 = sphi 0, %s28
      %s45 = sphi 0, %s29
      %s49 = sphi 0, %s49
      %s51 = sphi 0, %s49
      %s52 = sphi 0, %s51
      %s66 = sphi 0, %s52
      %s72 = sphi 0, %s74
      %s75 = sphi 0, %s72
      %s76 = sphi 0, %s75
      %s92 = sphi 0, %s76
    $region4: #{tpu_custom_call.1} parent=1 // loop_header_branch
      %18 = sbr.rel (%p16) target = $region8
    $region5: #{tpu_custom_call.1} parent=1 // loop_body
      %s20 = ssub.s32 %s15, 1
      %s21 = ssub.s32 %s15, 2
      %s22 = sadd.s32 %s15, 1
      %s23 = ssub.s32 %s15, %s22
      %p24 = scmp.eq.s32.totalorder %s23, 0
      %s26 = sadd.s32 %s25, 1
      %s27 = scalar_select %p24, %s25, %s26
      %p30 = pneg %p24
      %p31 = scmp.eq.s32.totalorder %s15, 1
      %p32 = por %p30, %p31
      %p33 = scmp.ne.s32.totalorder %s25, %s28
      %p34 = scmp.eq.s32.totalorder %s15, 0
      %p35 = por %p33, %p34
      %p36 = scmp.ne.s32.totalorder %s25, %s28
      %p37 = scmp.eq.s32.totalorder %s20, 1
      %p38 = por %p36, %p37
      %p39 = scmp.ne.s32.totalorder %s28, %s29
      %p40 = scmp.eq.s32.totalorder %s20, 0
      %p41 = por %p39, %p40
      %p42 = scmp.ne.s32.totalorder %s28, %s29
      %p43 = scmp.eq.s32.totalorder %s21, 1
      %p44 = por %p42, %p43
      %p46 = scmp.ne.s32.totalorder %s29, %s45
      %p47 = scmp.eq.s32.totalorder %s21, 0
      %p48 = por %p46, %p47
      %s50 = sadd.s32 %s49, 1
      %p53 = scmp.eq.s32.totalorder %s15, 1
      %p54 = scmp.ne.s32.totalorder %s49, %s51
      %p55 = scmp.eq.s32.totalorder %s15, 0
      %p56 = por %p54, %p55
      %p57 = scmp.ne.s32.totalorder %s49, %s51
      %p58 = scmp.eq.s32.totalorder %s20, 1
      %p59 = por %p57, %p58
      %p60 = scmp.ne.s32.totalorder %s51, %s52
      %p61 = scmp.eq.s32.totalorder %s20, 0
      %p62 = por %p60, %p61
      %p63 = scmp.ne.s32.totalorder %s51, %s52
      %p64 = scmp.eq.s32.totalorder %s21, 1
      %p65 = por %p63, %p64
      %p67 = scmp.ne.s32.totalorder %s52, %s66
      %p68 = scmp.eq.s32.totalorder %s21, 0
      %p69 = por %p67, %p68
      %s70 = ssub.s32 %s15, %s22
      %p71 = scmp.eq.s32.totalorder %s70, 0
      %s73 = sadd.s32 %s72, 1
      %s74 = scalar_select %p71, %s72, %s73
      %p77 = pneg %p71
      %p78 = scmp.eq.s32.totalorder %s15, 1
      %p79 = por %p77, %p78
      %p80 = scmp.ne.s32.totalorder %s72, %s75
      %p81 = scmp.eq.s32.totalorder %s15, 0
      %p82 = por %p80, %p81
      %p83 = scmp.ne.s32.totalorder %s72, %s75
      %p84 = scmp.eq.s32.totalorder %s20, 1
      %p85 = por %p83, %p84
      %p86 = scmp.ne.s32.totalorder %s75, %s76
      %p87 = scmp.eq.s32.totalorder %s20, 0
      %p88 = por %p86, %p87
      %p89 = scmp.ne.s32.totalorder %s75, %s76
      %p90 = scmp.eq.s32.totalorder %s21, 1
      %p91 = por %p89, %p90
      %p93 = scmp.ne.s32.totalorder %s76, %s92
      %p94 = scmp.eq.s32.totalorder %s21, 0
      %p95 = por %p93, %p94
      %p96 = scmp.le.s32.totalorder 1, %s15
      %p97 = scmp.lt.s32.totalorder %s15, 3
      %p98 = pnand %p96, %p97
      %p99 = pneg %p98
      // Predicated region
      $region9: #{tpu_custom_call.1} parent=5 // pred_check
        _
      $region10: #{tpu_custom_call.1} parent=5 // pred_check_branch
        %101 = sbr.rel (%p98) target = $region12
      $region11: #{tpu_custom_call.1} parent=5 // pred_region
        %s102 = ssub.s32 %s15, 1
        // Predicated region
        $region13: #{tpu_custom_call.1} parent=11 // pred_check
          %p103 = pneg %p62
        $region14: #{tpu_custom_call.1} parent=11 // pred_check_branch
          %105 = sbr.rel (%p103) target = $region16
        $region15: #{tpu_custom_call.1} parent=11 // pred_region
          %107 = vsyncadd [#allocation6], 0
          %s109 = sshll.u32 %s1, 4
          %s110 = int_to_ptr.hbm [resolvable:$true] %s109
          %s111 = sshll.u32 [#allocation5], 4
          %s112 = int_to_ptr.vmem [resolvable:$true] %s111
          %114 = dma.hbm_to_vmem [thread:$0]  %s110, 128, %s112, [#allocation6]
        $region16: #{tpu_custom_call.1} parent=11 // pred_fallthru
          _
      $region12: #{tpu_custom_call.1} parent=5 // pred_fallthru
        _
      %p115 = scmp.lt.s32.totalorder %s15, 2
      // Predicated region
      $region17: #{tpu_custom_call.1} parent=5 // pred_check
        %p116 = pneg %p115
      $region18: #{tpu_custom_call.1} parent=5 // pred_check_branch
        %118 = sbr.rel (%p116) target = $region20
      $region19: #{tpu_custom_call.1} parent=5 // pred_region
        // Predicated region
        $region21: #{tpu_custom_call.1} parent=19 // pred_check
          %p119 = pneg %p35
        $region22: #{tpu_custom_call.1} parent=19 // pred_check_branch
          %121 = sbr.rel (%p119) target = $region24
        $region23: #{tpu_custom_call.1} parent=19 // pred_region
          %s122 = sand.u32 %s25, 1
          %s123 = scalar_lea.sflag [#allocation3], %s122
          %s124 = sand.u32 %s25, 1
          %s125 = smul.addr %s124, 256
          %s126 = scalar_lea.vmem [#allocation2], %s125
          %s127 = smul.u32 4, %s15
          %129 = vsyncadd %s123, 0
          %s130 = smul.addr %s127, 8
          %s131 = smul.addr %s130, 8
          %s132 = scalar_lea.hbm %s0, %s131
          %s133 = sshll.u32 %s132, 4
          %s134 = int_to_ptr.hbm [resolvable:$true] %s133
          %s135 = sshll.u32 %s126, 4
          %s136 = int_to_ptr.vmem [resolvable:$true] %s135
          %141 = dma.hbm_to_vmem [thread:$0]  %s134, 4096, %s136, %s123, 128, 128, 8
        $region24: #{tpu_custom_call.1} parent=19 // pred_fallthru
          _
      $region20: #{tpu_custom_call.1} parent=5 // pred_fallthru
        _
      %p142 = scmp.le.s32.totalorder 1, %s15
      %p143 = scmp.lt.s32.totalorder %s15, 3
      %p144 = pnand %p142, %p143
      %p145 = pneg %p144
      // Predicated region
      $region25: #{tpu_custom_call.1} parent=5 // pred_check
        _
      $region26: #{tpu_custom_call.1} parent=5 // pred_check_branch
        %147 = sbr.rel (%p144) target = $region28
      $region27: #{tpu_custom_call.1} parent=5 // pred_region
        %s148 = ssub.s32 %s15, 1
        %s149 = sand.u32 %s28, 1
        %s150 = scalar_lea.sflag [#allocation3], %s149
        %s151 = sand.u32 %s28, 1
        %s152 = smul.addr %s151, 256
        %s153 = scalar_lea.vmem [#allocation2], %s152
        // Predicated region
        $region29: #{tpu_custom_call.1} parent=27 // pred_check
          %p154 = pneg %p41
        $region30: #{tpu_custom_call.1} parent=27 // pred_check_branch
          %156 = sbr.rel (%p154) target = $region32
        $region31: #{tpu_custom_call.1} parent=27 // pred_region
          %158 = dma.done %s150, 4096
        $region32: #{tpu_custom_call.1} parent=27 // pred_fallthru
          _
        // Predicated region
        $region33: #{tpu_custom_call.1} parent=27 // pred_check
          %p159 = pneg %p62
        $region34: #{tpu_custom_call.1} parent=27 // pred_check_branch
          %161 = sbr.rel (%p159) target = $region36
        $region35: #{tpu_custom_call.1} parent=27 // pred_region
          %163 = dma.done [#allocation6], 128
        $region36: #{tpu_custom_call.1} parent=27 // pred_fallthru
          _
        %s164 = sand.u32 %s28, 1
        %s165 = scalar_lea.sflag [#allocation3], %s164
        %s166 = sand.u32 %s28, 1
        %s167 = smul.addr %s166, 256
        %s168 = scalar_lea.vmem [#allocation2], %s167
        %p169 = pneg %p41
        %p170 = pneg %p38
        %p171 = pneg %p62
        %p172 = pneg %p59
        %p173 = pneg %p88
        %p174 = pneg %p85
        %s175 = sand.u32 %s75, 1
        %s176 = scalar_lea.sflag [#allocation4], %s175
        %s177 = sand.u32 %s75, 1
        %s178 = smul.addr %s177, 1024
        %s179 = scalar_lea.vmem [#allocation7], %s178
        %s180 = smul.u32 4, %s20
        %s181 = smul.u32 4, %s20
        %v182 = vld [vmem:[%s153] sm:$0xff]
        %v183 = vld [vmem:[%s153 + $0x8] sm:$0xff]
        %v184 = vld [vmem:[%s153 + $0x10] sm:$0xff]
        %v185 = vld [vmem:[%s153 + $0x18] sm:$0xff]
        %v186 = vld [vmem:[%s153 + $0x20] sm:$0xff]
        %v187 = vld [vmem:[%s153 + $0x28] sm:$0xff]
        %v188 = vld [vmem:[%s153 + $0x30] sm:$0xff]
        %v189 = vld [vmem:[%s153 + $0x38] sm:$0xff]
        %v190 = vld [vmem:[%s153 + $0x40] sm:$0xff]
        %v191 = vld [vmem:[%s153 + $0x48] sm:$0xff]
        %v192 = vld [vmem:[%s153 + $0x50] sm:$0xff]
        %v193 = vld [vmem:[%s153 + $0x58] sm:$0xff]
        %v194 = vld [vmem:[%s153 + $0x60] sm:$0xff]
        %v195 = vld [vmem:[%s153 + $0x68] sm:$0xff]
        %v196 = vld [vmem:[%s153 + $0x70] sm:$0xff]
        %v197 = vld [vmem:[%s153 + $0x78] sm:$0xff]
        %v198 = vld [vmem:[%s153 + $0x80] sm:$0xff]
        %v199 = vld [vmem:[%s153 + $0x88] sm:$0xff]
        %v200 = vld [vmem:[%s153 + $0x90] sm:$0xff]
        %v201 = vld [vmem:[%s153 + $0x98] sm:$0xff]
        %v202 = vld [vmem:[%s153 + $0xa0] sm:$0xff]
        %v203 = vld [vmem:[%s153 + $0xa8] sm:$0xff]
        %v204 = vld [vmem:[%s153 + $0xb0] sm:$0xff]
        %v205 = vld [vmem:[%s153 + $0xb8] sm:$0xff]
        %v206 = vld [vmem:[%s153 + $0xc0] sm:$0xff]
        %v207 = vld [vmem:[%s153 + $0xc8] sm:$0xff]
        %v208 = vld [vmem:[%s153 + $0xd0] sm:$0xff]
        %v209 = vld [vmem:[%s153 + $0xd8] sm:$0xff]
        %v210 = vld [vmem:[%s153 + $0xe0] sm:$0xff]
        %v211 = vld [vmem:[%s153 + $0xe8] sm:$0xff]
        %v212 = vld [vmem:[%s153 + $0xf0] sm:$0xff]
        %v213 = vld [vmem:[%s153 + $0xf8] sm:$0xff]
        %v214 = vld [vmem:[#allocation5] sm:$0xff]
        %vm215 = vcmask 64512
        %v217 = vsel %vm215, %v182, 0
        %v220 = vsel %vm215, %v183, 0
        %v223 = vsel %vm215, %v184, 0
        %v226 = vsel %vm215, %v185, 0
        %v229 = vsel %vm215, %v186, 0
        %v232 = vsel %vm215, %v187, 0
        %v235 = vsel %vm215, %v188, 0
        %v238 = vsel %vm215, %v189, 0
        %v241 = vsel %vm215, %v190, 0
        %v244 = vsel %vm215, %v191, 0
        %v247 = vsel %vm215, %v192, 0
        %v250 = vsel %vm215, %v193, 0
        %v253 = vsel %vm215, %v194, 0
        %v256 = vsel %vm215, %v195, 0
        %v259 = vsel %vm215, %v196, 0
        %v262 = vsel %vm215, %v197, 0
        %v265 = vsel %vm215, %v198, 0
        %v268 = vsel %vm215, %v199, 0
        %v271 = vsel %vm215, %v200, 0
        %v274 = vsel %vm215, %v201, 0
        %v277 = vsel %vm215, %v202, 0
        %v280 = vsel %vm215, %v203, 0
        %v283 = vsel %vm215, %v204, 0
        %v286 = vsel %vm215, %v205, 0
        %v289 = vsel %vm215, %v206, 0
        %v292 = vsel %vm215, %v207, 0
        %v295 = vsel %vm215, %v208, 0
        %v298 = vsel %vm215, %v209, 0
        %v301 = vsel %vm215, %v210, 0
        %v304 = vsel %vm215, %v211, 0
        %v307 = vsel %vm215, %v212, 0
        %v310 = vsel %vm215, %v213, 0
        %312 = vmatpush.msra.mxu0 0.0
        %313 = vmatpush.msra.mxu0 0.0
        %314 = vmatpush.msra.mxu0 0.0
        %315 = vmatpush.msra.mxu0 0.0
        %316 = vmatpush.msra.mxu0 0.0
        %317 = vmatpush.msra.mxu0 0.0
        %318 = vmatpush.msra.mxu0 0.0
        %319 = vmatpush.msra.mxu0 0.0
        %320 = vmatpush.msra.mxu0 0.0
        %321 = vmatpush.msra.mxu0 0.0
        %322 = vmatpush.msra.mxu0 0.0
        %323 = vmatpush.msra.mxu0 0.0
        %324 = vmatpush.msra.mxu0 0.0
        %325 = vmatpush.msra.mxu0 0.0
        %326 = vmatpush.msra.mxu0 0.0
        %v327 = vand.u32 %v214, 4294901760
        %328 = vmatpush.msra.mxu0 %v327
        %v329 = vand.u32 %v217, 4294901760
        %v330 = vsub.f32 %v217, %v329
        %v331 = vand.u32 %v330, 4294901760
        %v332 = vsub.f32 %v330, %v331
        %v333 = vand.u32 %v332, 4294901760
        %334 = vmatmul.f32.gmra.mxu0 %v333
        %v335 = vpop.f32.mrf.mxu0
        %v336 = vadd.f32 0.0, %v335
        %v337 = vand.u32 %v220, 4294901760
        %v338 = vsub.f32 %v220, %v337
        %v339 = vand.u32 %v338, 4294901760
        %v340 = vsub.f32 %v338, %v339
        %v341 = vand.u32 %v340, 4294901760
        %342 = vmatmul.f32.gmra.mxu0 %v341
        %v343 = vpop.f32.mrf.mxu0
        %v344 = vadd.f32 0.0, %v343
        %v345 = vand.u32 %v223, 4294901760
        %v346 = vsub.f32 %v223, %v345
        %v347 = vand.u32 %v346, 4294901760
        %v348 = vsub.f32 %v346, %v347
        %v349 = vand.u32 %v348, 4294901760
        %350 = vmatmul.f32.gmra.mxu0 %v349
        %v351 = vpop.f32.mrf.mxu0
        %v352 = vadd.f32 0.0, %v351
        %v353 = vand.u32 %v226, 4294901760
        %v354 = vsub.f32 %v226, %v353
        %v355 = vand.u32 %v354, 4294901760
        %v356 = vsub.f32 %v354, %v355
        %v357 = vand.u32 %v356, 4294901760
        %358 = vmatmul.f32.gmra.mxu0 %v357
        %v359 = vpop.f32.mrf.mxu0
        %v360 = vadd.f32 0.0, %v359
        %v361 = vand.u32 %v229, 4294901760
        %v362 = vsub.f32 %v229, %v361
        %v363 = vand.u32 %v362, 4294901760
        %v364 = vsub.f32 %v362, %v363
        %v365 = vand.u32 %v364, 4294901760
        %366 = vmatmul.f32.gmra.mxu0 %v365
        %v367 = vpop.f32.mrf.mxu0
        %v368 = vadd.f32 0.0, %v367
        %v369 = vand.u32 %v232, 4294901760
        %v370 = vsub.f32 %v232, %v369
        %v371 = vand.u32 %v370, 4294901760
        %v372 = vsub.f32 %v370, %v371
        %v373 = vand.u32 %v372, 4294901760
        %374 = vmatmul.f32.gmra.mxu0 %v373
        %v375 = vpop.f32.mrf.mxu0
        %v376 = vadd.f32 0.0, %v375
        %v377 = vand.u32 %v235, 4294901760
        %v378 = vsub.f32 %v235, %v377
        %v379 = vand.u32 %v378, 4294901760
        %v380 = vsub.f32 %v378, %v379
        %v381 = vand.u32 %v380, 4294901760
        %382 = vmatmul.f32.gmra.mxu0 %v381
        %v383 = vpop.f32.mrf.mxu0
        %v384 = vadd.f32 0.0, %v383
        %v385 = vand.u32 %v238, 4294901760
        %v386 = vsub.f32 %v238, %v385
        %v387 = vand.u32 %v386, 4294901760
        %v388 = vsub.f32 %v386, %v387
        %v389 = vand.u32 %v388, 4294901760
        %390 = vmatmul.f32.gmra.mxu0 %v389
        %v391 = vpop.f32.mrf.mxu0
        %v392 = vadd.f32 0.0, %v391
        %v393 = vand.u32 %v241, 4294901760
        %v394 = vsub.f32 %v241, %v393
        %v395 = vand.u32 %v394, 4294901760
        %v396 = vsub.f32 %v394, %v395
        %v397 = vand.u32 %v396, 4294901760
        %398 = vmatmul.f32.gmra.mxu0 %v397
        %v399 = vpop.f32.mrf.mxu0
        %v400 = vadd.f32 0.0, %v399
        %v401 = vand.u32 %v244, 4294901760
        %v402 = vsub.f32 %v244, %v401
        %v403 = vand.u32 %v402, 4294901760
        %v404 = vsub.f32 %v402, %v403
        %v405 = vand.u32 %v404, 4294901760
        %406 = vmatmul.f32.gmra.mxu0 %v405
        %v407 = vpop.f32.mrf.mxu0
        %v408 = vadd.f32 0.0, %v407
        %v409 = vand.u32 %v247, 4294901760
        %v410 = vsub.f32 %v247, %v409
        %v411 = vand.u32 %v410, 4294901760
        %v412 = vsub.f32 %v410, %v411
        %v413 = vand.u32 %v412, 4294901760
        %414 = vmatmul.f32.gmra.mxu0 %v413
        %v415 = vpop.f32.mrf.mxu0
        %v416 = vadd.f32 0.0, %v415
        %v417 = vand.u32 %v250, 4294901760
        %v418 = vsub.f32 %v250, %v417
        %v419 = vand.u32 %v418, 4294901760
        %v420 = vsub.f32 %v418, %v419
        %v421 = vand.u32 %v420, 4294901760
        %422 = vmatmul.f32.gmra.mxu0 %v421
        %v423 = vpop.f32.mrf.mxu0
        %v424 = vadd.f32 0.0, %v423
        %v425 = vand.u32 %v253, 4294901760
        %v426 = vsub.f32 %v253, %v425
        %v427 = vand.u32 %v426, 4294901760
        %v428 = vsub.f32 %v426, %v427
        %v429 = vand.u32 %v428, 4294901760
        %430 = vmatmul.f32.gmra.mxu0 %v429
        %v431 = vpop.f32.mrf.mxu0
        %v432 = vadd.f32 0.0, %v431
        %v433 = vand.u32 %v256, 4294901760
        %v434 = vsub.f32 %v256, %v433
        %v435 = vand.u32 %v434, 4294901760
        %v436 = vsub.f32 %v434, %v435
        %v437 = vand.u32 %v436, 4294901760
        %438 = vmatmul.f32.gmra.mxu0 %v437
        %v439 = vpop.f32.mrf.mxu0
        %v440 = vadd.f32 0.0, %v439
        %v441 = vand.u32 %v259, 4294901760
        %v442 = vsub.f32 %v259, %v441
        %v443 = vand.u32 %v442, 4294901760
        %v444 = vsub.f32 %v442, %v443
        %v445 = vand.u32 %v444, 4294901760
        %446 = vmatmul.f32.gmra.mxu0 %v445
        %v447 = vpop.f32.mrf.mxu0
        %v448 = vadd.f32 0.0, %v447
        %v449 = vand.u32 %v262, 4294901760
        %v450 = vsub.f32 %v262, %v449
        %v451 = vand.u32 %v450, 4294901760
        %v452 = vsub.f32 %v450, %v451
        %v453 = vand.u32 %v452, 4294901760
        %454 = vmatmul.f32.gmra.mxu0 %v453
        %v455 = vpop.f32.mrf.mxu0
        %v456 = vadd.f32 0.0, %v455
        %v457 = vand.u32 %v265, 4294901760
        %v458 = vsub.f32 %v265, %v457
        %v459 = vand.u32 %v458, 4294901760
        %v460 = vsub.f32 %v458, %v459
        %v461 = vand.u32 %v460, 4294901760
        %462 = vmatmul.f32.gmra.mxu0 %v461
        %v463 = vpop.f32.mrf.mxu0
        %v464 = vadd.f32 0.0, %v463
        %v465 = vand.u32 %v268, 4294901760
        %v466 = vsub.f32 %v268, %v465
        %v467 = vand.u32 %v466, 4294901760
        %v468 = vsub.f32 %v466, %v467
        %v469 = vand.u32 %v468, 4294901760
        %470 = vmatmul.f32.gmra.mxu0 %v469
        %v471 = vpop.f32.mrf.mxu0
        %v472 = vadd.f32 0.0, %v471
        %v473 = vand.u32 %v271, 4294901760
        %v474 = vsub.f32 %v271, %v473
        %v475 = vand.u32 %v474, 4294901760
        %v476 = vsub.f32 %v474, %v475
        %v477 = vand.u32 %v476, 4294901760
        %478 = vmatmul.f32.gmra.mxu0 %v477
        %v479 = vpop.f32.mrf.mxu0
        %v480 = vadd.f32 0.0, %v479
        %v481 = vand.u32 %v274, 4294901760
        %v482 = vsub.f32 %v274, %v481
        %v483 = vand.u32 %v482, 4294901760
        %v484 = vsub.f32 %v482, %v483
        %v485 = vand.u32 %v484, 4294901760
        %486 = vmatmul.f32.gmra.mxu0 %v485
        %v487 = vpop.f32.mrf.mxu0
        %v488 = vadd.f32 0.0, %v487
        %v489 = vand.u32 %v277, 4294901760
        %v490 = vsub.f32 %v277, %v489
        %v491 = vand.u32 %v490, 4294901760
        %v492 = vsub.f32 %v490, %v491
        %v493 = vand.u32 %v492, 4294901760
        %494 = vmatmul.f32.gmra.mxu0 %v493
        %v495 = vpop.f32.mrf.mxu0
        %v496 = vadd.f32 0.0, %v495
        %v497 = vand.u32 %v280, 4294901760
        %v498 = vsub.f32 %v280, %v497
        %v499 = vand.u32 %v498, 4294901760
        %v500 = vsub.f32 %v498, %v499
        %v501 = vand.u32 %v500, 4294901760
        %502 = vmatmul.f32.gmra.mxu0 %v501
        %v503 = vpop.f32.mrf.mxu0
        %v504 = vadd.f32 0.0, %v503
        %v505 = vand.u32 %v283, 4294901760
        %v506 = vsub.f32 %v283, %v505
        %v507 = vand.u32 %v506, 4294901760
        %v508 = vsub.f32 %v506, %v507
        %v509 = vand.u32 %v508, 4294901760
        %510 = vmatmul.f32.gmra.mxu0 %v509
        %v511 = vpop.f32.mrf.mxu0
        %v512 = vadd.f32 0.0, %v511
        %v513 = vand.u32 %v286, 4294901760
        %v514 = vsub.f32 %v286, %v513
        %v515 = vand.u32 %v514, 4294901760
        %v516 = vsub.f32 %v514, %v515
        %v517 = vand.u32 %v516, 4294901760
        %518 = vmatmul.f32.gmra.mxu0 %v517
        %v519 = vpop.f32.mrf.mxu0
        %v520 = vadd.f32 0.0, %v519
        %v521 = vand.u32 %v289, 4294901760
        %v522 = vsub.f32 %v289, %v521
        %v523 = vand.u32 %v522, 4294901760
        %v524 = vsub.f32 %v522, %v523
        %v525 = vand.u32 %v524, 4294901760
        %526 = vmatmul.f32.gmra.mxu0 %v525
        %v527 = vpop.f32.mrf.mxu0
        %v528 = vadd.f32 0.0, %v527
        %v529 = vand.u32 %v292, 4294901760
        %v530 = vsub.f32 %v292, %v529
        %v531 = vand.u32 %v530, 4294901760
        %v532 = vsub.f32 %v530, %v531
        %v533 = vand.u32 %v532, 4294901760
        %534 = vmatmul.f32.gmra.mxu0 %v533
        %v535 = vpop.f32.mrf.mxu0
        %v536 = vadd.f32 0.0, %v535
        %v537 = vand.u32 %v295, 4294901760
        %v538 = vsub.f32 %v295, %v537
        %v539 = vand.u32 %v538, 4294901760
        %v540 = vsub.f32 %v538, %v539
        %v541 = vand.u32 %v540, 4294901760
        %542 = vmatmul.f32.gmra.mxu0 %v541
        %v543 = vpop.f32.mrf.mxu0
        %v544 = vadd.f32 0.0, %v543
        %v545 = vand.u32 %v298, 4294901760
        %v546 = vsub.f32 %v298, %v545
        %v547 = vand.u32 %v546, 4294901760
        %v548 = vsub.f32 %v546, %v547
        %v549 = vand.u32 %v548, 4294901760
        %550 = vmatmul.f32.gmra.mxu0 %v549
        %v551 = vpop.f32.mrf.mxu0
        %v552 = vadd.f32 0.0, %v551
        %v553 = vand.u32 %v301, 4294901760
        %v554 = vsub.f32 %v301, %v553
        %v555 = vand.u32 %v554, 4294901760
        %v556 = vsub.f32 %v554, %v555
        %v557 = vand.u32 %v556, 4294901760
        %558 = vmatmul.f32.gmra.mxu0 %v557
        %v559 = vpop.f32.mrf.mxu0
        %v560 = vadd.f32 0.0, %v559
        %v561 = vand.u32 %v304, 4294901760
        %v562 = vsub.f32 %v304, %v561
        %v563 = vand.u32 %v562, 4294901760
        %v564 = vsub.f32 %v562, %v563
        %v565 = vand.u32 %v564, 4294901760
        %566 = vmatmul.f32.gmra.mxu0 %v565
        %v567 = vpop.f32.mrf.mxu0
        %v568 = vadd.f32 0.0, %v567
        %v569 = vand.u32 %v307, 4294901760
        %v570 = vsub.f32 %v307, %v569
        %v571 = vand.u32 %v570, 4294901760
        %v572 = vsub.f32 %v570, %v571
        %v573 = vand.u32 %v572, 4294901760
        %574 = vmatmul.f32.gmra.mxu0 %v573
        %v575 = vpop.f32.mrf.mxu0
        %v576 = vadd.f32 0.0, %v575
        %v577 = vand.u32 %v310, 4294901760
        %v578 = vsub.f32 %v310, %v577
        %v579 = vand.u32 %v578, 4294901760
        %v580 = vsub.f32 %v578, %v579
        %v581 = vand.u32 %v580, 4294901760
        %582 = vmatmul.f32.gmra.mxu0 %v581
        %v583 = vpop.f32.mrf.mxu0
        %v584 = vadd.f32 0.0, %v583
        %585 = vdwg.mxu0
        %586 = vmatpush.msra.mxu0 0.0
        %587 = vmatpush.msra.mxu0 0.0
        %588 = vmatpush.msra.mxu0 0.0
        %589 = vmatpush.msra.mxu0 0.0
        %590 = vmatpush.msra.mxu0 0.0
        %591 = vmatpush.msra.mxu0 0.0
        %592 = vmatpush.msra.mxu0 0.0
        %593 = vmatpush.msra.mxu0 0.0
        %594 = vmatpush.msra.mxu0 0.0
        %595 = vmatpush.msra.mxu0 0.0
        %596 = vmatpush.msra.mxu0 0.0
        %597 = vmatpush.msra.mxu0 0.0
        %598 = vmatpush.msra.mxu0 0.0
        %599 = vmatpush.msra.mxu0 0.0
        %600 = vmatpush.msra.mxu0 0.0
        %v601 = vand.u32 %v214, 4294901760
        %v602 = vsub.f32 %v214, %v601
        %v603 = vand.u32 %v602, 4294901760
        %v604 = vsub.f32 %v602, %v603
        %v605 = vand.u32 %v604, 4294901760
        %606 = vmatpush.msra.mxu0 %v605
        %v607 = vand.u32 %v217, 4294901760
        %608 = vmatmul.f32.gmra.mxu0 %v607
        %v609 = vpop.f32.mrf.mxu0
        %v610 = vadd.f32 %v336, %v609
        %v611 = vand.u32 %v220, 4294901760
        %612 = vmatmul.f32.gmra.mxu0 %v611
        %v613 = vpop.f32.mrf.mxu0
        %v614 = vadd.f32 %v344, %v613
        %v615 = vand.u32 %v223, 4294901760
        %616 = vmatmul.f32.gmra.mxu0 %v615
        %v617 = vpop.f32.mrf.mxu0
        %v618 = vadd.f32 %v352, %v617
        %v619 = vand.u32 %v226, 4294901760
        %620 = vmatmul.f32.gmra.mxu0 %v619
        %v621 = vpop.f32.mrf.mxu0
        %v622 = vadd.f32 %v360, %v621
        %v623 = vand.u32 %v229, 4294901760
        %624 = vmatmul.f32.gmra.mxu0 %v623
        %v625 = vpop.f32.mrf.mxu0
        %v626 = vadd.f32 %v368, %v625
        %v627 = vand.u32 %v232, 4294901760
        %628 = vmatmul.f32.gmra.mxu0 %v627
        %v629 = vpop.f32.mrf.mxu0
        %v630 = vadd.f32 %v376, %v629
        %v631 = vand.u32 %v235, 4294901760
        %632 = vmatmul.f32.gmra.mxu0 %v631
        %v633 = vpop.f32.mrf.mxu0
        %v634 = vadd.f32 %v384, %v633
        %v635 = vand.u32 %v238, 4294901760
        %636 = vmatmul.f32.gmra.mxu0 %v635
        %v637 = vpop.f32.mrf.mxu0
        %v638 = vadd.f32 %v392, %v637
        %v639 = vand.u32 %v241, 4294901760
        %640 = vmatmul.f32.gmra.mxu0 %v639
        %v641 = vpop.f32.mrf.mxu0
        %v642 = vadd.f32 %v400, %v641
        %v643 = vand.u32 %v244, 4294901760
        %644 = vmatmul.f32.gmra.mxu0 %v643
        %v645 = vpop.f32.mrf.mxu0
        %v646 = vadd.f32 %v408, %v645
        %v647 = vand.u32 %v247, 4294901760
        %648 = vmatmul.f32.gmra.mxu0 %v647
        %v649 = vpop.f32.mrf.mxu0
        %v650 = vadd.f32 %v416, %v649
        %v651 = vand.u32 %v250, 4294901760
        %652 = vmatmul.f32.gmra.mxu0 %v651
        %v653 = vpop.f32.mrf.mxu0
        %v654 = vadd.f32 %v424, %v653
        %v655 = vand.u32 %v253, 4294901760
        %656 = vmatmul.f32.gmra.mxu0 %v655
        %v657 = vpop.f32.mrf.mxu0
        %v658 = vadd.f32 %v432, %v657
        %v659 = vand.u32 %v256, 4294901760
        %660 = vmatmul.f32.gmra.mxu0 %v659
        %v661 = vpop.f32.mrf.mxu0
        %v662 = vadd.f32 %v440, %v661
        %v663 = vand.u32 %v259, 4294901760
        %664 = vmatmul.f32.gmra.mxu0 %v663
        %v665 = vpop.f32.mrf.mxu0
        %v666 = vadd.f32 %v448, %v665
        %v667 = vand.u32 %v262, 4294901760
        %668 = vmatmul.f32.gmra.mxu0 %v667
        %v669 = vpop.f32.mrf.mxu0
        %v670 = vadd.f32 %v456, %v669
        %v671 = vand.u32 %v265, 4294901760
        %672 = vmatmul.f32.gmra.mxu0 %v671
        %v673 = vpop.f32.mrf.mxu0
        %v674 = vadd.f32 %v464, %v673
        %v675 = vand.u32 %v268, 4294901760
        %676 = vmatmul.f32.gmra.mxu0 %v675
        %v677 = vpop.f32.mrf.mxu0
        %v678 = vadd.f32 %v472, %v677
        %v679 = vand.u32 %v271, 4294901760
        %680 = vmatmul.f32.gmra.mxu0 %v679
        %v681 = vpop.f32.mrf.mxu0
        %v682 = vadd.f32 %v480, %v681
        %v683 = vand.u32 %v274, 4294901760
        %684 = vmatmul.f32.gmra.mxu0 %v683
        %v685 = vpop.f32.mrf.mxu0
        %v686 = vadd.f32 %v488, %v685
        %v687 = vand.u32 %v277, 4294901760
        %688 = vmatmul.f32.gmra.mxu0 %v687
        %v689 = vpop.f32.mrf.mxu0
        %v690 = vadd.f32 %v496, %v689
        %v691 = vand.u32 %v280, 4294901760
        %692 = vmatmul.f32.gmra.mxu0 %v691
        %v693 = vpop.f32.mrf.mxu0
        %v694 = vadd.f32 %v504, %v693
        %v695 = vand.u32 %v283, 4294901760
        %696 = vmatmul.f32.gmra.mxu0 %v695
        %v697 = vpop.f32.mrf.mxu0
        %v698 = vadd.f32 %v512, %v697
        %v699 = vand.u32 %v286, 4294901760
        %700 = vmatmul.f32.gmra.mxu0 %v699
        %v701 = vpop.f32.mrf.mxu0
        %v702 = vadd.f32 %v520, %v701
        %v703 = vand.u32 %v289, 4294901760
        %704 = vmatmul.f32.gmra.mxu0 %v703
        %v705 = vpop.f32.mrf.mxu0
        %v706 = vadd.f32 %v528, %v705
        %v707 = vand.u32 %v292, 4294901760
        %708 = vmatmul.f32.gmra.mxu0 %v707
        %v709 = vpop.f32.mrf.mxu0
        %v710 = vadd.f32 %v536, %v709
        %v711 = vand.u32 %v295, 4294901760
        %712 = vmatmul.f32.gmra.mxu0 %v711
        %v713 = vpop.f32.mrf.mxu0
        %v714 = vadd.f32 %v544, %v713
        %v715 = vand.u32 %v298, 4294901760
        %716 = vmatmul.f32.gmra.mxu0 %v715
        %v717 = vpop.f32.mrf.mxu0
        %v718 = vadd.f32 %v552, %v717
        %v719 = vand.u32 %v301, 4294901760
        %720 = vmatmul.f32.gmra.mxu0 %v719
        %v721 = vpop.f32.mrf.mxu0
        %v722 = vadd.f32 %v560, %v721
        %v723 = vand.u32 %v304, 4294901760
        %724 = vmatmul.f32.gmra.mxu0 %v723
        %v725 = vpop.f32.mrf.mxu0
        %v726 = vadd.f32 %v568, %v725
        %v727 = vand.u32 %v307, 4294901760
        %728 = vmatmul.f32.gmra.mxu0 %v727
        %v729 = vpop.f32.mrf.mxu0
        %v730 = vadd.f32 %v576, %v729
        %v731 = vand.u32 %v310, 4294901760
        %732 = vmatmul.f32.gmra.mxu0 %v731
        %v733 = vpop.f32.mrf.mxu0
        %v734 = vadd.f32 %v584, %v733
        %735 = vdwg.mxu0
        %736 = vmatpush.msra.mxu0 0.0
        %737 = vmatpush.msra.mxu0 0.0
        %738 = vmatpush.msra.mxu0 0.0
        %739 = vmatpush.msra.mxu0 0.0
        %740 = vmatpush.msra.mxu0 0.0
        %741 = vmatpush.msra.mxu0 0.0
        %742 = vmatpush.msra.mxu0 0.0
        %743 = vmatpush.msra.mxu0 0.0
        %744 = vmatpush.msra.mxu0 0.0
        %745 = vmatpush.msra.mxu0 0.0
        %746 = vmatpush.msra.mxu0 0.0
        %747 = vmatpush.msra.mxu0 0.0
        %748 = vmatpush.msra.mxu0 0.0
        %749 = vmatpush.msra.mxu0 0.0
        %750 = vmatpush.msra.mxu0 0.0
        %v751 = vand.u32 %v214, 4294901760
        %v752 = vsub.f32 %v214, %v751
        %753 = vmatpush.msra.mxu0 %v752
        %v754 = vand.u32 %v217, 4294901760
        %v755 = vsub.f32 %v217, %v754
        %756 = vmatmul.f32.gmra.mxu0 %v755
        %v757 = vpop.f32.mrf.mxu0
        %v758 = vadd.f32 %v610, %v757
        %v759 = vand.u32 %v220, 4294901760
        %v760 = vsub.f32 %v220, %v759
        %761 = vmatmul.f32.gmra.mxu0 %v760
        %v762 = vpop.f32.mrf.mxu0
        %v763 = vadd.f32 %v614, %v762
        %v764 = vand.u32 %v223, 4294901760
        %v765 = vsub.f32 %v223, %v764
        %766 = vmatmul.f32.gmra.mxu0 %v765
        %v767 = vpop.f32.mrf.mxu0
        %v768 = vadd.f32 %v618, %v767
        %v769 = vand.u32 %v226, 4294901760
        %v770 = vsub.f32 %v226, %v769
        %771 = vmatmul.f32.gmra.mxu0 %v770
        %v772 = vpop.f32.mrf.mxu0
        %v773 = vadd.f32 %v622, %v772
        %v774 = vand.u32 %v229, 4294901760
        %v775 = vsub.f32 %v229, %v774
        %776 = vmatmul.f32.gmra.mxu0 %v775
        %v777 = vpop.f32.mrf.mxu0
        %v778 = vadd.f32 %v626, %v777
        %v779 = vand.u32 %v232, 4294901760
        %v780 = vsub.f32 %v232, %v779
        %781 = vmatmul.f32.gmra.mxu0 %v780
        %v782 = vpop.f32.mrf.mxu0
        %v783 = vadd.f32 %v630, %v782
        %v784 = vand.u32 %v235, 4294901760
        %v785 = vsub.f32 %v235, %v784
        %786 = vmatmul.f32.gmra.mxu0 %v785
        %v787 = vpop.f32.mrf.mxu0
        %v788 = vadd.f32 %v634, %v787
        %v789 = vand.u32 %v238, 4294901760
        %v790 = vsub.f32 %v238, %v789
        %791 = vmatmul.f32.gmra.mxu0 %v790
        %v792 = vpop.f32.mrf.mxu0
        %v793 = vadd.f32 %v638, %v792
        %v794 = vand.u32 %v241, 4294901760
        %v795 = vsub.f32 %v241, %v794
        %796 = vmatmul.f32.gmra.mxu0 %v795
        %v797 = vpop.f32.mrf.mxu0
        %v798 = vadd.f32 %v642, %v797
        %v799 = vand.u32 %v244, 4294901760
        %v800 = vsub.f32 %v244, %v799
        %801 = vmatmul.f32.gmra.mxu0 %v800
        %v802 = vpop.f32.mrf.mxu0
        %v803 = vadd.f32 %v646, %v802
        %v804 = vand.u32 %v247, 4294901760
        %v805 = vsub.f32 %v247, %v804
        %806 = vmatmul.f32.gmra.mxu0 %v805
        %v807 = vpop.f32.mrf.mxu0
        %v808 = vadd.f32 %v650, %v807
        %v809 = vand.u32 %v250, 4294901760
        %v810 = vsub.f32 %v250, %v809
        %811 = vmatmul.f32.gmra.mxu0 %v810
        %v812 = vpop.f32.mrf.mxu0
        %v813 = vadd.f32 %v654, %v812
        %v814 = vand.u32 %v253, 4294901760
        %v815 = vsub.f32 %v253, %v814
        %816 = vmatmul.f32.gmra.mxu0 %v815
        %v817 = vpop.f32.mrf.mxu0
        %v818 = vadd.f32 %v658, %v817
        %v819 = vand.u32 %v256, 4294901760
        %v820 = vsub.f32 %v256, %v819
        %821 = vmatmul.f32.gmra.mxu0 %v820
        %v822 = vpop.f32.mrf.mxu0
        %v823 = vadd.f32 %v662, %v822
        %v824 = vand.u32 %v259, 4294901760
        %v825 = vsub.f32 %v259, %v824
        %826 = vmatmul.f32.gmra.mxu0 %v825
        %v827 = vpop.f32.mrf.mxu0
        %v828 = vadd.f32 %v666, %v827
        %v829 = vand.u32 %v262, 4294901760
        %v830 = vsub.f32 %v262, %v829
        %831 = vmatmul.f32.gmra.mxu0 %v830
        %v832 = vpop.f32.mrf.mxu0
        %v833 = vadd.f32 %v670, %v832
        %v834 = vand.u32 %v265, 4294901760
        %v835 = vsub.f32 %v265, %v834
        %836 = vmatmul.f32.gmra.mxu0 %v835
        %v837 = vpop.f32.mrf.mxu0
        %v838 = vadd.f32 %v674, %v837
        %v839 = vand.u32 %v268, 4294901760
        %v840 = vsub.f32 %v268, %v839
        %841 = vmatmul.f32.gmra.mxu0 %v840
        %v842 = vpop.f32.mrf.mxu0
        %v843 = vadd.f32 %v678, %v842
        %v844 = vand.u32 %v271, 4294901760
        %v845 = vsub.f32 %v271, %v844
        %846 = vmatmul.f32.gmra.mxu0 %v845
        %v847 = vpop.f32.mrf.mxu0
        %v848 = vadd.f32 %v682, %v847
        %v849 = vand.u32 %v274, 4294901760
        %v850 = vsub.f32 %v274, %v849
        %851 = vmatmul.f32.gmra.mxu0 %v850
        %v852 = vpop.f32.mrf.mxu0
        %v853 = vadd.f32 %v686, %v852
        %v854 = vand.u32 %v277, 4294901760
        %v855 = vsub.f32 %v277, %v854
        %856 = vmatmul.f32.gmra.mxu0 %v855
        %v857 = vpop.f32.mrf.mxu0
        %v858 = vadd.f32 %v690, %v857
        %v859 = vand.u32 %v280, 4294901760
        %v860 = vsub.f32 %v280, %v859
        %861 = vmatmul.f32.gmra.mxu0 %v860
        %v862 = vpop.f32.mrf.mxu0
        %v863 = vadd.f32 %v694, %v862
        %v864 = vand.u32 %v283, 4294901760
        %v865 = vsub.f32 %v283, %v864
        %866 = vmatmul.f32.gmra.mxu0 %v865
        %v867 = vpop.f32.mrf.mxu0
        %v868 = vadd.f32 %v698, %v867
        %v869 = vand.u32 %v286, 4294901760
        %v870 = vsub.f32 %v286, %v869
        %871 = vmatmul.f32.gmra.mxu0 %v870
        %v872 = vpop.f32.mrf.mxu0
        %v873 = vadd.f32 %v702, %v872
        %v874 = vand.u32 %v289, 4294901760
        %v875 = vsub.f32 %v289, %v874
        %876 = vmatmul.f32.gmra.mxu0 %v875
        %v877 = vpop.f32.mrf.mxu0
        %v878 = vadd.f32 %v706, %v877
        %v879 = vand.u32 %v292, 4294901760
        %v880 = vsub.f32 %v292, %v879
        %881 = vmatmul.f32.gmra.mxu0 %v880
        %v882 = vpop.f32.mrf.mxu0
        %v883 = vadd.f32 %v710, %v882
        %v884 = vand.u32 %v295, 4294901760
        %v885 = vsub.f32 %v295, %v884
        %886 = vmatmul.f32.gmra.mxu0 %v885
        %v887 = vpop.f32.mrf.mxu0
        %v888 = vadd.f32 %v714, %v887
        %v889 = vand.u32 %v298, 4294901760
        %v890 = vsub.f32 %v298, %v889
        %891 = vmatmul.f32.gmra.mxu0 %v890
        %v892 = vpop.f32.mrf.mxu0
        %v893 = vadd.f32 %v718, %v892
        %v894 = vand.u32 %v301, 4294901760
        %v895 = vsub.f32 %v301, %v894
        %896 = vmatmul.f32.gmra.mxu0 %v895
        %v897 = vpop.f32.mrf.mxu0
        %v898 = vadd.f32 %v722, %v897
        %v899 = vand.u32 %v304, 4294901760
        %v900 = vsub.f32 %v304, %v899
        %901 = vmatmul.f32.gmra.mxu0 %v900
        %v902 = vpop.f32.mrf.mxu0
        %v903 = vadd.f32 %v726, %v902
        %v904 = vand.u32 %v307, 4294901760
        %v905 = vsub.f32 %v307, %v904
        %906 = vmatmul.f32.gmra.mxu0 %v905
        %v907 = vpop.f32.mrf.mxu0
        %v908 = vadd.f32 %v730, %v907
        %v909 = vand.u32 %v310, 4294901760
        %v910 = vsub.f32 %v310, %v909
        %911 = vmatmul.f32.gmra.mxu0 %v910
        %v912 = vpop.f32.mrf.mxu0
        %v913 = vadd.f32 %v734, %v912
        %914 = vdwg.mxu0
        %915 = vmatpush.msra.mxu0 0.0
        %916 = vmatpush.msra.mxu0 0.0
        %917 = vmatpush.msra.mxu0 0.0
        %918 = vmatpush.msra.mxu0 0.0
        %919 = vmatpush.msra.mxu0 0.0
        %920 = vmatpush.msra.mxu0 0.0
        %921 = vmatpush.msra.mxu0 0.0
        %922 = vmatpush.msra.mxu0 0.0
        %923 = vmatpush.msra.mxu0 0.0
        %924 = vmatpush.msra.mxu0 0.0
        %925 = vmatpush.msra.mxu0 0.0
        %926 = vmatpush.msra.mxu0 0.0
        %927 = vmatpush.msra.mxu0 0.0
        %928 = vmatpush.msra.mxu0 0.0
        %929 = vmatpush.msra.mxu0 0.0
        %v930 = vand.u32 %v214, 4294901760
        %931 = vmatpush.msra.mxu0 %v930
        %v932 = vand.u32 %v217, 4294901760
        %v933 = vsub.f32 %v217, %v932
        %v934 = vand.u32 %v933, 4294901760
        %935 = vmatmul.f32.gmra.mxu0 %v934
        %v936 = vpop.f32.mrf.mxu0
        %v937 = vadd.f32 %v758, %v936
        %v938 = vand.u32 %v220, 4294901760
        %v939 = vsub.f32 %v220, %v938
        %v940 = vand.u32 %v939, 4294901760
        %941 = vmatmul.f32.gmra.mxu0 %v940
        %v942 = vpop.f32.mrf.mxu0
        %v943 = vadd.f32 %v763, %v942
        %v944 = vand.u32 %v223, 4294901760
        %v945 = vsub.f32 %v223, %v944
        %v946 = vand.u32 %v945, 4294901760
        %947 = vmatmul.f32.gmra.mxu0 %v946
        %v948 = vpop.f32.mrf.mxu0
        %v949 = vadd.f32 %v768, %v948
        %v950 = vand.u32 %v226, 4294901760
        %v951 = vsub.f32 %v226, %v950
        %v952 = vand.u32 %v951, 4294901760
        %953 = vmatmul.f32.gmra.mxu0 %v952
        %v954 = vpop.f32.mrf.mxu0
        %v955 = vadd.f32 %v773, %v954
        %v956 = vand.u32 %v229, 4294901760
        %v957 = vsub.f32 %v229, %v956
        %v958 = vand.u32 %v957, 4294901760
        %959 = vmatmul.f32.gmra.mxu0 %v958
        %v960 = vpop.f32.mrf.mxu0
        %v961 = vadd.f32 %v778, %v960
        %v962 = vand.u32 %v232, 4294901760
        %v963 = vsub.f32 %v232, %v962
        %v964 = vand.u32 %v963, 4294901760
        %965 = vmatmul.f32.gmra.mxu0 %v964
        %v966 = vpop.f32.mrf.mxu0
        %v967 = vadd.f32 %v783, %v966
        %v968 = vand.u32 %v235, 4294901760
        %v969 = vsub.f32 %v235, %v968
        %v970 = vand.u32 %v969, 4294901760
        %971 = vmatmul.f32.gmra.mxu0 %v970
        %v972 = vpop.f32.mrf.mxu0
        %v973 = vadd.f32 %v788, %v972
        %v974 = vand.u32 %v238, 4294901760
        %v975 = vsub.f32 %v238, %v974
        %v976 = vand.u32 %v975, 4294901760
        %977 = vmatmul.f32.gmra.mxu0 %v976
        %v978 = vpop.f32.mrf.mxu0
        %v979 = vadd.f32 %v793, %v978
        %v980 = vand.u32 %v241, 4294901760
        %v981 = vsub.f32 %v241, %v980
        %v982 = vand.u32 %v981, 4294901760
        %983 = vmatmul.f32.gmra.mxu0 %v982
        %v984 = vpop.f32.mrf.mxu0
        %v985 = vadd.f32 %v798, %v984
        %v986 = vand.u32 %v244, 4294901760
        %v987 = vsub.f32 %v244, %v986
        %v988 = vand.u32 %v987, 4294901760
        %989 = vmatmul.f32.gmra.mxu0 %v988
        %v990 = vpop.f32.mrf.mxu0
        %v991 = vadd.f32 %v803, %v990
        %v992 = vand.u32 %v247, 4294901760
        %v993 = vsub.f32 %v247, %v992
        %v994 = vand.u32 %v993, 4294901760
        %995 = vmatmul.f32.gmra.mxu0 %v994
        %v996 = vpop.f32.mrf.mxu0
        %v997 = vadd.f32 %v808, %v996
        %v998 = vand.u32 %v250, 4294901760
        %v999 = vsub.f32 %v250, %v998
        %v1000 = vand.u32 %v999, 4294901760
        %1001 = vmatmul.f32.gmra.mxu0 %v1000
        %v1002 = vpop.f32.mrf.mxu0
        %v1003 = vadd.f32 %v813, %v1002
        %v1004 = vand.u32 %v253, 4294901760
        %v1005 = vsub.f32 %v253, %v1004
        %v1006 = vand.u32 %v1005, 4294901760
        %1007 = vmatmul.f32.gmra.mxu0 %v1006
        %v1008 = vpop.f32.mrf.mxu0
        %v1009 = vadd.f32 %v818, %v1008
        %v1010 = vand.u32 %v256, 4294901760
        %v1011 = vsub.f32 %v256, %v1010
        %v1012 = vand.u32 %v1011, 4294901760
        %1013 = vmatmul.f32.gmra.mxu0 %v1012
        %v1014 = vpop.f32.mrf.mxu0
        %v1015 = vadd.f32 %v823, %v1014
        %v1016 = vand.u32 %v259, 4294901760
        %v1017 = vsub.f32 %v259, %v1016
        %v1018 = vand.u32 %v1017, 4294901760
        %1019 = vmatmul.f32.gmra.mxu0 %v1018
        %v1020 = vpop.f32.mrf.mxu0
        %v1021 = vadd.f32 %v828, %v1020
        %v1022 = vand.u32 %v262, 4294901760
        %v1023 = vsub.f32 %v262, %v1022
        %v1024 = vand.u32 %v1023, 4294901760
        %1025 = vmatmul.f32.gmra.mxu0 %v1024
        %v1026 = vpop.f32.mrf.mxu0
        %v1027 = vadd.f32 %v833, %v1026
        %v1028 = vand.u32 %v265, 4294901760
        %v1029 = vsub.f32 %v265, %v1028
        %v1030 = vand.u32 %v1029, 4294901760
        %1031 = vmatmul.f32.gmra.mxu0 %v1030
        %v1032 = vpop.f32.mrf.mxu0
        %v1033 = vadd.f32 %v838, %v1032
        %v1034 = vand.u32 %v268, 4294901760
        %v1035 = vsub.f32 %v268, %v1034
        %v1036 = vand.u32 %v1035, 4294901760
        %1037 = vmatmul.f32.gmra.mxu0 %v1036
        %v1038 = vpop.f32.mrf.mxu0
        %v1039 = vadd.f32 %v843, %v1038
        %v1040 = vand.u32 %v271, 4294901760
        %v1041 = vsub.f32 %v271, %v1040
        %v1042 = vand.u32 %v1041, 4294901760
        %1043 = vmatmul.f32.gmra.mxu0 %v1042
        %v1044 = vpop.f32.mrf.mxu0
        %v1045 = vadd.f32 %v848, %v1044
        %v1046 = vand.u32 %v274, 4294901760
        %v1047 = vsub.f32 %v274, %v1046
        %v1048 = vand.u32 %v1047, 4294901760
        %1049 = vmatmul.f32.gmra.mxu0 %v1048
        %v1050 = vpop.f32.mrf.mxu0
        %v1051 = vadd.f32 %v853, %v1050
        %v1052 = vand.u32 %v277, 4294901760
        %v1053 = vsub.f32 %v277, %v1052
        %v1054 = vand.u32 %v1053, 4294901760
        %1055 = vmatmul.f32.gmra.mxu0 %v1054
        %v1056 = vpop.f32.mrf.mxu0
        %v1057 = vadd.f32 %v858, %v1056
        %v1058 = vand.u32 %v280, 4294901760
        %v1059 = vsub.f32 %v280, %v1058
        %v1060 = vand.u32 %v1059, 4294901760
        %1061 = vmatmul.f32.gmra.mxu0 %v1060
        %v1062 = vpop.f32.mrf.mxu0
        %v1063 = vadd.f32 %v863, %v1062
        %v1064 = vand.u32 %v283, 4294901760
        %v1065 = vsub.f32 %v283, %v1064
        %v1066 = vand.u32 %v1065, 4294901760
        %1067 = vmatmul.f32.gmra.mxu0 %v1066
        %v1068 = vpop.f32.mrf.mxu0
        %v1069 = vadd.f32 %v868, %v1068
        %v1070 = vand.u32 %v286, 4294901760
        %v1071 = vsub.f32 %v286, %v1070
        %v1072 = vand.u32 %v1071, 4294901760
        %1073 = vmatmul.f32.gmra.mxu0 %v1072
        %v1074 = vpop.f32.mrf.mxu0
        %v1075 = vadd.f32 %v873, %v1074
        %v1076 = vand.u32 %v289, 4294901760
        %v1077 = vsub.f32 %v289, %v1076
        %v1078 = vand.u32 %v1077, 4294901760
        %1079 = vmatmul.f32.gmra.mxu0 %v1078
        %v1080 = vpop.f32.mrf.mxu0
        %v1081 = vadd.f32 %v878, %v1080
        %v1082 = vand.u32 %v292, 4294901760
        %v1083 = vsub.f32 %v292, %v1082
        %v1084 = vand.u32 %v1083, 4294901760
        %1085 = vmatmul.f32.gmra.mxu0 %v1084
        %v1086 = vpop.f32.mrf.mxu0
        %v1087 = vadd.f32 %v883, %v1086
        %v1088 = vand.u32 %v295, 4294901760
        %v1089 = vsub.f32 %v295, %v1088
        %v1090 = vand.u32 %v1089, 4294901760
        %1091 = vmatmul.f32.gmra.mxu0 %v1090
        %v1092 = vpop.f32.mrf.mxu0
        %v1093 = vadd.f32 %v888, %v1092
        %v1094 = vand.u32 %v298, 4294901760
        %v1095 = vsub.f32 %v298, %v1094
        %v1096 = vand.u32 %v1095, 4294901760
        %1097 = vmatmul.f32.gmra.mxu0 %v1096
        %v1098 = vpop.f32.mrf.mxu0
        %v1099 = vadd.f32 %v893, %v1098
        %v1100 = vand.u32 %v301, 4294901760
        %v1101 = vsub.f32 %v301, %v1100
        %v1102 = vand.u32 %v1101, 4294901760
        %1103 = vmatmul.f32.gmra.mxu0 %v1102
        %v1104 = vpop.f32.mrf.mxu0
        %v1105 = vadd.f32 %v898, %v1104
        %v1106 = vand.u32 %v304, 4294901760
        %v1107 = vsub.f32 %v304, %v1106
        %v1108 = vand.u32 %v1107, 4294901760
        %1109 = vmatmul.f32.gmra.mxu0 %v1108
        %v1110 = vpop.f32.mrf.mxu0
        %v1111 = vadd.f32 %v903, %v1110
        %v1112 = vand.u32 %v307, 4294901760
        %v1113 = vsub.f32 %v307, %v1112
        %v1114 = vand.u32 %v1113, 4294901760
        %1115 = vmatmul.f32.gmra.mxu0 %v1114
        %v1116 = vpop.f32.mrf.mxu0
        %v1117 = vadd.f32 %v908, %v1116
        %v1118 = vand.u32 %v310, 4294901760
        %v1119 = vsub.f32 %v310, %v1118
        %v1120 = vand.u32 %v1119, 4294901760
        %1121 = vmatmul.f32.gmra.mxu0 %v1120
        %v1122 = vpop.f32.mrf.mxu0
        %v1123 = vadd.f32 %v913, %v1122
        %1124 = vdwg.mxu0
        %1125 = vmatpush.msra.mxu0 0.0
        %1126 = vmatpush.msra.mxu0 0.0
        %1127 = vmatpush.msra.mxu0 0.0
        %1128 = vmatpush.msra.mxu0 0.0
        %1129 = vmatpush.msra.mxu0 0.0
        %1130 = vmatpush.msra.mxu0 0.0
        %1131 = vmatpush.msra.mxu0 0.0
        %1132 = vmatpush.msra.mxu0 0.0
        %1133 = vmatpush.msra.mxu0 0.0
        %1134 = vmatpush.msra.mxu0 0.0
        %1135 = vmatpush.msra.mxu0 0.0
        %1136 = vmatpush.msra.mxu0 0.0
        %1137 = vmatpush.msra.mxu0 0.0
        %1138 = vmatpush.msra.mxu0 0.0
        %1139 = vmatpush.msra.mxu0 0.0
        %v1140 = vand.u32 %v214, 4294901760
        %v1141 = vsub.f32 %v214, %v1140
        %v1142 = vand.u32 %v1141, 4294901760
        %1143 = vmatpush.msra.mxu0 %v1142
        %v1144 = vand.u32 %v217, 4294901760
        %1145 = vmatmul.f32.gmra.mxu0 %v1144
        %v1146 = vpop.f32.mrf.mxu0
        %v1147 = vadd.f32 %v937, %v1146
        %v1148 = vand.u32 %v220, 4294901760
        %1149 = vmatmul.f32.gmra.mxu0 %v1148
        %v1150 = vpop.f32.mrf.mxu0
        %v1151 = vadd.f32 %v943, %v1150
        %v1152 = vand.u32 %v223, 4294901760
        %1153 = vmatmul.f32.gmra.mxu0 %v1152
        %v1154 = vpop.f32.mrf.mxu0
        %v1155 = vadd.f32 %v949, %v1154
        %v1156 = vand.u32 %v226, 4294901760
        %1157 = vmatmul.f32.gmra.mxu0 %v1156
        %v1158 = vpop.f32.mrf.mxu0
        %v1159 = vadd.f32 %v955, %v1158
        %v1160 = vand.u32 %v229, 4294901760
        %1161 = vmatmul.f32.gmra.mxu0 %v1160
        %v1162 = vpop.f32.mrf.mxu0
        %v1163 = vadd.f32 %v961, %v1162
        %v1164 = vand.u32 %v232, 4294901760
        %1165 = vmatmul.f32.gmra.mxu0 %v1164
        %v1166 = vpop.f32.mrf.mxu0
        %v1167 = vadd.f32 %v967, %v1166
        %v1168 = vand.u32 %v235, 4294901760
        %1169 = vmatmul.f32.gmra.mxu0 %v1168
        %v1170 = vpop.f32.mrf.mxu0
        %v1171 = vadd.f32 %v973, %v1170
        %v1172 = vand.u32 %v238, 4294901760
        %1173 = vmatmul.f32.gmra.mxu0 %v1172
        %v1174 = vpop.f32.mrf.mxu0
        %v1175 = vadd.f32 %v979, %v1174
        %v1176 = vand.u32 %v241, 4294901760
        %1177 = vmatmul.f32.gmra.mxu0 %v1176
        %v1178 = vpop.f32.mrf.mxu0
        %v1179 = vadd.f32 %v985, %v1178
        %v1180 = vand.u32 %v244, 4294901760
        %1181 = vmatmul.f32.gmra.mxu0 %v1180
        %v1182 = vpop.f32.mrf.mxu0
        %v1183 = vadd.f32 %v991, %v1182
        %v1184 = vand.u32 %v247, 4294901760
        %1185 = vmatmul.f32.gmra.mxu0 %v1184
        %v1186 = vpop.f32.mrf.mxu0
        %v1187 = vadd.f32 %v997, %v1186
        %v1188 = vand.u32 %v250, 4294901760
        %1189 = vmatmul.f32.gmra.mxu0 %v1188
        %v1190 = vpop.f32.mrf.mxu0
        %v1191 = vadd.f32 %v1003, %v1190
        %v1192 = vand.u32 %v253, 4294901760
        %1193 = vmatmul.f32.gmra.mxu0 %v1192
        %v1194 = vpop.f32.mrf.mxu0
        %v1195 = vadd.f32 %v1009, %v1194
        %v1196 = vand.u32 %v256, 4294901760
        %1197 = vmatmul.f32.gmra.mxu0 %v1196
        %v1198 = vpop.f32.mrf.mxu0
        %v1199 = vadd.f32 %v1015, %v1198
        %v1200 = vand.u32 %v259, 4294901760
        %1201 = vmatmul.f32.gmra.mxu0 %v1200
        %v1202 = vpop.f32.mrf.mxu0
        %v1203 = vadd.f32 %v1021, %v1202
        %v1204 = vand.u32 %v262, 4294901760
        %1205 = vmatmul.f32.gmra.mxu0 %v1204
        %v1206 = vpop.f32.mrf.mxu0
        %v1207 = vadd.f32 %v1027, %v1206
        %v1208 = vand.u32 %v265, 4294901760
        %1209 = vmatmul.f32.gmra.mxu0 %v1208
        %v1210 = vpop.f32.mrf.mxu0
        %v1211 = vadd.f32 %v1033, %v1210
        %v1212 = vand.u32 %v268, 4294901760
        %1213 = vmatmul.f32.gmra.mxu0 %v1212
        %v1214 = vpop.f32.mrf.mxu0
        %v1215 = vadd.f32 %v1039, %v1214
        %v1216 = vand.u32 %v271, 4294901760
        %1217 = vmatmul.f32.gmra.mxu0 %v1216
        %v1218 = vpop.f32.mrf.mxu0
        %v1219 = vadd.f32 %v1045, %v1218
        %v1220 = vand.u32 %v274, 4294901760
        %1221 = vmatmul.f32.gmra.mxu0 %v1220
        %v1222 = vpop.f32.mrf.mxu0
        %v1223 = vadd.f32 %v1051, %v1222
        %v1224 = vand.u32 %v277, 4294901760
        %1225 = vmatmul.f32.gmra.mxu0 %v1224
        %v1226 = vpop.f32.mrf.mxu0
        %v1227 = vadd.f32 %v1057, %v1226
        %v1228 = vand.u32 %v280, 4294901760
        %1229 = vmatmul.f32.gmra.mxu0 %v1228
        %v1230 = vpop.f32.mrf.mxu0
        %v1231 = vadd.f32 %v1063, %v1230
        %v1232 = vand.u32 %v283, 4294901760
        %1233 = vmatmul.f32.gmra.mxu0 %v1232
        %v1234 = vpop.f32.mrf.mxu0
        %v1235 = vadd.f32 %v1069, %v1234
        %v1236 = vand.u32 %v286, 4294901760
        %1237 = vmatmul.f32.gmra.mxu0 %v1236
        %v1238 = vpop.f32.mrf.mxu0
        %v1239 = vadd.f32 %v1075, %v1238
        %v1240 = vand.u32 %v289, 4294901760
        %1241 = vmatmul.f32.gmra.mxu0 %v1240
        %v1242 = vpop.f32.mrf.mxu0
        %v1243 = vadd.f32 %v1081, %v1242
        %v1244 = vand.u32 %v292, 4294901760
        %1245 = vmatmul.f32.gmra.mxu0 %v1244
        %v1246 = vpop.f32.mrf.mxu0
        %v1247 = vadd.f32 %v1087, %v1246
        %v1248 = vand.u32 %v295, 4294901760
        %1249 = vmatmul.f32.gmra.mxu0 %v1248
        %v1250 = vpop.f32.mrf.mxu0
        %v1251 = vadd.f32 %v1093, %v1250
        %v1252 = vand.u32 %v298, 4294901760
        %1253 = vmatmul.f32.gmra.mxu0 %v1252
        %v1254 = vpop.f32.mrf.mxu0
        %v1255 = vadd.f32 %v1099, %v1254
        %v1256 = vand.u32 %v301, 4294901760
        %1257 = vmatmul.f32.gmra.mxu0 %v1256
        %v1258 = vpop.f32.mrf.mxu0
        %v1259 = vadd.f32 %v1105, %v1258
        %v1260 = vand.u32 %v304, 4294901760
        %1261 = vmatmul.f32.gmra.mxu0 %v1260
        %v1262 = vpop.f32.mrf.mxu0
        %v1263 = vadd.f32 %v1111, %v1262
        %v1264 = vand.u32 %v307, 4294901760
        %1265 = vmatmul.f32.gmra.mxu0 %v1264
        %v1266 = vpop.f32.mrf.mxu0
        %v1267 = vadd.f32 %v1117, %v1266
        %v1268 = vand.u32 %v310, 4294901760
        %1269 = vmatmul.f32.gmra.mxu0 %v1268
        %v1270 = vpop.f32.mrf.mxu0
        %v1271 = vadd.f32 %v1123, %v1270
        %1272 = vdwg.mxu0
        %1273 = vmatpush.msra.mxu0 0.0
        %1274 = vmatpush.msra.mxu0 0.0
        %1275 = vmatpush.msra.mxu0 0.0
        %1276 = vmatpush.msra.mxu0 0.0
        %1277 = vmatpush.msra.mxu0 0.0
        %1278 = vmatpush.msra.mxu0 0.0
        %1279 = vmatpush.msra.mxu0 0.0
        %1280 = vmatpush.msra.mxu0 0.0
        %1281 = vmatpush.msra.mxu0 0.0
        %1282 = vmatpush.msra.mxu0 0.0
        %1283 = vmatpush.msra.mxu0 0.0
        %1284 = vmatpush.msra.mxu0 0.0
        %1285 = vmatpush.msra.mxu0 0.0
        %1286 = vmatpush.msra.mxu0 0.0
        %1287 = vmatpush.msra.mxu0 0.0
        %v1288 = vand.u32 %v214, 4294901760
        %1289 = vmatpush.msra.mxu0 %v1288
        %v1290 = vand.u32 %v217, 4294901760
        %1291 = vmatmul.f32.gmra.mxu0 %v1290
        %v1292 = vpop.f32.mrf.mxu0
        %v1293 = vadd.f32 %v1147, %v1292
        %v1294 = vand.u32 %v220, 4294901760
        %1295 = vmatmul.f32.gmra.mxu0 %v1294
        %v1296 = vpop.f32.mrf.mxu0
        %v1297 = vadd.f32 %v1151, %v1296
        %v1298 = vand.u32 %v223, 4294901760
        %1299 = vmatmul.f32.gmra.mxu0 %v1298
        %v1300 = vpop.f32.mrf.mxu0
        %v1301 = vadd.f32 %v1155, %v1300
        %v1302 = vand.u32 %v226, 4294901760
        %1303 = vmatmul.f32.gmra.mxu0 %v1302
        %v1304 = vpop.f32.mrf.mxu0
        %v1305 = vadd.f32 %v1159, %v1304
        %v1306 = vand.u32 %v229, 4294901760
        %1307 = vmatmul.f32.gmra.mxu0 %v1306
        %v1308 = vpop.f32.mrf.mxu0
        %v1309 = vadd.f32 %v1163, %v1308
        %v1310 = vand.u32 %v232, 4294901760
        %1311 = vmatmul.f32.gmra.mxu0 %v1310
        %v1312 = vpop.f32.mrf.mxu0
        %v1313 = vadd.f32 %v1167, %v1312
        %v1314 = vand.u32 %v235, 4294901760
        %1315 = vmatmul.f32.gmra.mxu0 %v1314
        %v1316 = vpop.f32.mrf.mxu0
        %v1317 = vadd.f32 %v1171, %v1316
        %v1318 = vand.u32 %v238, 4294901760
        %1319 = vmatmul.f32.gmra.mxu0 %v1318
        %v1320 = vpop.f32.mrf.mxu0
        %v1321 = vadd.f32 %v1175, %v1320
        %v1322 = vand.u32 %v241, 4294901760
        %1323 = vmatmul.f32.gmra.mxu0 %v1322
        %v1324 = vpop.f32.mrf.mxu0
        %v1325 = vadd.f32 %v1179, %v1324
        %v1326 = vand.u32 %v244, 4294901760
        %1327 = vmatmul.f32.gmra.mxu0 %v1326
        %v1328 = vpop.f32.mrf.mxu0
        %v1329 = vadd.f32 %v1183, %v1328
        %v1330 = vand.u32 %v247, 4294901760
        %1331 = vmatmul.f32.gmra.mxu0 %v1330
        %v1332 = vpop.f32.mrf.mxu0
        %v1333 = vadd.f32 %v1187, %v1332
        %v1334 = vand.u32 %v250, 4294901760
        %1335 = vmatmul.f32.gmra.mxu0 %v1334
        %v1336 = vpop.f32.mrf.mxu0
        %v1337 = vadd.f32 %v1191, %v1336
        %v1338 = vand.u32 %v253, 4294901760
        %1339 = vmatmul.f32.gmra.mxu0 %v1338
        %v1340 = vpop.f32.mrf.mxu0
        %v1341 = vadd.f32 %v1195, %v1340
        %v1342 = vand.u32 %v256, 4294901760
        %1343 = vmatmul.f32.gmra.mxu0 %v1342
        %v1344 = vpop.f32.mrf.mxu0
        %v1345 = vadd.f32 %v1199, %v1344
        %v1346 = vand.u32 %v259, 4294901760
        %1347 = vmatmul.f32.gmra.mxu0 %v1346
        %v1348 = vpop.f32.mrf.mxu0
        %v1349 = vadd.f32 %v1203, %v1348
        %v1350 = vand.u32 %v262, 4294901760
        %1351 = vmatmul.f32.gmra.mxu0 %v1350
        %v1352 = vpop.f32.mrf.mxu0
        %v1353 = vadd.f32 %v1207, %v1352
        %v1354 = vand.u32 %v265, 4294901760
        %1355 = vmatmul.f32.gmra.mxu0 %v1354
        %v1356 = vpop.f32.mrf.mxu0
        %v1357 = vadd.f32 %v1211, %v1356
        %v1358 = vand.u32 %v268, 4294901760
        %1359 = vmatmul.f32.gmra.mxu0 %v1358
        %v1360 = vpop.f32.mrf.mxu0
        %v1361 = vadd.f32 %v1215, %v1360
        %v1362 = vand.u32 %v271, 4294901760
        %1363 = vmatmul.f32.gmra.mxu0 %v1362
        %v1364 = vpop.f32.mrf.mxu0
        %v1365 = vadd.f32 %v1219, %v1364
        %v1366 = vand.u32 %v274, 4294901760
        %1367 = vmatmul.f32.gmra.mxu0 %v1366
        %v1368 = vpop.f32.mrf.mxu0
        %v1369 = vadd.f32 %v1223, %v1368
        %v1370 = vand.u32 %v277, 4294901760
        %1371 = vmatmul.f32.gmra.mxu0 %v1370
        %v1372 = vpop.f32.mrf.mxu0
        %v1373 = vadd.f32 %v1227, %v1372
        %v1374 = vand.u32 %v280, 4294901760
        %1375 = vmatmul.f32.gmra.mxu0 %v1374
        %v1376 = vpop.f32.mrf.mxu0
        %v1377 = vadd.f32 %v1231, %v1376
        %v1378 = vand.u32 %v283, 4294901760
        %1379 = vmatmul.f32.gmra.mxu0 %v1378
        %v1380 = vpop.f32.mrf.mxu0
        %v1381 = vadd.f32 %v1235, %v1380
        %v1382 = vand.u32 %v286, 4294901760
        %1383 = vmatmul.f32.gmra.mxu0 %v1382
        %v1384 = vpop.f32.mrf.mxu0
        %v1385 = vadd.f32 %v1239, %v1384
        %v1386 = vand.u32 %v289, 4294901760
        %1387 = vmatmul.f32.gmra.mxu0 %v1386
        %v1388 = vpop.f32.mrf.mxu0
        %v1389 = vadd.f32 %v1243, %v1388
        %v1390 = vand.u32 %v292, 4294901760
        %1391 = vmatmul.f32.gmra.mxu0 %v1390
        %v1392 = vpop.f32.mrf.mxu0
        %v1393 = vadd.f32 %v1247, %v1392
        %v1394 = vand.u32 %v295, 4294901760
        %1395 = vmatmul.f32.gmra.mxu0 %v1394
        %v1396 = vpop.f32.mrf.mxu0
        %v1397 = vadd.f32 %v1251, %v1396
        %v1398 = vand.u32 %v298, 4294901760
        %1399 = vmatmul.f32.gmra.mxu0 %v1398
        %v1400 = vpop.f32.mrf.mxu0
        %v1401 = vadd.f32 %v1255, %v1400
        %v1402 = vand.u32 %v301, 4294901760
        %1403 = vmatmul.f32.gmra.mxu0 %v1402
        %v1404 = vpop.f32.mrf.mxu0
        %v1405 = vadd.f32 %v1259, %v1404
        %v1406 = vand.u32 %v304, 4294901760
        %1407 = vmatmul.f32.gmra.mxu0 %v1406
        %v1408 = vpop.f32.mrf.mxu0
        %v1409 = vadd.f32 %v1263, %v1408
        %v1410 = vand.u32 %v307, 4294901760
        %1411 = vmatmul.f32.gmra.mxu0 %v1410
        %v1412 = vpop.f32.mrf.mxu0
        %v1413 = vadd.f32 %v1267, %v1412
        %v1414 = vand.u32 %v310, 4294901760
        %1415 = vmatmul.f32.gmra.mxu0 %v1414
        %v1416 = vpop.f32.mrf.mxu0
        %v1417 = vadd.f32 %v1271, %v1416
        %1418 = vdwg.mxu0
        %v1451 = vrot.slane %v1293, 7
        %v1452 = vrot.slane %v1297, 7
        %v1453 = vrot.slane %v1301, 7
        %v1454 = vrot.slane %v1305, 7
        %v1455 = vrot.slane %v1309, 7
        %v1456 = vrot.slane %v1313, 7
        %v1457 = vrot.slane %v1317, 7
        %v1458 = vrot.slane %v1321, 7
        %v1459 = vrot.slane %v1325, 7
        %v1460 = vrot.slane %v1329, 7
        %v1461 = vrot.slane %v1333, 7
        %v1462 = vrot.slane %v1337, 7
        %v1463 = vrot.slane %v1341, 7
        %v1464 = vrot.slane %v1345, 7
        %v1465 = vrot.slane %v1349, 7
        %v1466 = vrot.slane %v1353, 7
        %v1467 = vrot.slane %v1357, 7
        %v1468 = vrot.slane %v1361, 7
        %v1469 = vrot.slane %v1365, 7
        %v1470 = vrot.slane %v1369, 7
        %v1471 = vrot.slane %v1373, 7
        %v1472 = vrot.slane %v1377, 7
        %v1473 = vrot.slane %v1381, 7
        %v1474 = vrot.slane %v1385, 7
        %v1475 = vrot.slane %v1389, 7
        %v1476 = vrot.slane %v1393, 7
        %v1477 = vrot.slane %v1397, 7
        %v1478 = vrot.slane %v1401, 7
        %v1479 = vrot.slane %v1405, 7
        %v1480 = vrot.slane %v1409, 7
        %v1481 = vrot.slane %v1413, 7
        %v1482 = vrot.slane %v1417, 7
        %vm1515 = vcmask 1040384
        %v1516 = vsel %vm1515, %v1293, %v1451
        %v1517 = vsel %vm1515, %v1297, %v1452
        %v1518 = vsel %vm1515, %v1301, %v1453
        %v1519 = vsel %vm1515, %v1305, %v1454
        %v1520 = vsel %vm1515, %v1309, %v1455
        %v1521 = vsel %vm1515, %v1313, %v1456
        %v1522 = vsel %vm1515, %v1317, %v1457
        %v1523 = vsel %vm1515, %v1321, %v1458
        %v1524 = vsel %vm1515, %v1325, %v1459
        %v1525 = vsel %vm1515, %v1329, %v1460
        %v1526 = vsel %vm1515, %v1333, %v1461
        %v1527 = vsel %vm1515, %v1337, %v1462
        %v1528 = vsel %vm1515, %v1341, %v1463
        %v1529 = vsel %vm1515, %v1345, %v1464
        %v1530 = vsel %vm1515, %v1349, %v1465
        %v1531 = vsel %vm1515, %v1353, %v1466
        %v1532 = vsel %vm1515, %v1357, %v1467
        %v1533 = vsel %vm1515, %v1361, %v1468
        %v1534 = vsel %vm1515, %v1365, %v1469
        %v1535 = vsel %vm1515, %v1369, %v1470
        %v1536 = vsel %vm1515, %v1373, %v1471
        %v1537 = vsel %vm1515, %v1377, %v1472
        %v1538 = vsel %vm1515, %v1381, %v1473
        %v1539 = vsel %vm1515, %v1385, %v1474
        %v1540 = vsel %vm1515, %v1389, %v1475
        %v1541 = vsel %vm1515, %v1393, %v1476
        %v1542 = vsel %vm1515, %v1397, %v1477
        %v1543 = vsel %vm1515, %v1401, %v1478
        %v1544 = vsel %vm1515, %v1405, %v1479
        %v1545 = vsel %vm1515, %v1409, %v1480
        %v1546 = vsel %vm1515, %v1413, %v1481
        %v1547 = vsel %vm1515, %v1417, %v1482
        %v1548 = vrot.slane %v1293, 1
        %v1549 = vrot.slane %v1297, 1
        %v1550 = vrot.slane %v1301, 1
        %v1551 = vrot.slane %v1305, 1
        %v1552 = vrot.slane %v1309, 1
        %v1553 = vrot.slane %v1313, 1
        %v1554 = vrot.slane %v1317, 1
        %v1555 = vrot.slane %v1321, 1
        %v1556 = vrot.slane %v1325, 1
        %v1557 = vrot.slane %v1329, 1
        %v1558 = vrot.slane %v1333, 1
        %v1559 = vrot.slane %v1337, 1
        %v1560 = vrot.slane %v1341, 1
        %v1561 = vrot.slane %v1345, 1
        %v1562 = vrot.slane %v1349, 1
        %v1563 = vrot.slane %v1353, 1
        %v1564 = vrot.slane %v1357, 1
        %v1565 = vrot.slane %v1361, 1
        %v1566 = vrot.slane %v1365, 1
        %v1567 = vrot.slane %v1369, 1
        %v1568 = vrot.slane %v1373, 1
        %v1569 = vrot.slane %v1377, 1
        %v1570 = vrot.slane %v1381, 1
        %v1571 = vrot.slane %v1385, 1
        %v1572 = vrot.slane %v1389, 1
        %v1573 = vrot.slane %v1393, 1
        %v1574 = vrot.slane %v1397, 1
        %v1575 = vrot.slane %v1401, 1
        %v1576 = vrot.slane %v1405, 1
        %v1577 = vrot.slane %v1409, 1
        %v1578 = vrot.slane %v1413, 1
        %v1579 = vrot.slane %v1417, 1
        %vm1612 = vcmask 1046528
        %v1613 = vsel %vm1612, %v1548, %v1293
        %v1614 = vsel %vm1612, %v1549, %v1297
        %v1615 = vsel %vm1612, %v1550, %v1301
        %v1616 = vsel %vm1612, %v1551, %v1305
        %v1617 = vsel %vm1612, %v1552, %v1309
        %v1618 = vsel %vm1612, %v1553, %v1313
        %v1619 = vsel %vm1612, %v1554, %v1317
        %v1620 = vsel %vm1612, %v1555, %v1321
        %v1621 = vsel %vm1612, %v1556, %v1325
        %v1622 = vsel %vm1612, %v1557, %v1329
        %v1623 = vsel %vm1612, %v1558, %v1333
        %v1624 = vsel %vm1612, %v1559, %v1337
        %v1625 = vsel %vm1612, %v1560, %v1341
        %v1626 = vsel %vm1612, %v1561, %v1345
        %v1627 = vsel %vm1612, %v1562, %v1349
        %v1628 = vsel %vm1612, %v1563, %v1353
        %v1629 = vsel %vm1612, %v1564, %v1357
        %v1630 = vsel %vm1612, %v1565, %v1361
        %v1631 = vsel %vm1612, %v1566, %v1365
        %v1632 = vsel %vm1612, %v1567, %v1369
        %v1633 = vsel %vm1612, %v1568, %v1373
        %v1634 = vsel %vm1612, %v1569, %v1377
        %v1635 = vsel %vm1612, %v1570, %v1381
        %v1636 = vsel %vm1612, %v1571, %v1385
        %v1637 = vsel %vm1612, %v1572, %v1389
        %v1638 = vsel %vm1612, %v1573, %v1393
        %v1639 = vsel %vm1612, %v1574, %v1397
        %v1640 = vsel %vm1612, %v1575, %v1401
        %v1641 = vsel %vm1612, %v1576, %v1405
        %v1642 = vsel %vm1612, %v1577, %v1409
        %v1643 = vsel %vm1612, %v1578, %v1413
        %v1644 = vsel %vm1612, %v1579, %v1417
        %v1645 = vmul.f32 %v1516, 0.125
        %v1646 = vmul.f32 %v1517, 0.125
        %v1647 = vmul.f32 %v1518, 0.125
        %v1648 = vmul.f32 %v1519, 0.125
        %v1649 = vmul.f32 %v1520, 0.125
        %v1650 = vmul.f32 %v1521, 0.125
        %v1651 = vmul.f32 %v1522, 0.125
        %v1652 = vmul.f32 %v1523, 0.125
        %v1653 = vmul.f32 %v1524, 0.125
        %v1654 = vmul.f32 %v1525, 0.125
        %v1655 = vmul.f32 %v1526, 0.125
        %v1656 = vmul.f32 %v1527, 0.125
        %v1657 = vmul.f32 %v1528, 0.125
        %v1658 = vmul.f32 %v1529, 0.125
        %v1659 = vmul.f32 %v1530, 0.125
        %v1660 = vmul.f32 %v1531, 0.125
        %v1661 = vmul.f32 %v1532, 0.125
        %v1662 = vmul.f32 %v1533, 0.125
        %v1663 = vmul.f32 %v1534, 0.125
        %v1664 = vmul.f32 %v1535, 0.125
        %v1665 = vmul.f32 %v1536, 0.125
        %v1666 = vmul.f32 %v1537, 0.125
        %v1667 = vmul.f32 %v1538, 0.125
        %v1668 = vmul.f32 %v1539, 0.125
        %v1669 = vmul.f32 %v1540, 0.125
        %v1670 = vmul.f32 %v1541, 0.125
        %v1671 = vmul.f32 %v1542, 0.125
        %v1672 = vmul.f32 %v1543, 0.125
        %v1673 = vmul.f32 %v1544, 0.125
        %v1674 = vmul.f32 %v1545, 0.125
        %v1675 = vmul.f32 %v1546, 0.125
        %v1676 = vmul.f32 %v1547, 0.125
        %v1677 = vmul.f32 %v1293, 0.75
        %v1678 = vmul.f32 %v1297, 0.75
        %v1679 = vmul.f32 %v1301, 0.75
        %v1680 = vmul.f32 %v1305, 0.75
        %v1681 = vmul.f32 %v1309, 0.75
        %v1682 = vmul.f32 %v1313, 0.75
        %v1683 = vmul.f32 %v1317, 0.75
        %v1684 = vmul.f32 %v1321, 0.75
        %v1685 = vmul.f32 %v1325, 0.75
        %v1686 = vmul.f32 %v1329, 0.75
        %v1687 = vmul.f32 %v1333, 0.75
        %v1688 = vmul.f32 %v1337, 0.75
        %v1689 = vmul.f32 %v1341, 0.75
        %v1690 = vmul.f32 %v1345, 0.75
        %v1691 = vmul.f32 %v1349, 0.75
        %v1692 = vmul.f32 %v1353, 0.75
        %v1693 = vmul.f32 %v1357, 0.75
        %v1694 = vmul.f32 %v1361, 0.75
        %v1695 = vmul.f32 %v1365, 0.75
        %v1696 = vmul.f32 %v1369, 0.75
        %v1697 = vmul.f32 %v1373, 0.75
        %v1698 = vmul.f32 %v1377, 0.75
        %v1699 = vmul.f32 %v1381, 0.75
        %v1700 = vmul.f32 %v1385, 0.75
        %v1701 = vmul.f32 %v1389, 0.75
        %v1702 = vmul.f32 %v1393, 0.75
        %v1703 = vmul.f32 %v1397, 0.75
        %v1704 = vmul.f32 %v1401, 0.75
        %v1705 = vmul.f32 %v1405, 0.75
        %v1706 = vmul.f32 %v1409, 0.75
        %v1707 = vmul.f32 %v1413, 0.75
        %v1708 = vmul.f32 %v1417, 0.75
        %v1709 = vadd.f32 %v1645, %v1677
        %v1710 = vadd.f32 %v1646, %v1678
        %v1711 = vadd.f32 %v1647, %v1679
        %v1712 = vadd.f32 %v1648, %v1680
        %v1713 = vadd.f32 %v1649, %v1681
        %v1714 = vadd.f32 %v1650, %v1682
        %v1715 = vadd.f32 %v1651, %v1683
        %v1716 = vadd.f32 %v1652, %v1684
        %v1717 = vadd.f32 %v1653, %v1685
        %v1718 = vadd.f32 %v1654, %v1686
        %v1719 = vadd.f32 %v1655, %v1687
        %v1720 = vadd.f32 %v1656, %v1688
        %v1721 = vadd.f32 %v1657, %v1689
        %v1722 = vadd.f32 %v1658, %v1690
        %v1723 = vadd.f32 %v1659, %v1691
        %v1724 = vadd.f32 %v1660, %v1692
        %v1725 = vadd.f32 %v1661, %v1693
        %v1726 = vadd.f32 %v1662, %v1694
        %v1727 = vadd.f32 %v1663, %v1695
        %v1728 = vadd.f32 %v1664, %v1696
        %v1729 = vadd.f32 %v1665, %v1697
        %v1730 = vadd.f32 %v1666, %v1698
        %v1731 = vadd.f32 %v1667, %v1699
        %v1732 = vadd.f32 %v1668, %v1700
        %v1733 = vadd.f32 %v1669, %v1701
        %v1734 = vadd.f32 %v1670, %v1702
        %v1735 = vadd.f32 %v1671, %v1703
        %v1736 = vadd.f32 %v1672, %v1704
        %v1737 = vadd.f32 %v1673, %v1705
        %v1738 = vadd.f32 %v1674, %v1706
        %v1739 = vadd.f32 %v1675, %v1707
        %v1740 = vadd.f32 %v1676, %v1708
        %v1741 = vmul.f32 %v1613, 0.125
        %v1742 = vmul.f32 %v1614, 0.125
        %v1743 = vmul.f32 %v1615, 0.125
        %v1744 = vmul.f32 %v1616, 0.125
        %v1745 = vmul.f32 %v1617, 0.125
        %v1746 = vmul.f32 %v1618, 0.125
        %v1747 = vmul.f32 %v1619, 0.125
        %v1748 = vmul.f32 %v1620, 0.125
        %v1749 = vmul.f32 %v1621, 0.125
        %v1750 = vmul.f32 %v1622, 0.125
        %v1751 = vmul.f32 %v1623, 0.125
        %v1752 = vmul.f32 %v1624, 0.125
        %v1753 = vmul.f32 %v1625, 0.125
        %v1754 = vmul.f32 %v1626, 0.125
        %v1755 = vmul.f32 %v1627, 0.125
        %v1756 = vmul.f32 %v1628, 0.125
        %v1757 = vmul.f32 %v1629, 0.125
        %v1758 = vmul.f32 %v1630, 0.125
        %v1759 = vmul.f32 %v1631, 0.125
        %v1760 = vmul.f32 %v1632, 0.125
        %v1761 = vmul.f32 %v1633, 0.125
        %v1762 = vmul.f32 %v1634, 0.125
        %v1763 = vmul.f32 %v1635, 0.125
        %v1764 = vmul.f32 %v1636, 0.125
        %v1765 = vmul.f32 %v1637, 0.125
        %v1766 = vmul.f32 %v1638, 0.125
        %v1767 = vmul.f32 %v1639, 0.125
        %v1768 = vmul.f32 %v1640, 0.125
        %v1769 = vmul.f32 %v1641, 0.125
        %v1770 = vmul.f32 %v1642, 0.125
        %v1771 = vmul.f32 %v1643, 0.125
        %v1772 = vmul.f32 %v1644, 0.125
        %v1773 = vadd.f32 %v1709, %v1741
        %v1774 = vadd.f32 %v1710, %v1742
        %v1775 = vadd.f32 %v1711, %v1743
        %v1776 = vadd.f32 %v1712, %v1744
        %v1777 = vadd.f32 %v1713, %v1745
        %v1778 = vadd.f32 %v1714, %v1746
        %v1779 = vadd.f32 %v1715, %v1747
        %v1780 = vadd.f32 %v1716, %v1748
        %v1781 = vadd.f32 %v1717, %v1749
        %v1782 = vadd.f32 %v1718, %v1750
        %v1783 = vadd.f32 %v1719, %v1751
        %v1784 = vadd.f32 %v1720, %v1752
        %v1785 = vadd.f32 %v1721, %v1753
        %v1786 = vadd.f32 %v1722, %v1754
        %v1787 = vadd.f32 %v1723, %v1755
        %v1788 = vadd.f32 %v1724, %v1756
        %v1789 = vadd.f32 %v1725, %v1757
        %v1790 = vadd.f32 %v1726, %v1758
        %v1791 = vadd.f32 %v1727, %v1759
        %v1792 = vadd.f32 %v1728, %v1760
        %v1793 = vadd.f32 %v1729, %v1761
        %v1794 = vadd.f32 %v1730, %v1762
        %v1795 = vadd.f32 %v1731, %v1763
        %v1796 = vadd.f32 %v1732, %v1764
        %v1797 = vadd.f32 %v1733, %v1765
        %v1798 = vadd.f32 %v1734, %v1766
        %v1799 = vadd.f32 %v1735, %v1767
        %v1800 = vadd.f32 %v1736, %v1768
        %v1801 = vadd.f32 %v1737, %v1769
        %v1802 = vadd.f32 %v1738, %v1770
        %v1803 = vadd.f32 %v1739, %v1771
        %v1804 = vadd.f32 %v1740, %v1772
        %v1805 = vadd.f32 %v1293, %v1613
        %v1806 = vadd.f32 %v1297, %v1614
        %v1807 = vadd.f32 %v1301, %v1615
        %v1808 = vadd.f32 %v1305, %v1616
        %v1809 = vadd.f32 %v1309, %v1617
        %v1810 = vadd.f32 %v1313, %v1618
        %v1811 = vadd.f32 %v1317, %v1619
        %v1812 = vadd.f32 %v1321, %v1620
        %v1813 = vadd.f32 %v1325, %v1621
        %v1814 = vadd.f32 %v1329, %v1622
        %v1815 = vadd.f32 %v1333, %v1623
        %v1816 = vadd.f32 %v1337, %v1624
        %v1817 = vadd.f32 %v1341, %v1625
        %v1818 = vadd.f32 %v1345, %v1626
        %v1819 = vadd.f32 %v1349, %v1627
        %v1820 = vadd.f32 %v1353, %v1628
        %v1821 = vadd.f32 %v1357, %v1629
        %v1822 = vadd.f32 %v1361, %v1630
        %v1823 = vadd.f32 %v1365, %v1631
        %v1824 = vadd.f32 %v1369, %v1632
        %v1825 = vadd.f32 %v1373, %v1633
        %v1826 = vadd.f32 %v1377, %v1634
        %v1827 = vadd.f32 %v1381, %v1635
        %v1828 = vadd.f32 %v1385, %v1636
        %v1829 = vadd.f32 %v1389, %v1637
        %v1830 = vadd.f32 %v1393, %v1638
        %v1831 = vadd.f32 %v1397, %v1639
        %v1832 = vadd.f32 %v1401, %v1640
        %v1833 = vadd.f32 %v1405, %v1641
        %v1834 = vadd.f32 %v1409, %v1642
        %v1835 = vadd.f32 %v1413, %v1643
        %v1836 = vadd.f32 %v1417, %v1644
        %v1837 = vmul.f32 %v1805, 0.5
        %v1838 = vmul.f32 %v1806, 0.5
        %v1839 = vmul.f32 %v1807, 0.5
        %v1840 = vmul.f32 %v1808, 0.5
        %v1841 = vmul.f32 %v1809, 0.5
        %v1842 = vmul.f32 %v1810, 0.5
        %v1843 = vmul.f32 %v1811, 0.5
        %v1844 = vmul.f32 %v1812, 0.5
        %v1845 = vmul.f32 %v1813, 0.5
        %v1846 = vmul.f32 %v1814, 0.5
        %v1847 = vmul.f32 %v1815, 0.5
        %v1848 = vmul.f32 %v1816, 0.5
        %v1849 = vmul.f32 %v1817, 0.5
        %v1850 = vmul.f32 %v1818, 0.5
        %v1851 = vmul.f32 %v1819, 0.5
        %v1852 = vmul.f32 %v1820, 0.5
        %v1853 = vmul.f32 %v1821, 0.5
        %v1854 = vmul.f32 %v1822, 0.5
        %v1855 = vmul.f32 %v1823, 0.5
        %v1856 = vmul.f32 %v1824, 0.5
        %v1857 = vmul.f32 %v1825, 0.5
        %v1858 = vmul.f32 %v1826, 0.5
        %v1859 = vmul.f32 %v1827, 0.5
        %v1860 = vmul.f32 %v1828, 0.5
        %v1861 = vmul.f32 %v1829, 0.5
        %v1862 = vmul.f32 %v1830, 0.5
        %v1863 = vmul.f32 %v1831, 0.5
        %v1864 = vmul.f32 %v1832, 0.5
        %v1865 = vmul.f32 %v1833, 0.5
        %v1866 = vmul.f32 %v1834, 0.5
        %v1867 = vmul.f32 %v1835, 0.5
        %v1868 = vmul.f32 %v1836, 0.5
        %v1901 = vrot.slane %v1773, 1
        %v1902 = vrot.slane %v1773, 2
        %v1903 = vrot.slane %v1773, 3
        %v1904 = vrot.slane %v1773, 4
        %v1905 = vrot.slane %v1773, 5
        %v1906 = vrot.slane %v1773, 6
        %v1907 = vrot.slane %v1773, 7
        %v1908 = vrot.slane %v1774, 1
        %v1909 = vrot.slane %v1774, 2
        %v1910 = vrot.slane %v1774, 3
        %v1911 = vrot.slane %v1774, 4
        %v1912 = vrot.slane %v1774, 5
        %v1913 = vrot.slane %v1774, 6
        %v1914 = vrot.slane %v1774, 7
        %v1915 = vrot.slane %v1775, 1
        %v1916 = vrot.slane %v1775, 2
        %v1917 = vrot.slane %v1775, 3
        %v1918 = vrot.slane %v1775, 4
        %v1919 = vrot.slane %v1775, 5
        %v1920 = vrot.slane %v1775, 6
        %v1921 = vrot.slane %v1775, 7
        %v1922 = vrot.slane %v1776, 1
        %v1923 = vrot.slane %v1776, 2
        %v1924 = vrot.slane %v1776, 3
        %v1925 = vrot.slane %v1776, 4
        %v1926 = vrot.slane %v1776, 5
        %v1927 = vrot.slane %v1776, 6
        %v1928 = vrot.slane %v1776, 7
        %v1929 = vrot.slane %v1777, 1
        %v1930 = vrot.slane %v1777, 2
        %v1931 = vrot.slane %v1777, 3
        %v1932 = vrot.slane %v1777, 4
        %v1933 = vrot.slane %v1777, 5
        %v1934 = vrot.slane %v1777, 6
        %v1935 = vrot.slane %v1777, 7
        %v1936 = vrot.slane %v1778, 1
        %v1937 = vrot.slane %v1778, 2
        %v1938 = vrot.slane %v1778, 3
        %v1939 = vrot.slane %v1778, 4
        %v1940 = vrot.slane %v1778, 5
        %v1941 = vrot.slane %v1778, 6
        %v1942 = vrot.slane %v1778, 7
        %v1943 = vrot.slane %v1779, 1
        %v1944 = vrot.slane %v1779, 2
        %v1945 = vrot.slane %v1779, 3
        %v1946 = vrot.slane %v1779, 4
        %v1947 = vrot.slane %v1779, 5
        %v1948 = vrot.slane %v1779, 6
        %v1949 = vrot.slane %v1779, 7
        %v1950 = vrot.slane %v1780, 1
        %v1951 = vrot.slane %v1780, 2
        %v1952 = vrot.slane %v1780, 3
        %v1953 = vrot.slane %v1780, 4
        %v1954 = vrot.slane %v1780, 5
        %v1955 = vrot.slane %v1780, 6
        %v1956 = vrot.slane %v1780, 7
        %v1957 = vrot.slane %v1781, 1
        %v1958 = vrot.slane %v1781, 2
        %v1959 = vrot.slane %v1781, 3
        %v1960 = vrot.slane %v1781, 4
        %v1961 = vrot.slane %v1781, 5
        %v1962 = vrot.slane %v1781, 6
        %v1963 = vrot.slane %v1781, 7
        %v1964 = vrot.slane %v1782, 1
        %v1965 = vrot.slane %v1782, 2
        %v1966 = vrot.slane %v1782, 3
        %v1967 = vrot.slane %v1782, 4
        %v1968 = vrot.slane %v1782, 5
        %v1969 = vrot.slane %v1782, 6
        %v1970 = vrot.slane %v1782, 7
        %v1971 = vrot.slane %v1783, 1
        %v1972 = vrot.slane %v1783, 2
        %v1973 = vrot.slane %v1783, 3
        %v1974 = vrot.slane %v1783, 4
        %v1975 = vrot.slane %v1783, 5
        %v1976 = vrot.slane %v1783, 6
        %v1977 = vrot.slane %v1783, 7
        %v1978 = vrot.slane %v1784, 1
        %v1979 = vrot.slane %v1784, 2
        %v1980 = vrot.slane %v1784, 3
        %v1981 = vrot.slane %v1784, 4
        %v1982 = vrot.slane %v1784, 5
        %v1983 = vrot.slane %v1784, 6
        %v1984 = vrot.slane %v1784, 7
        %v1985 = vrot.slane %v1785, 1
        %v1986 = vrot.slane %v1785, 2
        %v1987 = vrot.slane %v1785, 3
        %v1988 = vrot.slane %v1785, 4
        %v1989 = vrot.slane %v1785, 5
        %v1990 = vrot.slane %v1785, 6
        %v1991 = vrot.slane %v1785, 7
        %v1992 = vrot.slane %v1786, 1
        %v1993 = vrot.slane %v1786, 2
        %v1994 = vrot.slane %v1786, 3
        %v1995 = vrot.slane %v1786, 4
        %v1996 = vrot.slane %v1786, 5
        %v1997 = vrot.slane %v1786, 6
        %v1998 = vrot.slane %v1786, 7
        %v1999 = vrot.slane %v1787, 1
        %v2000 = vrot.slane %v1787, 2
        %v2001 = vrot.slane %v1787, 3
        %v2002 = vrot.slane %v1787, 4
        %v2003 = vrot.slane %v1787, 5
        %v2004 = vrot.slane %v1787, 6
        %v2005 = vrot.slane %v1787, 7
        %v2006 = vrot.slane %v1788, 1
        %v2007 = vrot.slane %v1788, 2
        %v2008 = vrot.slane %v1788, 3
        %v2009 = vrot.slane %v1788, 4
        %v2010 = vrot.slane %v1788, 5
        %v2011 = vrot.slane %v1788, 6
        %v2012 = vrot.slane %v1788, 7
        %v2013 = vrot.slane %v1789, 1
        %v2014 = vrot.slane %v1789, 2
        %v2015 = vrot.slane %v1789, 3
        %v2016 = vrot.slane %v1789, 4
        %v2017 = vrot.slane %v1789, 5
        %v2018 = vrot.slane %v1789, 6
        %v2019 = vrot.slane %v1789, 7
        %v2020 = vrot.slane %v1790, 1
        %v2021 = vrot.slane %v1790, 2
        %v2022 = vrot.slane %v1790, 3
        %v2023 = vrot.slane %v1790, 4
        %v2024 = vrot.slane %v1790, 5
        %v2025 = vrot.slane %v1790, 6
        %v2026 = vrot.slane %v1790, 7
        %v2027 = vrot.slane %v1791, 1
        %v2028 = vrot.slane %v1791, 2
        %v2029 = vrot.slane %v1791, 3
        %v2030 = vrot.slane %v1791, 4
        %v2031 = vrot.slane %v1791, 5
        %v2032 = vrot.slane %v1791, 6
        %v2033 = vrot.slane %v1791, 7
        %v2034 = vrot.slane %v1792, 1
        %v2035 = vrot.slane %v1792, 2
        %v2036 = vrot.slane %v1792, 3
        %v2037 = vrot.slane %v1792, 4
        %v2038 = vrot.slane %v1792, 5
        %v2039 = vrot.slane %v1792, 6
        %v2040 = vrot.slane %v1792, 7
        %v2041 = vrot.slane %v1793, 1
        %v2042 = vrot.slane %v1793, 2
        %v2043 = vrot.slane %v1793, 3
        %v2044 = vrot.slane %v1793, 4
        %v2045 = vrot.slane %v1793, 5
        %v2046 = vrot.slane %v1793, 6
        %v2047 = vrot.slane %v1793, 7
        %v2048 = vrot.slane %v1794, 1
        %v2049 = vrot.slane %v1794, 2
        %v2050 = vrot.slane %v1794, 3
        %v2051 = vrot.slane %v1794, 4
        %v2052 = vrot.slane %v1794, 5
        %v2053 = vrot.slane %v1794, 6
        %v2054 = vrot.slane %v1794, 7
        %v2055 = vrot.slane %v1795, 1
        %v2056 = vrot.slane %v1795, 2
        %v2057 = vrot.slane %v1795, 3
        %v2058 = vrot.slane %v1795, 4
        %v2059 = vrot.slane %v1795, 5
        %v2060 = vrot.slane %v1795, 6
        %v2061 = vrot.slane %v1795, 7
        %v2062 = vrot.slane %v1796, 1
        %v2063 = vrot.slane %v1796, 2
        %v2064 = vrot.slane %v1796, 3
        %v2065 = vrot.slane %v1796, 4
        %v2066 = vrot.slane %v1796, 5
        %v2067 = vrot.slane %v1796, 6
        %v2068 = vrot.slane %v1796, 7
        %v2069 = vrot.slane %v1797, 1
        %v2070 = vrot.slane %v1797, 2
        %v2071 = vrot.slane %v1797, 3
        %v2072 = vrot.slane %v1797, 4
        %v2073 = vrot.slane %v1797, 5
        %v2074 = vrot.slane %v1797, 6
        %v2075 = vrot.slane %v1797, 7
        %v2076 = vrot.slane %v1798, 1
        %v2077 = vrot.slane %v1798, 2
        %v2078 = vrot.slane %v1798, 3
        %v2079 = vrot.slane %v1798, 4
        %v2080 = vrot.slane %v1798, 5
        %v2081 = vrot.slane %v1798, 6
        %v2082 = vrot.slane %v1798, 7
        %v2083 = vrot.slane %v1799, 1
        %v2084 = vrot.slane %v1799, 2
        %v2085 = vrot.slane %v1799, 3
        %v2086 = vrot.slane %v1799, 4
        %v2087 = vrot.slane %v1799, 5
        %v2088 = vrot.slane %v1799, 6
        %v2089 = vrot.slane %v1799, 7
        %v2090 = vrot.slane %v1800, 1
        %v2091 = vrot.slane %v1800, 2
        %v2092 = vrot.slane %v1800, 3
        %v2093 = vrot.slane %v1800, 4
        %v2094 = vrot.slane %v1800, 5
        %v2095 = vrot.slane %v1800, 6
        %v2096 = vrot.slane %v1800, 7
        %v2097 = vrot.slane %v1801, 1
        %v2098 = vrot.slane %v1801, 2
        %v2099 = vrot.slane %v1801, 3
        %v2100 = vrot.slane %v1801, 4
        %v2101 = vrot.slane %v1801, 5
        %v2102 = vrot.slane %v1801, 6
        %v2103 = vrot.slane %v1801, 7
        %v2104 = vrot.slane %v1802, 1
        %v2105 = vrot.slane %v1802, 2
        %v2106 = vrot.slane %v1802, 3
        %v2107 = vrot.slane %v1802, 4
        %v2108 = vrot.slane %v1802, 5
        %v2109 = vrot.slane %v1802, 6
        %v2110 = vrot.slane %v1802, 7
        %v2111 = vrot.slane %v1803, 1
        %v2112 = vrot.slane %v1803, 2
        %v2113 = vrot.slane %v1803, 3
        %v2114 = vrot.slane %v1803, 4
        %v2115 = vrot.slane %v1803, 5
        %v2116 = vrot.slane %v1803, 6
        %v2117 = vrot.slane %v1803, 7
        %v2118 = vrot.slane %v1804, 1
        %v2119 = vrot.slane %v1804, 2
        %v2120 = vrot.slane %v1804, 3
        %v2121 = vrot.slane %v1804, 4
        %v2122 = vrot.slane %v1804, 5
        %v2123 = vrot.slane %v1804, 6
        %v2124 = vrot.slane %v1804, 7
        %v2381 = vrot.slane %v1837, 1
        %v2382 = vrot.slane %v1837, 2
        %v2383 = vrot.slane %v1837, 3
        %v2384 = vrot.slane %v1837, 4
        %v2385 = vrot.slane %v1837, 5
        %v2386 = vrot.slane %v1837, 6
        %v2387 = vrot.slane %v1837, 7
        %v2388 = vrot.slane %v1838, 1
        %v2389 = vrot.slane %v1838, 2
        %v2390 = vrot.slane %v1838, 3
        %v2391 = vrot.slane %v1838, 4
        %v2392 = vrot.slane %v1838, 5
        %v2393 = vrot.slane %v1838, 6
        %v2394 = vrot.slane %v1838, 7
        %v2395 = vrot.slane %v1839, 1
        %v2396 = vrot.slane %v1839, 2
        %v2397 = vrot.slane %v1839, 3
        %v2398 = vrot.slane %v1839, 4
        %v2399 = vrot.slane %v1839, 5
        %v2400 = vrot.slane %v1839, 6
        %v2401 = vrot.slane %v1839, 7
        %v2402 = vrot.slane %v1840, 1
        %v2403 = vrot.slane %v1840, 2
        %v2404 = vrot.slane %v1840, 3
        %v2405 = vrot.slane %v1840, 4
        %v2406 = vrot.slane %v1840, 5
        %v2407 = vrot.slane %v1840, 6
        %v2408 = vrot.slane %v1840, 7
        %v2409 = vrot.slane %v1841, 1
        %v2410 = vrot.slane %v1841, 2
        %v2411 = vrot.slane %v1841, 3
        %v2412 = vrot.slane %v1841, 4
        %v2413 = vrot.slane %v1841, 5
        %v2414 = vrot.slane %v1841, 6
        %v2415 = vrot.slane %v1841, 7
        %v2416 = vrot.slane %v1842, 1
        %v2417 = vrot.slane %v1842, 2
        %v2418 = vrot.slane %v1842, 3
        %v2419 = vrot.slane %v1842, 4
        %v2420 = vrot.slane %v1842, 5
        %v2421 = vrot.slane %v1842, 6
        %v2422 = vrot.slane %v1842, 7
        %v2423 = vrot.slane %v1843, 1
        %v2424 = vrot.slane %v1843, 2
        %v2425 = vrot.slane %v1843, 3
        %v2426 = vrot.slane %v1843, 4
        %v2427 = vrot.slane %v1843, 5
        %v2428 = vrot.slane %v1843, 6
        %v2429 = vrot.slane %v1843, 7
        %v2430 = vrot.slane %v1844, 1
        %v2431 = vrot.slane %v1844, 2
        %v2432 = vrot.slane %v1844, 3
        %v2433 = vrot.slane %v1844, 4
        %v2434 = vrot.slane %v1844, 5
        %v2435 = vrot.slane %v1844, 6
        %v2436 = vrot.slane %v1844, 7
        %v2437 = vrot.slane %v1845, 1
        %v2438 = vrot.slane %v1845, 2
        %v2439 = vrot.slane %v1845, 3
        %v2440 = vrot.slane %v1845, 4
        %v2441 = vrot.slane %v1845, 5
        %v2442 = vrot.slane %v1845, 6
        %v2443 = vrot.slane %v1845, 7
        %v2444 = vrot.slane %v1846, 1
        %v2445 = vrot.slane %v1846, 2
        %v2446 = vrot.slane %v1846, 3
        %v2447 = vrot.slane %v1846, 4
        %v2448 = vrot.slane %v1846, 5
        %v2449 = vrot.slane %v1846, 6
        %v2450 = vrot.slane %v1846, 7
        %v2451 = vrot.slane %v1847, 1
        %v2452 = vrot.slane %v1847, 2
        %v2453 = vrot.slane %v1847, 3
        %v2454 = vrot.slane %v1847, 4
        %v2455 = vrot.slane %v1847, 5
        %v2456 = vrot.slane %v1847, 6
        %v2457 = vrot.slane %v1847, 7
        %v2458 = vrot.slane %v1848, 1
        %v2459 = vrot.slane %v1848, 2
        %v2460 = vrot.slane %v1848, 3
        %v2461 = vrot.slane %v1848, 4
        %v2462 = vrot.slane %v1848, 5
        %v2463 = vrot.slane %v1848, 6
        %v2464 = vrot.slane %v1848, 7
        %v2465 = vrot.slane %v1849, 1
        %v2466 = vrot.slane %v1849, 2
        %v2467 = vrot.slane %v1849, 3
        %v2468 = vrot.slane %v1849, 4
        %v2469 = vrot.slane %v1849, 5
        %v2470 = vrot.slane %v1849, 6
        %v2471 = vrot.slane %v1849, 7
        %v2472 = vrot.slane %v1850, 1
        %v2473 = vrot.slane %v1850, 2
        %v2474 = vrot.slane %v1850, 3
        %v2475 = vrot.slane %v1850, 4
        %v2476 = vrot.slane %v1850, 5
        %v2477 = vrot.slane %v1850, 6
        %v2478 = vrot.slane %v1850, 7
        %v2479 = vrot.slane %v1851, 1
        %v2480 = vrot.slane %v1851, 2
        %v2481 = vrot.slane %v1851, 3
        %v2482 = vrot.slane %v1851, 4
        %v2483 = vrot.slane %v1851, 5
        %v2484 = vrot.slane %v1851, 6
        %v2485 = vrot.slane %v1851, 7
        %v2486 = vrot.slane %v1852, 1
        %v2487 = vrot.slane %v1852, 2
        %v2488 = vrot.slane %v1852, 3
        %v2489 = vrot.slane %v1852, 4
        %v2490 = vrot.slane %v1852, 5
        %v2491 = vrot.slane %v1852, 6
        %v2492 = vrot.slane %v1852, 7
        %v2493 = vrot.slane %v1853, 1
        %v2494 = vrot.slane %v1853, 2
        %v2495 = vrot.slane %v1853, 3
        %v2496 = vrot.slane %v1853, 4
        %v2497 = vrot.slane %v1853, 5
        %v2498 = vrot.slane %v1853, 6
        %v2499 = vrot.slane %v1853, 7
        %v2500 = vrot.slane %v1854, 1
        %v2501 = vrot.slane %v1854, 2
        %v2502 = vrot.slane %v1854, 3
        %v2503 = vrot.slane %v1854, 4
        %v2504 = vrot.slane %v1854, 5
        %v2505 = vrot.slane %v1854, 6
        %v2506 = vrot.slane %v1854, 7
        %v2507 = vrot.slane %v1855, 1
        %v2508 = vrot.slane %v1855, 2
        %v2509 = vrot.slane %v1855, 3
        %v2510 = vrot.slane %v1855, 4
        %v2511 = vrot.slane %v1855, 5
        %v2512 = vrot.slane %v1855, 6
        %v2513 = vrot.slane %v1855, 7
        %v2514 = vrot.slane %v1856, 1
        %v2515 = vrot.slane %v1856, 2
        %v2516 = vrot.slane %v1856, 3
        %v2517 = vrot.slane %v1856, 4
        %v2518 = vrot.slane %v1856, 5
        %v2519 = vrot.slane %v1856, 6
        %v2520 = vrot.slane %v1856, 7
        %v2521 = vrot.slane %v1857, 1
        %v2522 = vrot.slane %v1857, 2
        %v2523 = vrot.slane %v1857, 3
        %v2524 = vrot.slane %v1857, 4
        %v2525 = vrot.slane %v1857, 5
        %v2526 = vrot.slane %v1857, 6
        %v2527 = vrot.slane %v1857, 7
        %v2528 = vrot.slane %v1858, 1
        %v2529 = vrot.slane %v1858, 2
        %v2530 = vrot.slane %v1858, 3
        %v2531 = vrot.slane %v1858, 4
        %v2532 = vrot.slane %v1858, 5
        %v2533 = vrot.slane %v1858, 6
        %v2534 = vrot.slane %v1858, 7
        %v2535 = vrot.slane %v1859, 1
        %v2536 = vrot.slane %v1859, 2
        %v2537 = vrot.slane %v1859, 3
        %v2538 = vrot.slane %v1859, 4
        %v2539 = vrot.slane %v1859, 5
        %v2540 = vrot.slane %v1859, 6
        %v2541 = vrot.slane %v1859, 7
        %v2542 = vrot.slane %v1860, 1
        %v2543 = vrot.slane %v1860, 2
        %v2544 = vrot.slane %v1860, 3
        %v2545 = vrot.slane %v1860, 4
        %v2546 = vrot.slane %v1860, 5
        %v2547 = vrot.slane %v1860, 6
        %v2548 = vrot.slane %v1860, 7
        %v2549 = vrot.slane %v1861, 1
        %v2550 = vrot.slane %v1861, 2
        %v2551 = vrot.slane %v1861, 3
        %v2552 = vrot.slane %v1861, 4
        %v2553 = vrot.slane %v1861, 5
        %v2554 = vrot.slane %v1861, 6
        %v2555 = vrot.slane %v1861, 7
        %v2556 = vrot.slane %v1862, 1
        %v2557 = vrot.slane %v1862, 2
        %v2558 = vrot.slane %v1862, 3
        %v2559 = vrot.slane %v1862, 4
        %v2560 = vrot.slane %v1862, 5
        %v2561 = vrot.slane %v1862, 6
        %v2562 = vrot.slane %v1862, 7
        %v2563 = vrot.slane %v1863, 1
        %v2564 = vrot.slane %v1863, 2
        %v2565 = vrot.slane %v1863, 3
        %v2566 = vrot.slane %v1863, 4
        %v2567 = vrot.slane %v1863, 5
        %v2568 = vrot.slane %v1863, 6
        %v2569 = vrot.slane %v1863, 7
        %v2570 = vrot.slane %v1864, 1
        %v2571 = vrot.slane %v1864, 2
        %v2572 = vrot.slane %v1864, 3
        %v2573 = vrot.slane %v1864, 4
        %v2574 = vrot.slane %v1864, 5
        %v2575 = vrot.slane %v1864, 6
        %v2576 = vrot.slane %v1864, 7
        %v2577 = vrot.slane %v1865, 1
        %v2578 = vrot.slane %v1865, 2
        %v2579 = vrot.slane %v1865, 3
        %v2580 = vrot.slane %v1865, 4
        %v2581 = vrot.slane %v1865, 5
        %v2582 = vrot.slane %v1865, 6
        %v2583 = vrot.slane %v1865, 7
        %v2584 = vrot.slane %v1866, 1
        %v2585 = vrot.slane %v1866, 2
        %v2586 = vrot.slane %v1866, 3
        %v2587 = vrot.slane %v1866, 4
        %v2588 = vrot.slane %v1866, 5
        %v2589 = vrot.slane %v1866, 6
        %v2590 = vrot.slane %v1866, 7
        %v2591 = vrot.slane %v1867, 1
        %v2592 = vrot.slane %v1867, 2
        %v2593 = vrot.slane %v1867, 3
        %v2594 = vrot.slane %v1867, 4
        %v2595 = vrot.slane %v1867, 5
        %v2596 = vrot.slane %v1867, 6
        %v2597 = vrot.slane %v1867, 7
        %v2598 = vrot.slane %v1868, 1
        %v2599 = vrot.slane %v1868, 2
        %v2600 = vrot.slane %v1868, 3
        %v2601 = vrot.slane %v1868, 4
        %v2602 = vrot.slane %v1868, 5
        %v2603 = vrot.slane %v1868, 6
        %v2604 = vrot.slane %v1868, 7
        %v2605 = vperm.slane %v1837, 0
        %v2606 = vperm.slane %v2381, 0
        %v2607 = vperm.slane %v2382, 0
        %v2608 = vperm.slane %v2383, 0
        %v2609 = vperm.slane %v2384, 0
        %v2610 = vperm.slane %v2385, 0
        %v2611 = vperm.slane %v2386, 0
        %v2612 = vperm.slane %v2387, 0
        %v2613 = vperm.slane %v1838, 0
        %v2614 = vperm.slane %v2388, 0
        %v2615 = vperm.slane %v2389, 0
        %v2616 = vperm.slane %v2390, 0
        %v2617 = vperm.slane %v2391, 0
        %v2618 = vperm.slane %v2392, 0
        %v2619 = vperm.slane %v2393, 0
        %v2620 = vperm.slane %v2394, 0
        %v2621 = vperm.slane %v1839, 0
        %v2622 = vperm.slane %v2395, 0
        %v2623 = vperm.slane %v2396, 0
        %v2624 = vperm.slane %v2397, 0
        %v2625 = vperm.slane %v2398, 0
        %v2626 = vperm.slane %v2399, 0
        %v2627 = vperm.slane %v2400, 0
        %v2628 = vperm.slane %v2401, 0
        %v2629 = vperm.slane %v1840, 0
        %v2630 = vperm.slane %v2402, 0
        %v2631 = vperm.slane %v2403, 0
        %v2632 = vperm.slane %v2404, 0
        %v2633 = vperm.slane %v2405, 0
        %v2634 = vperm.slane %v2406, 0
        %v2635 = vperm.slane %v2407, 0
        %v2636 = vperm.slane %v2408, 0
        %v2637 = vperm.slane %v1841, 0
        %v2638 = vperm.slane %v2409, 0
        %v2639 = vperm.slane %v2410, 0
        %v2640 = vperm.slane %v2411, 0
        %v2641 = vperm.slane %v2412, 0
        %v2642 = vperm.slane %v2413, 0
        %v2643 = vperm.slane %v2414, 0
        %v2644 = vperm.slane %v2415, 0
        %v2645 = vperm.slane %v1842, 0
        %v2646 = vperm.slane %v2416, 0
        %v2647 = vperm.slane %v2417, 0
        %v2648 = vperm.slane %v2418, 0
        %v2649 = vperm.slane %v2419, 0
        %v2650 = vperm.slane %v2420, 0
        %v2651 = vperm.slane %v2421, 0
        %v2652 = vperm.slane %v2422, 0
        %v2653 = vperm.slane %v1843, 0
        %v2654 = vperm.slane %v2423, 0
        %v2655 = vperm.slane %v2424, 0
        %v2656 = vperm.slane %v2425, 0
        %v2657 = vperm.slane %v2426, 0
        %v2658 = vperm.slane %v2427, 0
        %v2659 = vperm.slane %v2428, 0
        %v2660 = vperm.slane %v2429, 0
        %v2661 = vperm.slane %v1844, 0
        %v2662 = vperm.slane %v2430, 0
        %v2663 = vperm.slane %v2431, 0
        %v2664 = vperm.slane %v2432, 0
        %v2665 = vperm.slane %v2433, 0
        %v2666 = vperm.slane %v2434, 0
        %v2667 = vperm.slane %v2435, 0
        %v2668 = vperm.slane %v2436, 0
        %v2669 = vperm.slane %v1845, 0
        %v2670 = vperm.slane %v2437, 0
        %v2671 = vperm.slane %v2438, 0
        %v2672 = vperm.slane %v2439, 0
        %v2673 = vperm.slane %v2440, 0
        %v2674 = vperm.slane %v2441, 0
        %v2675 = vperm.slane %v2442, 0
        %v2676 = vperm.slane %v2443, 0
        %v2677 = vperm.slane %v1846, 0
        %v2678 = vperm.slane %v2444, 0
        %v2679 = vperm.slane %v2445, 0
        %v2680 = vperm.slane %v2446, 0
        %v2681 = vperm.slane %v2447, 0
        %v2682 = vperm.slane %v2448, 0
        %v2683 = vperm.slane %v2449, 0
        %v2684 = vperm.slane %v2450, 0
        %v2685 = vperm.slane %v1847, 0
        %v2686 = vperm.slane %v2451, 0
        %v2687 = vperm.slane %v2452, 0
        %v2688 = vperm.slane %v2453, 0
        %v2689 = vperm.slane %v2454, 0
        %v2690 = vperm.slane %v2455, 0
        %v2691 = vperm.slane %v2456, 0
        %v2692 = vperm.slane %v2457, 0
        %v2693 = vperm.slane %v1848, 0
        %v2694 = vperm.slane %v2458, 0
        %v2695 = vperm.slane %v2459, 0
        %v2696 = vperm.slane %v2460, 0
        %v2697 = vperm.slane %v2461, 0
        %v2698 = vperm.slane %v2462, 0
        %v2699 = vperm.slane %v2463, 0
        %v2700 = vperm.slane %v2464, 0
        %v2701 = vperm.slane %v1849, 0
        %v2702 = vperm.slane %v2465, 0
        %v2703 = vperm.slane %v2466, 0
        %v2704 = vperm.slane %v2467, 0
        %v2705 = vperm.slane %v2468, 0
        %v2706 = vperm.slane %v2469, 0
        %v2707 = vperm.slane %v2470, 0
        %v2708 = vperm.slane %v2471, 0
        %v2709 = vperm.slane %v1850, 0
        %v2710 = vperm.slane %v2472, 0
        %v2711 = vperm.slane %v2473, 0
        %v2712 = vperm.slane %v2474, 0
        %v2713 = vperm.slane %v2475, 0
        %v2714 = vperm.slane %v2476, 0
        %v2715 = vperm.slane %v2477, 0
        %v2716 = vperm.slane %v2478, 0
        %v2717 = vperm.slane %v1851, 0
        %v2718 = vperm.slane %v2479, 0
        %v2719 = vperm.slane %v2480, 0
        %v2720 = vperm.slane %v2481, 0
        %v2721 = vperm.slane %v2482, 0
        %v2722 = vperm.slane %v2483, 0
        %v2723 = vperm.slane %v2484, 0
        %v2724 = vperm.slane %v2485, 0
        %v2725 = vperm.slane %v1852, 0
        %v2726 = vperm.slane %v2486, 0
        %v2727 = vperm.slane %v2487, 0
        %v2728 = vperm.slane %v2488, 0
        %v2729 = vperm.slane %v2489, 0
        %v2730 = vperm.slane %v2490, 0
        %v2731 = vperm.slane %v2491, 0
        %v2732 = vperm.slane %v2492, 0
        %v2733 = vperm.slane %v1853, 0
        %v2734 = vperm.slane %v2493, 0
        %v2735 = vperm.slane %v2494, 0
        %v2736 = vperm.slane %v2495, 0
        %v2737 = vperm.slane %v2496, 0
        %v2738 = vperm.slane %v2497, 0
        %v2739 = vperm.slane %v2498, 0
        %v2740 = vperm.slane %v2499, 0
        %v2741 = vperm.slane %v1854, 0
        %v2742 = vperm.slane %v2500, 0
        %v2743 = vperm.slane %v2501, 0
        %v2744 = vperm.slane %v2502, 0
        %v2745 = vperm.slane %v2503, 0
        %v2746 = vperm.slane %v2504, 0
        %v2747 = vperm.slane %v2505, 0
        %v2748 = vperm.slane %v2506, 0
        %v2749 = vperm.slane %v1855, 0
        %v2750 = vperm.slane %v2507, 0
        %v2751 = vperm.slane %v2508, 0
        %v2752 = vperm.slane %v2509, 0
        %v2753 = vperm.slane %v2510, 0
        %v2754 = vperm.slane %v2511, 0
        %v2755 = vperm.slane %v2512, 0
        %v2756 = vperm.slane %v2513, 0
        %v2757 = vperm.slane %v1856, 0
        %v2758 = vperm.slane %v2514, 0
        %v2759 = vperm.slane %v2515, 0
        %v2760 = vperm.slane %v2516, 0
        %v2761 = vperm.slane %v2517, 0
        %v2762 = vperm.slane %v2518, 0
        %v2763 = vperm.slane %v2519, 0
        %v2764 = vperm.slane %v2520, 0
        %v2765 = vperm.slane %v1857, 0
        %v2766 = vperm.slane %v2521, 0
        %v2767 = vperm.slane %v2522, 0
        %v2768 = vperm.slane %v2523, 0
        %v2769 = vperm.slane %v2524, 0
        %v2770 = vperm.slane %v2525, 0
        %v2771 = vperm.slane %v2526, 0
        %v2772 = vperm.slane %v2527, 0
        %v2773 = vperm.slane %v1858, 0
        %v2774 = vperm.slane %v2528, 0
        %v2775 = vperm.slane %v2529, 0
        %v2776 = vperm.slane %v2530, 0
        %v2777 = vperm.slane %v2531, 0
        %v2778 = vperm.slane %v2532, 0
        %v2779 = vperm.slane %v2533, 0
        %v2780 = vperm.slane %v2534, 0
        %v2781 = vperm.slane %v1859, 0
        %v2782 = vperm.slane %v2535, 0
        %v2783 = vperm.slane %v2536, 0
        %v2784 = vperm.slane %v2537, 0
        %v2785 = vperm.slane %v2538, 0
        %v2786 = vperm.slane %v2539, 0
        %v2787 = vperm.slane %v2540, 0
        %v2788 = vperm.slane %v2541, 0
        %v2789 = vperm.slane %v1860, 0
        %v2790 = vperm.slane %v2542, 0
        %v2791 = vperm.slane %v2543, 0
        %v2792 = vperm.slane %v2544, 0
        %v2793 = vperm.slane %v2545, 0
        %v2794 = vperm.slane %v2546, 0
        %v2795 = vperm.slane %v2547, 0
        %v2796 = vperm.slane %v2548, 0
        %v2797 = vperm.slane %v1861, 0
        %v2798 = vperm.slane %v2549, 0
        %v2799 = vperm.slane %v2550, 0
        %v2800 = vperm.slane %v2551, 0
        %v2801 = vperm.slane %v2552, 0
        %v2802 = vperm.slane %v2553, 0
        %v2803 = vperm.slane %v2554, 0
        %v2804 = vperm.slane %v2555, 0
        %v2805 = vperm.slane %v1862, 0
        %v2806 = vperm.slane %v2556, 0
        %v2807 = vperm.slane %v2557, 0
        %v2808 = vperm.slane %v2558, 0
        %v2809 = vperm.slane %v2559, 0
        %v2810 = vperm.slane %v2560, 0
        %v2811 = vperm.slane %v2561, 0
        %v2812 = vperm.slane %v2562, 0
        %v2813 = vperm.slane %v1863, 0
        %v2814 = vperm.slane %v2563, 0
        %v2815 = vperm.slane %v2564, 0
        %v2816 = vperm.slane %v2565, 0
        %v2817 = vperm.slane %v2566, 0
        %v2818 = vperm.slane %v2567, 0
        %v2819 = vperm.slane %v2568, 0
        %v2820 = vperm.slane %v2569, 0
        %v2821 = vperm.slane %v1864, 0
        %v2822 = vperm.slane %v2570, 0
        %v2823 = vperm.slane %v2571, 0
        %v2824 = vperm.slane %v2572, 0
        %v2825 = vperm.slane %v2573, 0
        %v2826 = vperm.slane %v2574, 0
        %v2827 = vperm.slane %v2575, 0
        %v2828 = vperm.slane %v2576, 0
        %v2829 = vperm.slane %v1865, 0
        %v2830 = vperm.slane %v2577, 0
        %v2831 = vperm.slane %v2578, 0
        %v2832 = vperm.slane %v2579, 0
        %v2833 = vperm.slane %v2580, 0
        %v2834 = vperm.slane %v2581, 0
        %v2835 = vperm.slane %v2582, 0
        %v2836 = vperm.slane %v2583, 0
        %v2837 = vperm.slane %v1866, 0
        %v2838 = vperm.slane %v2584, 0
        %v2839 = vperm.slane %v2585, 0
        %v2840 = vperm.slane %v2586, 0
        %v2841 = vperm.slane %v2587, 0
        %v2842 = vperm.slane %v2588, 0
        %v2843 = vperm.slane %v2589, 0
        %v2844 = vperm.slane %v2590, 0
        %v2845 = vperm.slane %v1867, 0
        %v2846 = vperm.slane %v2591, 0
        %v2847 = vperm.slane %v2592, 0
        %v2848 = vperm.slane %v2593, 0
        %v2849 = vperm.slane %v2594, 0
        %v2850 = vperm.slane %v2595, 0
        %v2851 = vperm.slane %v2596, 0
        %v2852 = vperm.slane %v2597, 0
        %v2853 = vperm.slane %v1868, 0
        %v2854 = vperm.slane %v2598, 0
        %v2855 = vperm.slane %v2599, 0
        %v2856 = vperm.slane %v2600, 0
        %v2857 = vperm.slane %v2601, 0
        %v2858 = vperm.slane %v2602, 0
        %v2859 = vperm.slane %v2603, 0
        %v2860 = vperm.slane %v2604, 0
        %v3117 = vsel %vm1515, %v1773, %v2605
        %v3118 = vsel %vm1515, %v1901, %v2606
        %v3119 = vsel %vm1515, %v1902, %v2607
        %v3120 = vsel %vm1515, %v1903, %v2608
        %v3121 = vsel %vm1515, %v1904, %v2609
        %v3122 = vsel %vm1515, %v1905, %v2610
        %v3123 = vsel %vm1515, %v1906, %v2611
        %v3124 = vsel %vm1515, %v1907, %v2612
        %v3125 = vsel %vm1515, %v1774, %v2613
        %v3126 = vsel %vm1515, %v1908, %v2614
        %v3127 = vsel %vm1515, %v1909, %v2615
        %v3128 = vsel %vm1515, %v1910, %v2616
        %v3129 = vsel %vm1515, %v1911, %v2617
        %v3130 = vsel %vm1515, %v1912, %v2618
        %v3131 = vsel %vm1515, %v1913, %v2619
        %v3132 = vsel %vm1515, %v1914, %v2620
        %v3133 = vsel %vm1515, %v1775, %v2621
        %v3134 = vsel %vm1515, %v1915, %v2622
        %v3135 = vsel %vm1515, %v1916, %v2623
        %v3136 = vsel %vm1515, %v1917, %v2624
        %v3137 = vsel %vm1515, %v1918, %v2625
        %v3138 = vsel %vm1515, %v1919, %v2626
        %v3139 = vsel %vm1515, %v1920, %v2627
        %v3140 = vsel %vm1515, %v1921, %v2628
        %v3141 = vsel %vm1515, %v1776, %v2629
        %v3142 = vsel %vm1515, %v1922, %v2630
        %v3143 = vsel %vm1515, %v1923, %v2631
        %v3144 = vsel %vm1515, %v1924, %v2632
        %v3145 = vsel %vm1515, %v1925, %v2633
        %v3146 = vsel %vm1515, %v1926, %v2634
        %v3147 = vsel %vm1515, %v1927, %v2635
        %v3148 = vsel %vm1515, %v1928, %v2636
        %v3149 = vsel %vm1515, %v1777, %v2637
        %v3150 = vsel %vm1515, %v1929, %v2638
        %v3151 = vsel %vm1515, %v1930, %v2639
        %v3152 = vsel %vm1515, %v1931, %v2640
        %v3153 = vsel %vm1515, %v1932, %v2641
        %v3154 = vsel %vm1515, %v1933, %v2642
        %v3155 = vsel %vm1515, %v1934, %v2643
        %v3156 = vsel %vm1515, %v1935, %v2644
        %v3157 = vsel %vm1515, %v1778, %v2645
        %v3158 = vsel %vm1515, %v1936, %v2646
        %v3159 = vsel %vm1515, %v1937, %v2647
        %v3160 = vsel %vm1515, %v1938, %v2648
        %v3161 = vsel %vm1515, %v1939, %v2649
        %v3162 = vsel %vm1515, %v1940, %v2650
        %v3163 = vsel %vm1515, %v1941, %v2651
        %v3164 = vsel %vm1515, %v1942, %v2652
        %v3165 = vsel %vm1515, %v1779, %v2653
        %v3166 = vsel %vm1515, %v1943, %v2654
        %v3167 = vsel %vm1515, %v1944, %v2655
        %v3168 = vsel %vm1515, %v1945, %v2656
        %v3169 = vsel %vm1515, %v1946, %v2657
        %v3170 = vsel %vm1515, %v1947, %v2658
        %v3171 = vsel %vm1515, %v1948, %v2659
        %v3172 = vsel %vm1515, %v1949, %v2660
        %v3173 = vsel %vm1515, %v1780, %v2661
        %v3174 = vsel %vm1515, %v1950, %v2662
        %v3175 = vsel %vm1515, %v1951, %v2663
        %v3176 = vsel %vm1515, %v1952, %v2664
        %v3177 = vsel %vm1515, %v1953, %v2665
        %v3178 = vsel %vm1515, %v1954, %v2666
        %v3179 = vsel %vm1515, %v1955, %v2667
        %v3180 = vsel %vm1515, %v1956, %v2668
        %v3181 = vsel %vm1515, %v1781, %v2669
        %v3182 = vsel %vm1515, %v1957, %v2670
        %v3183 = vsel %vm1515, %v1958, %v2671
        %v3184 = vsel %vm1515, %v1959, %v2672
        %v3185 = vsel %vm1515, %v1960, %v2673
        %v3186 = vsel %vm1515, %v1961, %v2674
        %v3187 = vsel %vm1515, %v1962, %v2675
        %v3188 = vsel %vm1515, %v1963, %v2676
        %v3189 = vsel %vm1515, %v1782, %v2677
        %v3190 = vsel %vm1515, %v1964, %v2678
        %v3191 = vsel %vm1515, %v1965, %v2679
        %v3192 = vsel %vm1515, %v1966, %v2680
        %v3193 = vsel %vm1515, %v1967, %v2681
        %v3194 = vsel %vm1515, %v1968, %v2682
        %v3195 = vsel %vm1515, %v1969, %v2683
        %v3196 = vsel %vm1515, %v1970, %v2684
        %v3197 = vsel %vm1515, %v1783, %v2685
        %v3198 = vsel %vm1515, %v1971, %v2686
        %v3199 = vsel %vm1515, %v1972, %v2687
        %v3200 = vsel %vm1515, %v1973, %v2688
        %v3201 = vsel %vm1515, %v1974, %v2689
        %v3202 = vsel %vm1515, %v1975, %v2690
        %v3203 = vsel %vm1515, %v1976, %v2691
        %v3204 = vsel %vm1515, %v1977, %v2692
        %v3205 = vsel %vm1515, %v1784, %v2693
        %v3206 = vsel %vm1515, %v1978, %v2694
        %v3207 = vsel %vm1515, %v1979, %v2695
        %v3208 = vsel %vm1515, %v1980, %v2696
        %v3209 = vsel %vm1515, %v1981, %v2697
        %v3210 = vsel %vm1515, %v1982, %v2698
        %v3211 = vsel %vm1515, %v1983, %v2699
        %v3212 = vsel %vm1515, %v1984, %v2700
        %v3213 = vsel %vm1515, %v1785, %v2701
        %v3214 = vsel %vm1515, %v1985, %v2702
        %v3215 = vsel %vm1515, %v1986, %v2703
        %v3216 = vsel %vm1515, %v1987, %v2704
        %v3217 = vsel %vm1515, %v1988, %v2705
        %v3218 = vsel %vm1515, %v1989, %v2706
        %v3219 = vsel %vm1515, %v1990, %v2707
        %v3220 = vsel %vm1515, %v1991, %v2708
        %v3221 = vsel %vm1515, %v1786, %v2709
        %v3222 = vsel %vm1515, %v1992, %v2710
        %v3223 = vsel %vm1515, %v1993, %v2711
        %v3224 = vsel %vm1515, %v1994, %v2712
        %v3225 = vsel %vm1515, %v1995, %v2713
        %v3226 = vsel %vm1515, %v1996, %v2714
        %v3227 = vsel %vm1515, %v1997, %v2715
        %v3228 = vsel %vm1515, %v1998, %v2716
        %v3229 = vsel %vm1515, %v1787, %v2717
        %v3230 = vsel %vm1515, %v1999, %v2718
        %v3231 = vsel %vm1515, %v2000, %v2719
        %v3232 = vsel %vm1515, %v2001, %v2720
        %v3233 = vsel %vm1515, %v2002, %v2721
        %v3234 = vsel %vm1515, %v2003, %v2722
        %v3235 = vsel %vm1515, %v2004, %v2723
        %v3236 = vsel %vm1515, %v2005, %v2724
        %v3237 = vsel %vm1515, %v1788, %v2725
        %v3238 = vsel %vm1515, %v2006, %v2726
        %v3239 = vsel %vm1515, %v2007, %v2727
        %v3240 = vsel %vm1515, %v2008, %v2728
        %v3241 = vsel %vm1515, %v2009, %v2729
        %v3242 = vsel %vm1515, %v2010, %v2730
        %v3243 = vsel %vm1515, %v2011, %v2731
        %v3244 = vsel %vm1515, %v2012, %v2732
        %v3245 = vsel %vm1515, %v1789, %v2733
        %v3246 = vsel %vm1515, %v2013, %v2734
        %v3247 = vsel %vm1515, %v2014, %v2735
        %v3248 = vsel %vm1515, %v2015, %v2736
        %v3249 = vsel %vm1515, %v2016, %v2737
        %v3250 = vsel %vm1515, %v2017, %v2738
        %v3251 = vsel %vm1515, %v2018, %v2739
        %v3252 = vsel %vm1515, %v2019, %v2740
        %v3253 = vsel %vm1515, %v1790, %v2741
        %v3254 = vsel %vm1515, %v2020, %v2742
        %v3255 = vsel %vm1515, %v2021, %v2743
        %v3256 = vsel %vm1515, %v2022, %v2744
        %v3257 = vsel %vm1515, %v2023, %v2745
        %v3258 = vsel %vm1515, %v2024, %v2746
        %v3259 = vsel %vm1515, %v2025, %v2747
        %v3260 = vsel %vm1515, %v2026, %v2748
        %v3261 = vsel %vm1515, %v1791, %v2749
        %v3262 = vsel %vm1515, %v2027, %v2750
        %v3263 = vsel %vm1515, %v2028, %v2751
        %v3264 = vsel %vm1515, %v2029, %v2752
        %v3265 = vsel %vm1515, %v2030, %v2753
        %v3266 = vsel %vm1515, %v2031, %v2754
        %v3267 = vsel %vm1515, %v2032, %v2755
        %v3268 = vsel %vm1515, %v2033, %v2756
        %v3269 = vsel %vm1515, %v1792, %v2757
        %v3270 = vsel %vm1515, %v2034, %v2758
        %v3271 = vsel %vm1515, %v2035, %v2759
        %v3272 = vsel %vm1515, %v2036, %v2760
        %v3273 = vsel %vm1515, %v2037, %v2761
        %v3274 = vsel %vm1515, %v2038, %v2762
        %v3275 = vsel %vm1515, %v2039, %v2763
        %v3276 = vsel %vm1515, %v2040, %v2764
        %v3277 = vsel %vm1515, %v1793, %v2765
        %v3278 = vsel %vm1515, %v2041, %v2766
        %v3279 = vsel %vm1515, %v2042, %v2767
        %v3280 = vsel %vm1515, %v2043, %v2768
        %v3281 = vsel %vm1515, %v2044, %v2769
        %v3282 = vsel %vm1515, %v2045, %v2770
        %v3283 = vsel %vm1515, %v2046, %v2771
        %v3284 = vsel %vm1515, %v2047, %v2772
        %v3285 = vsel %vm1515, %v1794, %v2773
        %v3286 = vsel %vm1515, %v2048, %v2774
        %v3287 = vsel %vm1515, %v2049, %v2775
        %v3288 = vsel %vm1515, %v2050, %v2776
        %v3289 = vsel %vm1515, %v2051, %v2777
        %v3290 = vsel %vm1515, %v2052, %v2778
        %v3291 = vsel %vm1515, %v2053, %v2779
        %v3292 = vsel %vm1515, %v2054, %v2780
        %v3293 = vsel %vm1515, %v1795, %v2781
        %v3294 = vsel %vm1515, %v2055, %v2782
        %v3295 = vsel %vm1515, %v2056, %v2783
        %v3296 = vsel %vm1515, %v2057, %v2784
        %v3297 = vsel %vm1515, %v2058, %v2785
        %v3298 = vsel %vm1515, %v2059, %v2786
        %v3299 = vsel %vm1515, %v2060, %v2787
        %v3300 = vsel %vm1515, %v2061, %v2788
        %v3301 = vsel %vm1515, %v1796, %v2789
        %v3302 = vsel %vm1515, %v2062, %v2790
        %v3303 = vsel %vm1515, %v2063, %v2791
        %v3304 = vsel %vm1515, %v2064, %v2792
        %v3305 = vsel %vm1515, %v2065, %v2793
        %v3306 = vsel %vm1515, %v2066, %v2794
        %v3307 = vsel %vm1515, %v2067, %v2795
        %v3308 = vsel %vm1515, %v2068, %v2796
        %v3309 = vsel %vm1515, %v1797, %v2797
        %v3310 = vsel %vm1515, %v2069, %v2798
        %v3311 = vsel %vm1515, %v2070, %v2799
        %v3312 = vsel %vm1515, %v2071, %v2800
        %v3313 = vsel %vm1515, %v2072, %v2801
        %v3314 = vsel %vm1515, %v2073, %v2802
        %v3315 = vsel %vm1515, %v2074, %v2803
        %v3316 = vsel %vm1515, %v2075, %v2804
        %v3317 = vsel %vm1515, %v1798, %v2805
        %v3318 = vsel %vm1515, %v2076, %v2806
        %v3319 = vsel %vm1515, %v2077, %v2807
        %v3320 = vsel %vm1515, %v2078, %v2808
        %v3321 = vsel %vm1515, %v2079, %v2809
        %v3322 = vsel %vm1515, %v2080, %v2810
        %v3323 = vsel %vm1515, %v2081, %v2811
        %v3324 = vsel %vm1515, %v2082, %v2812
        %v3325 = vsel %vm1515, %v1799, %v2813
        %v3326 = vsel %vm1515, %v2083, %v2814
        %v3327 = vsel %vm1515, %v2084, %v2815
        %v3328 = vsel %vm1515, %v2085, %v2816
        %v3329 = vsel %vm1515, %v2086, %v2817
        %v3330 = vsel %vm1515, %v2087, %v2818
        %v3331 = vsel %vm1515, %v2088, %v2819
        %v3332 = vsel %vm1515, %v2089, %v2820
        %v3333 = vsel %vm1515, %v1800, %v2821
        %v3334 = vsel %vm1515, %v2090, %v2822
        %v3335 = vsel %vm1515, %v2091, %v2823
        %v3336 = vsel %vm1515, %v2092, %v2824
        %v3337 = vsel %vm1515, %v2093, %v2825
        %v3338 = vsel %vm1515, %v2094, %v2826
        %v3339 = vsel %vm1515, %v2095, %v2827
        %v3340 = vsel %vm1515, %v2096, %v2828
        %v3341 = vsel %vm1515, %v1801, %v2829
        %v3342 = vsel %vm1515, %v2097, %v2830
        %v3343 = vsel %vm1515, %v2098, %v2831
        %v3344 = vsel %vm1515, %v2099, %v2832
        %v3345 = vsel %vm1515, %v2100, %v2833
        %v3346 = vsel %vm1515, %v2101, %v2834
        %v3347 = vsel %vm1515, %v2102, %v2835
        %v3348 = vsel %vm1515, %v2103, %v2836
        %v3349 = vsel %vm1515, %v1802, %v2837
        %v3350 = vsel %vm1515, %v2104, %v2838
        %v3351 = vsel %vm1515, %v2105, %v2839
        %v3352 = vsel %vm1515, %v2106, %v2840
        %v3353 = vsel %vm1515, %v2107, %v2841
        %v3354 = vsel %vm1515, %v2108, %v2842
        %v3355 = vsel %vm1515, %v2109, %v2843
        %v3356 = vsel %vm1515, %v2110, %v2844
        %v3357 = vsel %vm1515, %v1803, %v2845
        %v3358 = vsel %vm1515, %v2111, %v2846
        %v3359 = vsel %vm1515, %v2112, %v2847
        %v3360 = vsel %vm1515, %v2113, %v2848
        %v3361 = vsel %vm1515, %v2114, %v2849
        %v3362 = vsel %vm1515, %v2115, %v2850
        %v3363 = vsel %vm1515, %v2116, %v2851
        %v3364 = vsel %vm1515, %v2117, %v2852
        %v3365 = vsel %vm1515, %v1804, %v2853
        %v3366 = vsel %vm1515, %v2118, %v2854
        %v3367 = vsel %vm1515, %v2119, %v2855
        %v3368 = vsel %vm1515, %v2120, %v2856
        %v3369 = vsel %vm1515, %v2121, %v2857
        %v3370 = vsel %vm1515, %v2122, %v2858
        %v3371 = vsel %vm1515, %v2123, %v2859
        %v3372 = vsel %vm1515, %v2124, %v2860
        %v3373 = vmul.f32 %v3117, 0.125
        %v3374 = vmul.f32 %v3118, 0.125
        %v3375 = vmul.f32 %v3119, 0.125
        %v3376 = vmul.f32 %v3120, 0.125
        %v3377 = vmul.f32 %v3121, 0.125
        %v3378 = vmul.f32 %v3122, 0.125
        %v3379 = vmul.f32 %v3123, 0.125
        %v3380 = vmul.f32 %v3124, 0.125
        %v3381 = vmul.f32 %v3125, 0.125
        %v3382 = vmul.f32 %v3126, 0.125
        %v3383 = vmul.f32 %v3127, 0.125
        %v3384 = vmul.f32 %v3128, 0.125
        %v3385 = vmul.f32 %v3129, 0.125
        %v3386 = vmul.f32 %v3130, 0.125
        %v3387 = vmul.f32 %v3131, 0.125
        %v3388 = vmul.f32 %v3132, 0.125
        %v3389 = vmul.f32 %v3133, 0.125
        %v3390 = vmul.f32 %v3134, 0.125
        %v3391 = vmul.f32 %v3135, 0.125
        %v3392 = vmul.f32 %v3136, 0.125
        %v3393 = vmul.f32 %v3137, 0.125
        %v3394 = vmul.f32 %v3138, 0.125
        %v3395 = vmul.f32 %v3139, 0.125
        %v3396 = vmul.f32 %v3140, 0.125
        %v3397 = vmul.f32 %v3141, 0.125
        %v3398 = vmul.f32 %v3142, 0.125
        %v3399 = vmul.f32 %v3143, 0.125
        %v3400 = vmul.f32 %v3144, 0.125
        %v3401 = vmul.f32 %v3145, 0.125
        %v3402 = vmul.f32 %v3146, 0.125
        %v3403 = vmul.f32 %v3147, 0.125
        %v3404 = vmul.f32 %v3148, 0.125
        %v3405 = vmul.f32 %v3149, 0.125
        %v3406 = vmul.f32 %v3150, 0.125
        %v3407 = vmul.f32 %v3151, 0.125
        %v3408 = vmul.f32 %v3152, 0.125
        %v3409 = vmul.f32 %v3153, 0.125
        %v3410 = vmul.f32 %v3154, 0.125
        %v3411 = vmul.f32 %v3155, 0.125
        %v3412 = vmul.f32 %v3156, 0.125
        %v3413 = vmul.f32 %v3157, 0.125
        %v3414 = vmul.f32 %v3158, 0.125
        %v3415 = vmul.f32 %v3159, 0.125
        %v3416 = vmul.f32 %v3160, 0.125
        %v3417 = vmul.f32 %v3161, 0.125
        %v3418 = vmul.f32 %v3162, 0.125
        %v3419 = vmul.f32 %v3163, 0.125
        %v3420 = vmul.f32 %v3164, 0.125
        %v3421 = vmul.f32 %v3165, 0.125
        %v3422 = vmul.f32 %v3166, 0.125
        %v3423 = vmul.f32 %v3167, 0.125
        %v3424 = vmul.f32 %v3168, 0.125
        %v3425 = vmul.f32 %v3169, 0.125
        %v3426 = vmul.f32 %v3170, 0.125
        %v3427 = vmul.f32 %v3171, 0.125
        %v3428 = vmul.f32 %v3172, 0.125
        %v3429 = vmul.f32 %v3181, 0.125
        %v3430 = vmul.f32 %v3182, 0.125
        %v3431 = vmul.f32 %v3183, 0.125
        %v3432 = vmul.f32 %v3184, 0.125
        %v3433 = vmul.f32 %v3185, 0.125
        %v3434 = vmul.f32 %v3186, 0.125
        %v3435 = vmul.f32 %v3187, 0.125
        %v3436 = vmul.f32 %v3188, 0.125
        %v3437 = vmul.f32 %v3189, 0.125
        %v3438 = vmul.f32 %v3190, 0.125
        %v3439 = vmul.f32 %v3191, 0.125
        %v3440 = vmul.f32 %v3192, 0.125
        %v3441 = vmul.f32 %v3193, 0.125
        %v3442 = vmul.f32 %v3194, 0.125
        %v3443 = vmul.f32 %v3195, 0.125
        %v3444 = vmul.f32 %v3196, 0.125
        %v3445 = vmul.f32 %v3197, 0.125
        %v3446 = vmul.f32 %v3198, 0.125
        %v3447 = vmul.f32 %v3199, 0.125
        %v3448 = vmul.f32 %v3200, 0.125
        %v3449 = vmul.f32 %v3201, 0.125
        %v3450 = vmul.f32 %v3202, 0.125
        %v3451 = vmul.f32 %v3203, 0.125
        %v3452 = vmul.f32 %v3204, 0.125
        %v3453 = vmul.f32 %v3205, 0.125
        %v3454 = vmul.f32 %v3206, 0.125
        %v3455 = vmul.f32 %v3207, 0.125
        %v3456 = vmul.f32 %v3208, 0.125
        %v3457 = vmul.f32 %v3209, 0.125
        %v3458 = vmul.f32 %v3210, 0.125
        %v3459 = vmul.f32 %v3211, 0.125
        %v3460 = vmul.f32 %v3212, 0.125
        %v3461 = vmul.f32 %v3213, 0.125
        %v3462 = vmul.f32 %v3214, 0.125
        %v3463 = vmul.f32 %v3215, 0.125
        %v3464 = vmul.f32 %v3216, 0.125
        %v3465 = vmul.f32 %v3217, 0.125
        %v3466 = vmul.f32 %v3218, 0.125
        %v3467 = vmul.f32 %v3219, 0.125
        %v3468 = vmul.f32 %v3220, 0.125
        %v3469 = vmul.f32 %v3221, 0.125
        %v3470 = vmul.f32 %v3222, 0.125
        %v3471 = vmul.f32 %v3223, 0.125
        %v3472 = vmul.f32 %v3224, 0.125
        %v3473 = vmul.f32 %v3225, 0.125
        %v3474 = vmul.f32 %v3226, 0.125
        %v3475 = vmul.f32 %v3227, 0.125
        %v3476 = vmul.f32 %v3228, 0.125
        %v3477 = vmul.f32 %v3229, 0.125
        %v3478 = vmul.f32 %v3230, 0.125
        %v3479 = vmul.f32 %v3231, 0.125
        %v3480 = vmul.f32 %v3232, 0.125
        %v3481 = vmul.f32 %v3233, 0.125
        %v3482 = vmul.f32 %v3234, 0.125
        %v3483 = vmul.f32 %v3235, 0.125
        %v3484 = vmul.f32 %v3236, 0.125
        %v3485 = vmul.f32 %v3245, 0.125
        %v3486 = vmul.f32 %v3246, 0.125
        %v3487 = vmul.f32 %v3247, 0.125
        %v3488 = vmul.f32 %v3248, 0.125
        %v3489 = vmul.f32 %v3249, 0.125
        %v3490 = vmul.f32 %v3250, 0.125
        %v3491 = vmul.f32 %v3251, 0.125
        %v3492 = vmul.f32 %v3252, 0.125
        %v3493 = vmul.f32 %v3253, 0.125
        %v3494 = vmul.f32 %v3254, 0.125
        %v3495 = vmul.f32 %v3255, 0.125
        %v3496 = vmul.f32 %v3256, 0.125
        %v3497 = vmul.f32 %v3257, 0.125
        %v3498 = vmul.f32 %v3258, 0.125
        %v3499 = vmul.f32 %v3259, 0.125
        %v3500 = vmul.f32 %v3260, 0.125
        %v3501 = vmul.f32 %v3261, 0.125
        %v3502 = vmul.f32 %v3262, 0.125
        %v3503 = vmul.f32 %v3263, 0.125
        %v3504 = vmul.f32 %v3264, 0.125
        %v3505 = vmul.f32 %v3265, 0.125
        %v3506 = vmul.f32 %v3266, 0.125
        %v3507 = vmul.f32 %v3267, 0.125
        %v3508 = vmul.f32 %v3268, 0.125
        %v3509 = vmul.f32 %v3269, 0.125
        %v3510 = vmul.f32 %v3270, 0.125
        %v3511 = vmul.f32 %v3271, 0.125
        %v3512 = vmul.f32 %v3272, 0.125
        %v3513 = vmul.f32 %v3273, 0.125
        %v3514 = vmul.f32 %v3274, 0.125
        %v3515 = vmul.f32 %v3275, 0.125
        %v3516 = vmul.f32 %v3276, 0.125
        %v3517 = vmul.f32 %v3277, 0.125
        %v3518 = vmul.f32 %v3278, 0.125
        %v3519 = vmul.f32 %v3279, 0.125
        %v3520 = vmul.f32 %v3280, 0.125
        %v3521 = vmul.f32 %v3281, 0.125
        %v3522 = vmul.f32 %v3282, 0.125
        %v3523 = vmul.f32 %v3283, 0.125
        %v3524 = vmul.f32 %v3284, 0.125
        %v3525 = vmul.f32 %v3285, 0.125
        %v3526 = vmul.f32 %v3286, 0.125
        %v3527 = vmul.f32 %v3287, 0.125
        %v3528 = vmul.f32 %v3288, 0.125
        %v3529 = vmul.f32 %v3289, 0.125
        %v3530 = vmul.f32 %v3290, 0.125
        %v3531 = vmul.f32 %v3291, 0.125
        %v3532 = vmul.f32 %v3292, 0.125
        %v3533 = vmul.f32 %v3293, 0.125
        %v3534 = vmul.f32 %v3294, 0.125
        %v3535 = vmul.f32 %v3295, 0.125
        %v3536 = vmul.f32 %v3296, 0.125
        %v3537 = vmul.f32 %v3297, 0.125
        %v3538 = vmul.f32 %v3298, 0.125
        %v3539 = vmul.f32 %v3299, 0.125
        %v3540 = vmul.f32 %v3300, 0.125
        %v3541 = vmul.f32 %v3309, 0.125
        %v3542 = vmul.f32 %v3310, 0.125
        %v3543 = vmul.f32 %v3311, 0.125
        %v3544 = vmul.f32 %v3312, 0.125
        %v3545 = vmul.f32 %v3313, 0.125
        %v3546 = vmul.f32 %v3314, 0.125
        %v3547 = vmul.f32 %v3315, 0.125
        %v3548 = vmul.f32 %v3316, 0.125
        %v3549 = vmul.f32 %v3317, 0.125
        %v3550 = vmul.f32 %v3318, 0.125
        %v3551 = vmul.f32 %v3319, 0.125
        %v3552 = vmul.f32 %v3320, 0.125
        %v3553 = vmul.f32 %v3321, 0.125
        %v3554 = vmul.f32 %v3322, 0.125
        %v3555 = vmul.f32 %v3323, 0.125
        %v3556 = vmul.f32 %v3324, 0.125
        %v3557 = vmul.f32 %v3325, 0.125
        %v3558 = vmul.f32 %v3326, 0.125
        %v3559 = vmul.f32 %v3327, 0.125
        %v3560 = vmul.f32 %v3328, 0.125
        %v3561 = vmul.f32 %v3329, 0.125
        %v3562 = vmul.f32 %v3330, 0.125
        %v3563 = vmul.f32 %v3331, 0.125
        %v3564 = vmul.f32 %v3332, 0.125
        %v3565 = vmul.f32 %v3333, 0.125
        %v3566 = vmul.f32 %v3334, 0.125
        %v3567 = vmul.f32 %v3335, 0.125
        %v3568 = vmul.f32 %v3336, 0.125
        %v3569 = vmul.f32 %v3337, 0.125
        %v3570 = vmul.f32 %v3338, 0.125
        %v3571 = vmul.f32 %v3339, 0.125
        %v3572 = vmul.f32 %v3340, 0.125
        %v3573 = vmul.f32 %v3341, 0.125
        %v3574 = vmul.f32 %v3342, 0.125
        %v3575 = vmul.f32 %v3343, 0.125
        %v3576 = vmul.f32 %v3344, 0.125
        %v3577 = vmul.f32 %v3345, 0.125
        %v3578 = vmul.f32 %v3346, 0.125
        %v3579 = vmul.f32 %v3347, 0.125
        %v3580 = vmul.f32 %v3348, 0.125
        %v3581 = vmul.f32 %v3349, 0.125
        %v3582 = vmul.f32 %v3350, 0.125
        %v3583 = vmul.f32 %v3351, 0.125
        %v3584 = vmul.f32 %v3352, 0.125
        %v3585 = vmul.f32 %v3353, 0.125
        %v3586 = vmul.f32 %v3354, 0.125
        %v3587 = vmul.f32 %v3355, 0.125
        %v3588 = vmul.f32 %v3356, 0.125
        %v3589 = vmul.f32 %v3357, 0.125
        %v3590 = vmul.f32 %v3358, 0.125
        %v3591 = vmul.f32 %v3359, 0.125
        %v3592 = vmul.f32 %v3360, 0.125
        %v3593 = vmul.f32 %v3361, 0.125
        %v3594 = vmul.f32 %v3362, 0.125
        %v3595 = vmul.f32 %v3363, 0.125
        %v3596 = vmul.f32 %v3364, 0.125
        %v3597 = vmul.f32 %v3117, 0.75
        %v3598 = vmul.f32 %v3118, 0.75
        %v3599 = vmul.f32 %v3119, 0.75
        %v3600 = vmul.f32 %v3120, 0.75
        %v3601 = vmul.f32 %v3121, 0.75
        %v3602 = vmul.f32 %v3122, 0.75
        %v3603 = vmul.f32 %v3123, 0.75
        %v3604 = vmul.f32 %v3124, 0.75
        %v3605 = vmul.f32 %v3125, 0.75
        %v3606 = vmul.f32 %v3126, 0.75
        %v3607 = vmul.f32 %v3127, 0.75
        %v3608 = vmul.f32 %v3128, 0.75
        %v3609 = vmul.f32 %v3129, 0.75
        %v3610 = vmul.f32 %v3130, 0.75
        %v3611 = vmul.f32 %v3131, 0.75
        %v3612 = vmul.f32 %v3132, 0.75
        %v3613 = vmul.f32 %v3133, 0.75
        %v3614 = vmul.f32 %v3134, 0.75
        %v3615 = vmul.f32 %v3135, 0.75
        %v3616 = vmul.f32 %v3136, 0.75
        %v3617 = vmul.f32 %v3137, 0.75
        %v3618 = vmul.f32 %v3138, 0.75
        %v3619 = vmul.f32 %v3139, 0.75
        %v3620 = vmul.f32 %v3140, 0.75
        %v3621 = vmul.f32 %v3141, 0.75
        %v3622 = vmul.f32 %v3142, 0.75
        %v3623 = vmul.f32 %v3143, 0.75
        %v3624 = vmul.f32 %v3144, 0.75
        %v3625 = vmul.f32 %v3145, 0.75
        %v3626 = vmul.f32 %v3146, 0.75
        %v3627 = vmul.f32 %v3147, 0.75
        %v3628 = vmul.f32 %v3148, 0.75
        %v3629 = vmul.f32 %v3149, 0.75
        %v3630 = vmul.f32 %v3150, 0.75
        %v3631 = vmul.f32 %v3151, 0.75
        %v3632 = vmul.f32 %v3152, 0.75
        %v3633 = vmul.f32 %v3153, 0.75
        %v3634 = vmul.f32 %v3154, 0.75
        %v3635 = vmul.f32 %v3155, 0.75
        %v3636 = vmul.f32 %v3156, 0.75
        %v3637 = vmul.f32 %v3157, 0.75
        %v3638 = vmul.f32 %v3158, 0.75
        %v3639 = vmul.f32 %v3159, 0.75
        %v3640 = vmul.f32 %v3160, 0.75
        %v3641 = vmul.f32 %v3161, 0.75
        %v3642 = vmul.f32 %v3162, 0.75
        %v3643 = vmul.f32 %v3163, 0.75
        %v3644 = vmul.f32 %v3164, 0.75
        %v3645 = vmul.f32 %v3165, 0.75
        %v3646 = vmul.f32 %v3166, 0.75
        %v3647 = vmul.f32 %v3167, 0.75
        %v3648 = vmul.f32 %v3168, 0.75
        %v3649 = vmul.f32 %v3169, 0.75
        %v3650 = vmul.f32 %v3170, 0.75
        %v3651 = vmul.f32 %v3171, 0.75
        %v3652 = vmul.f32 %v3172, 0.75
        %v3653 = vmul.f32 %v3173, 0.75
        %v3654 = vmul.f32 %v3174, 0.75
        %v3655 = vmul.f32 %v3175, 0.75
        %v3656 = vmul.f32 %v3176, 0.75
        %v3657 = vmul.f32 %v3177, 0.75
        %v3658 = vmul.f32 %v3178, 0.75
        %v3659 = vmul.f32 %v3179, 0.75
        %v3660 = vmul.f32 %v3180, 0.75
        %v3661 = vmul.f32 %v3181, 0.75
        %v3662 = vmul.f32 %v3182, 0.75
        %v3663 = vmul.f32 %v3183, 0.75
        %v3664 = vmul.f32 %v3184, 0.75
        %v3665 = vmul.f32 %v3185, 0.75
        %v3666 = vmul.f32 %v3186, 0.75
        %v3667 = vmul.f32 %v3187, 0.75
        %v3668 = vmul.f32 %v3188, 0.75
        %v3669 = vmul.f32 %v3189, 0.75
        %v3670 = vmul.f32 %v3190, 0.75
        %v3671 = vmul.f32 %v3191, 0.75
        %v3672 = vmul.f32 %v3192, 0.75
        %v3673 = vmul.f32 %v3193, 0.75
        %v3674 = vmul.f32 %v3194, 0.75
        %v3675 = vmul.f32 %v3195, 0.75
        %v3676 = vmul.f32 %v3196, 0.75
        %v3677 = vmul.f32 %v3197, 0.75
        %v3678 = vmul.f32 %v3198, 0.75
        %v3679 = vmul.f32 %v3199, 0.75
        %v3680 = vmul.f32 %v3200, 0.75
        %v3681 = vmul.f32 %v3201, 0.75
        %v3682 = vmul.f32 %v3202, 0.75
        %v3683 = vmul.f32 %v3203, 0.75
        %v3684 = vmul.f32 %v3204, 0.75
        %v3685 = vmul.f32 %v3205, 0.75
        %v3686 = vmul.f32 %v3206, 0.75
        %v3687 = vmul.f32 %v3207, 0.75
        %v3688 = vmul.f32 %v3208, 0.75
        %v3689 = vmul.f32 %v3209, 0.75
        %v3690 = vmul.f32 %v3210, 0.75
        %v3691 = vmul.f32 %v3211, 0.75
        %v3692 = vmul.f32 %v3212, 0.75
        %v3693 = vmul.f32 %v3213, 0.75
        %v3694 = vmul.f32 %v3214, 0.75
        %v3695 = vmul.f32 %v3215, 0.75
        %v3696 = vmul.f32 %v3216, 0.75
        %v3697 = vmul.f32 %v3217, 0.75
        %v3698 = vmul.f32 %v3218, 0.75
        %v3699 = vmul.f32 %v3219, 0.75
        %v3700 = vmul.f32 %v3220, 0.75
        %v3701 = vmul.f32 %v3221, 0.75
        %v3702 = vmul.f32 %v3222, 0.75
        %v3703 = vmul.f32 %v3223, 0.75
        %v3704 = vmul.f32 %v3224, 0.75
        %v3705 = vmul.f32 %v3225, 0.75
        %v3706 = vmul.f32 %v3226, 0.75
        %v3707 = vmul.f32 %v3227, 0.75
        %v3708 = vmul.f32 %v3228, 0.75
        %v3709 = vmul.f32 %v3229, 0.75
        %v3710 = vmul.f32 %v3230, 0.75
        %v3711 = vmul.f32 %v3231, 0.75
        %v3712 = vmul.f32 %v3232, 0.75
        %v3713 = vmul.f32 %v3233, 0.75
        %v3714 = vmul.f32 %v3234, 0.75
        %v3715 = vmul.f32 %v3235, 0.75
        %v3716 = vmul.f32 %v3236, 0.75
        %v3717 = vmul.f32 %v3237, 0.75
        %v3718 = vmul.f32 %v3238, 0.75
        %v3719 = vmul.f32 %v3239, 0.75
        %v3720 = vmul.f32 %v3240, 0.75
        %v3721 = vmul.f32 %v3241, 0.75
        %v3722 = vmul.f32 %v3242, 0.75
        %v3723 = vmul.f32 %v3243, 0.75
        %v3724 = vmul.f32 %v3244, 0.75
        %v3725 = vmul.f32 %v3245, 0.75
        %v3726 = vmul.f32 %v3246, 0.75
        %v3727 = vmul.f32 %v3247, 0.75
        %v3728 = vmul.f32 %v3248, 0.75
        %v3729 = vmul.f32 %v3249, 0.75
        %v3730 = vmul.f32 %v3250, 0.75
        %v3731 = vmul.f32 %v3251, 0.75
        %v3732 = vmul.f32 %v3252, 0.75
        %v3733 = vmul.f32 %v3253, 0.75
        %v3734 = vmul.f32 %v3254, 0.75
        %v3735 = vmul.f32 %v3255, 0.75
        %v3736 = vmul.f32 %v3256, 0.75
        %v3737 = vmul.f32 %v3257, 0.75
        %v3738 = vmul.f32 %v3258, 0.75
        %v3739 = vmul.f32 %v3259, 0.75
        %v3740 = vmul.f32 %v3260, 0.75
        %v3741 = vmul.f32 %v3261, 0.75
        %v3742 = vmul.f32 %v3262, 0.75
        %v3743 = vmul.f32 %v3263, 0.75
        %v3744 = vmul.f32 %v3264, 0.75
        %v3745 = vmul.f32 %v3265, 0.75
        %v3746 = vmul.f32 %v3266, 0.75
        %v3747 = vmul.f32 %v3267, 0.75
        %v3748 = vmul.f32 %v3268, 0.75
        %v3749 = vmul.f32 %v3269, 0.75
        %v3750 = vmul.f32 %v3270, 0.75
        %v3751 = vmul.f32 %v3271, 0.75
        %v3752 = vmul.f32 %v3272, 0.75
        %v3753 = vmul.f32 %v3273, 0.75
        %v3754 = vmul.f32 %v3274, 0.75
        %v3755 = vmul.f32 %v3275, 0.75
        %v3756 = vmul.f32 %v3276, 0.75
        %v3757 = vmul.f32 %v3277, 0.75
        %v3758 = vmul.f32 %v3278, 0.75
        %v3759 = vmul.f32 %v3279, 0.75
        %v3760 = vmul.f32 %v3280, 0.75
        %v3761 = vmul.f32 %v3281, 0.75
        %v3762 = vmul.f32 %v3282, 0.75
        %v3763 = vmul.f32 %v3283, 0.75
        %v3764 = vmul.f32 %v3284, 0.75
        %v3765 = vmul.f32 %v3285, 0.75
        %v3766 = vmul.f32 %v3286, 0.75
        %v3767 = vmul.f32 %v3287, 0.75
        %v3768 = vmul.f32 %v3288, 0.75
        %v3769 = vmul.f32 %v3289, 0.75
        %v3770 = vmul.f32 %v3290, 0.75
        %v3771 = vmul.f32 %v3291, 0.75
        %v3772 = vmul.f32 %v3292, 0.75
        %v3773 = vmul.f32 %v3293, 0.75
        %v3774 = vmul.f32 %v3294, 0.75
        %v3775 = vmul.f32 %v3295, 0.75
        %v3776 = vmul.f32 %v3296, 0.75
        %v3777 = vmul.f32 %v3297, 0.75
        %v3778 = vmul.f32 %v3298, 0.75
        %v3779 = vmul.f32 %v3299, 0.75
        %v3780 = vmul.f32 %v3300, 0.75
        %v3781 = vmul.f32 %v3301, 0.75
        %v3782 = vmul.f32 %v3302, 0.75
        %v3783 = vmul.f32 %v3303, 0.75
        %v3784 = vmul.f32 %v3304, 0.75
        %v3785 = vmul.f32 %v3305, 0.75
        %v3786 = vmul.f32 %v3306, 0.75
        %v3787 = vmul.f32 %v3307, 0.75
        %v3788 = vmul.f32 %v3308, 0.75
        %v3789 = vmul.f32 %v3309, 0.75
        %v3790 = vmul.f32 %v3310, 0.75
        %v3791 = vmul.f32 %v3311, 0.75
        %v3792 = vmul.f32 %v3312, 0.75
        %v3793 = vmul.f32 %v3313, 0.75
        %v3794 = vmul.f32 %v3314, 0.75
        %v3795 = vmul.f32 %v3315, 0.75
        %v3796 = vmul.f32 %v3316, 0.75
        %v3797 = vmul.f32 %v3317, 0.75
        %v3798 = vmul.f32 %v3318, 0.75
        %v3799 = vmul.f32 %v3319, 0.75
        %v3800 = vmul.f32 %v3320, 0.75
        %v3801 = vmul.f32 %v3321, 0.75
        %v3802 = vmul.f32 %v3322, 0.75
        %v3803 = vmul.f32 %v3323, 0.75
        %v3804 = vmul.f32 %v3324, 0.75
        %v3805 = vmul.f32 %v3325, 0.75
        %v3806 = vmul.f32 %v3326, 0.75
        %v3807 = vmul.f32 %v3327, 0.75
        %v3808 = vmul.f32 %v3328, 0.75
        %v3809 = vmul.f32 %v3329, 0.75
        %v3810 = vmul.f32 %v3330, 0.75
        %v3811 = vmul.f32 %v3331, 0.75
        %v3812 = vmul.f32 %v3332, 0.75
        %v3813 = vmul.f32 %v3333, 0.75
        %v3814 = vmul.f32 %v3334, 0.75
        %v3815 = vmul.f32 %v3335, 0.75
        %v3816 = vmul.f32 %v3336, 0.75
        %v3817 = vmul.f32 %v3337, 0.75
        %v3818 = vmul.f32 %v3338, 0.75
        %v3819 = vmul.f32 %v3339, 0.75
        %v3820 = vmul.f32 %v3340, 0.75
        %v3821 = vmul.f32 %v3341, 0.75
        %v3822 = vmul.f32 %v3342, 0.75
        %v3823 = vmul.f32 %v3343, 0.75
        %v3824 = vmul.f32 %v3344, 0.75
        %v3825 = vmul.f32 %v3345, 0.75
        %v3826 = vmul.f32 %v3346, 0.75
        %v3827 = vmul.f32 %v3347, 0.75
        %v3828 = vmul.f32 %v3348, 0.75
        %v3829 = vmul.f32 %v3349, 0.75
        %v3830 = vmul.f32 %v3350, 0.75
        %v3831 = vmul.f32 %v3351, 0.75
        %v3832 = vmul.f32 %v3352, 0.75
        %v3833 = vmul.f32 %v3353, 0.75
        %v3834 = vmul.f32 %v3354, 0.75
        %v3835 = vmul.f32 %v3355, 0.75
        %v3836 = vmul.f32 %v3356, 0.75
        %v3837 = vmul.f32 %v3357, 0.75
        %v3838 = vmul.f32 %v3358, 0.75
        %v3839 = vmul.f32 %v3359, 0.75
        %v3840 = vmul.f32 %v3360, 0.75
        %v3841 = vmul.f32 %v3361, 0.75
        %v3842 = vmul.f32 %v3362, 0.75
        %v3843 = vmul.f32 %v3363, 0.75
        %v3844 = vmul.f32 %v3364, 0.75
        %v3845 = vmul.f32 %v3365, 0.75
        %v3846 = vmul.f32 %v3366, 0.75
        %v3847 = vmul.f32 %v3367, 0.75
        %v3848 = vmul.f32 %v3368, 0.75
        %v3849 = vmul.f32 %v3369, 0.75
        %v3850 = vmul.f32 %v3370, 0.75
        %v3851 = vmul.f32 %v3371, 0.75
        %v3852 = vmul.f32 %v3372, 0.75
        %v3853 = vadd.f32 %v3373, %v3597
        %v3854 = vadd.f32 %v3374, %v3598
        %v3855 = vadd.f32 %v3375, %v3599
        %v3856 = vadd.f32 %v3376, %v3600
        %v3857 = vadd.f32 %v3377, %v3601
        %v3858 = vadd.f32 %v3378, %v3602
        %v3859 = vadd.f32 %v3379, %v3603
        %v3860 = vadd.f32 %v3380, %v3604
        %v3861 = vadd.f32 %v3373, %v3605
        %v3862 = vadd.f32 %v3374, %v3606
        %v3863 = vadd.f32 %v3375, %v3607
        %v3864 = vadd.f32 %v3376, %v3608
        %v3865 = vadd.f32 %v3377, %v3609
        %v3866 = vadd.f32 %v3378, %v3610
        %v3867 = vadd.f32 %v3379, %v3611
        %v3868 = vadd.f32 %v3380, %v3612
        %v3869 = vadd.f32 %v3381, %v3613
        %v3870 = vadd.f32 %v3382, %v3614
        %v3871 = vadd.f32 %v3383, %v3615
        %v3872 = vadd.f32 %v3384, %v3616
        %v3873 = vadd.f32 %v3385, %v3617
        %v3874 = vadd.f32 %v3386, %v3618
        %v3875 = vadd.f32 %v3387, %v3619
        %v3876 = vadd.f32 %v3388, %v3620
        %v3877 = vadd.f32 %v3389, %v3621
        %v3878 = vadd.f32 %v3390, %v3622
        %v3879 = vadd.f32 %v3391, %v3623
        %v3880 = vadd.f32 %v3392, %v3624
        %v3881 = vadd.f32 %v3393, %v3625
        %v3882 = vadd.f32 %v3394, %v3626
        %v3883 = vadd.f32 %v3395, %v3627
        %v3884 = vadd.f32 %v3396, %v3628
        %v3885 = vadd.f32 %v3397, %v3629
        %v3886 = vadd.f32 %v3398, %v3630
        %v3887 = vadd.f32 %v3399, %v3631
        %v3888 = vadd.f32 %v3400, %v3632
        %v3889 = vadd.f32 %v3401, %v3633
        %v3890 = vadd.f32 %v3402, %v3634
        %v3891 = vadd.f32 %v3403, %v3635
        %v3892 = vadd.f32 %v3404, %v3636
        %v3893 = vadd.f32 %v3405, %v3637
        %v3894 = vadd.f32 %v3406, %v3638
        %v3895 = vadd.f32 %v3407, %v3639
        %v3896 = vadd.f32 %v3408, %v3640
        %v3897 = vadd.f32 %v3409, %v3641
        %v3898 = vadd.f32 %v3410, %v3642
        %v3899 = vadd.f32 %v3411, %v3643
        %v3900 = vadd.f32 %v3412, %v3644
        %v3901 = vadd.f32 %v3413, %v3645
        %v3902 = vadd.f32 %v3414, %v3646
        %v3903 = vadd.f32 %v3415, %v3647
        %v3904 = vadd.f32 %v3416, %v3648
        %v3905 = vadd.f32 %v3417, %v3649
        %v3906 = vadd.f32 %v3418, %v3650
        %v3907 = vadd.f32 %v3419, %v3651
        %v3908 = vadd.f32 %v3420, %v3652
        %v3909 = vadd.f32 %v3421, %v3653
        %v3910 = vadd.f32 %v3422, %v3654
        %v3911 = vadd.f32 %v3423, %v3655
        %v3912 = vadd.f32 %v3424, %v3656
        %v3913 = vadd.f32 %v3425, %v3657
        %v3914 = vadd.f32 %v3426, %v3658
        %v3915 = vadd.f32 %v3427, %v3659
        %v3916 = vadd.f32 %v3428, %v3660
        %v3917 = vadd.f32 %v3429, %v3661
        %v3918 = vadd.f32 %v3430, %v3662
        %v3919 = vadd.f32 %v3431, %v3663
        %v3920 = vadd.f32 %v3432, %v3664
        %v3921 = vadd.f32 %v3433, %v3665
        %v3922 = vadd.f32 %v3434, %v3666
        %v3923 = vadd.f32 %v3435, %v3667
        %v3924 = vadd.f32 %v3436, %v3668
        %v3925 = vadd.f32 %v3429, %v3669
        %v3926 = vadd.f32 %v3430, %v3670
        %v3927 = vadd.f32 %v3431, %v3671
        %v3928 = vadd.f32 %v3432, %v3672
        %v3929 = vadd.f32 %v3433, %v3673
        %v3930 = vadd.f32 %v3434, %v3674
        %v3931 = vadd.f32 %v3435, %v3675
        %v3932 = vadd.f32 %v3436, %v3676
        %v3933 = vadd.f32 %v3437, %v3677
        %v3934 = vadd.f32 %v3438, %v3678
        %v3935 = vadd.f32 %v3439, %v3679
        %v3936 = vadd.f32 %v3440, %v3680
        %v3937 = vadd.f32 %v3441, %v3681
        %v3938 = vadd.f32 %v3442, %v3682
        %v3939 = vadd.f32 %v3443, %v3683
        %v3940 = vadd.f32 %v3444, %v3684
        %v3941 = vadd.f32 %v3445, %v3685
        %v3942 = vadd.f32 %v3446, %v3686
        %v3943 = vadd.f32 %v3447, %v3687
        %v3944 = vadd.f32 %v3448, %v3688
        %v3945 = vadd.f32 %v3449, %v3689
        %v3946 = vadd.f32 %v3450, %v3690
        %v3947 = vadd.f32 %v3451, %v3691
        %v3948 = vadd.f32 %v3452, %v3692
        %v3949 = vadd.f32 %v3453, %v3693
        %v3950 = vadd.f32 %v3454, %v3694
        %v3951 = vadd.f32 %v3455, %v3695
        %v3952 = vadd.f32 %v3456, %v3696
        %v3953 = vadd.f32 %v3457, %v3697
        %v3954 = vadd.f32 %v3458, %v3698
        %v3955 = vadd.f32 %v3459, %v3699
        %v3956 = vadd.f32 %v3460, %v3700
        %v3957 = vadd.f32 %v3461, %v3701
        %v3958 = vadd.f32 %v3462, %v3702
        %v3959 = vadd.f32 %v3463, %v3703
        %v3960 = vadd.f32 %v3464, %v3704
        %v3961 = vadd.f32 %v3465, %v3705
        %v3962 = vadd.f32 %v3466, %v3706
        %v3963 = vadd.f32 %v3467, %v3707
        %v3964 = vadd.f32 %v3468, %v3708
        %v3965 = vadd.f32 %v3469, %v3709
        %v3966 = vadd.f32 %v3470, %v3710
        %v3967 = vadd.f32 %v3471, %v3711
        %v3968 = vadd.f32 %v3472, %v3712
        %v3969 = vadd.f32 %v3473, %v3713
        %v3970 = vadd.f32 %v3474, %v3714
        %v3971 = vadd.f32 %v3475, %v3715
        %v3972 = vadd.f32 %v3476, %v3716
        %v3973 = vadd.f32 %v3477, %v3717
        %v3974 = vadd.f32 %v3478, %v3718
        %v3975 = vadd.f32 %v3479, %v3719
        %v3976 = vadd.f32 %v3480, %v3720
        %v3977 = vadd.f32 %v3481, %v3721
        %v3978 = vadd.f32 %v3482, %v3722
        %v3979 = vadd.f32 %v3483, %v3723
        %v3980 = vadd.f32 %v3484, %v3724
        %v3981 = vadd.f32 %v3485, %v3725
        %v3982 = vadd.f32 %v3486, %v3726
        %v3983 = vadd.f32 %v3487, %v3727
        %v3984 = vadd.f32 %v3488, %v3728
        %v3985 = vadd.f32 %v3489, %v3729
        %v3986 = vadd.f32 %v3490, %v3730
        %v3987 = vadd.f32 %v3491, %v3731
        %v3988 = vadd.f32 %v3492, %v3732
        %v3989 = vadd.f32 %v3485, %v3733
        %v3990 = vadd.f32 %v3486, %v3734
        %v3991 = vadd.f32 %v3487, %v3735
        %v3992 = vadd.f32 %v3488, %v3736
        %v3993 = vadd.f32 %v3489, %v3737
        %v3994 = vadd.f32 %v3490, %v3738
        %v3995 = vadd.f32 %v3491, %v3739
        %v3996 = vadd.f32 %v3492, %v3740
        %v3997 = vadd.f32 %v3493, %v3741
        %v3998 = vadd.f32 %v3494, %v3742
        %v3999 = vadd.f32 %v3495, %v3743
        %v4000 = vadd.f32 %v3496, %v3744
        %v4001 = vadd.f32 %v3497, %v3745
        %v4002 = vadd.f32 %v3498, %v3746
        %v4003 = vadd.f32 %v3499, %v3747
        %v4004 = vadd.f32 %v3500, %v3748
        %v4005 = vadd.f32 %v3501, %v3749
        %v4006 = vadd.f32 %v3502, %v3750
        %v4007 = vadd.f32 %v3503, %v3751
        %v4008 = vadd.f32 %v3504, %v3752
        %v4009 = vadd.f32 %v3505, %v3753
        %v4010 = vadd.f32 %v3506, %v3754
        %v4011 = vadd.f32 %v3507, %v3755
        %v4012 = vadd.f32 %v3508, %v3756
        %v4013 = vadd.f32 %v3509, %v3757
        %v4014 = vadd.f32 %v3510, %v3758
        %v4015 = vadd.f32 %v3511, %v3759
        %v4016 = vadd.f32 %v3512, %v3760
        %v4017 = vadd.f32 %v3513, %v3761
        %v4018 = vadd.f32 %v3514, %v3762
        %v4019 = vadd.f32 %v3515, %v3763
        %v4020 = vadd.f32 %v3516, %v3764
        %v4021 = vadd.f32 %v3517, %v3765
        %v4022 = vadd.f32 %v3518, %v3766
        %v4023 = vadd.f32 %v3519, %v3767
        %v4024 = vadd.f32 %v3520, %v3768
        %v4025 = vadd.f32 %v3521, %v3769
        %v4026 = vadd.f32 %v3522, %v3770
        %v4027 = vadd.f32 %v3523, %v3771
        %v4028 = vadd.f32 %v3524, %v3772
        %v4029 = vadd.f32 %v3525, %v3773
        %v4030 = vadd.f32 %v3526, %v3774
        %v4031 = vadd.f32 %v3527, %v3775
        %v4032 = vadd.f32 %v3528, %v3776
        %v4033 = vadd.f32 %v3529, %v3777
        %v4034 = vadd.f32 %v3530, %v3778
        %v4035 = vadd.f32 %v3531, %v3779
        %v4036 = vadd.f32 %v3532, %v3780
        %v4037 = vadd.f32 %v3533, %v3781
        %v4038 = vadd.f32 %v3534, %v3782
        %v4039 = vadd.f32 %v3535, %v3783
        %v4040 = vadd.f32 %v3536, %v3784
        %v4041 = vadd.f32 %v3537, %v3785
        %v4042 = vadd.f32 %v3538, %v3786
        %v4043 = vadd.f32 %v3539, %v3787
        %v4044 = vadd.f32 %v3540, %v3788
        %v4045 = vadd.f32 %v3541, %v3789
        %v4046 = vadd.f32 %v3542, %v3790
        %v4047 = vadd.f32 %v3543, %v3791
        %v4048 = vadd.f32 %v3544, %v3792
        %v4049 = vadd.f32 %v3545, %v3793
        %v4050 = vadd.f32 %v3546, %v3794
        %v4051 = vadd.f32 %v3547, %v3795
        %v4052 = vadd.f32 %v3548, %v3796
        %v4053 = vadd.f32 %v3541, %v3797
        %v4054 = vadd.f32 %v3542, %v3798
        %v4055 = vadd.f32 %v3543, %v3799
        %v4056 = vadd.f32 %v3544, %v3800
        %v4057 = vadd.f32 %v3545, %v3801
        %v4058 = vadd.f32 %v3546, %v3802
        %v4059 = vadd.f32 %v3547, %v3803
        %v4060 = vadd.f32 %v3548, %v3804
        %v4061 = vadd.f32 %v3549, %v3805
        %v4062 = vadd.f32 %v3550, %v3806
        %v4063 = vadd.f32 %v3551, %v3807
        %v4064 = vadd.f32 %v3552, %v3808
        %v4065 = vadd.f32 %v3553, %v3809
        %v4066 = vadd.f32 %v3554, %v3810
        %v4067 = vadd.f32 %v3555, %v3811
        %v4068 = vadd.f32 %v3556, %v3812
        %v4069 = vadd.f32 %v3557, %v3813
        %v4070 = vadd.f32 %v3558, %v3814
        %v4071 = vadd.f32 %v3559, %v3815
        %v4072 = vadd.f32 %v3560, %v3816
        %v4073 = vadd.f32 %v3561, %v3817
        %v4074 = vadd.f32 %v3562, %v3818
        %v4075 = vadd.f32 %v3563, %v3819
        %v4076 = vadd.f32 %v3564, %v3820
        %v4077 = vadd.f32 %v3565, %v3821
        %v4078 = vadd.f32 %v3566, %v3822
        %v4079 = vadd.f32 %v3567, %v3823
        %v4080 = vadd.f32 %v3568, %v3824
        %v4081 = vadd.f32 %v3569, %v3825
        %v4082 = vadd.f32 %v3570, %v3826
        %v4083 = vadd.f32 %v3571, %v3827
        %v4084 = vadd.f32 %v3572, %v3828
        %v4085 = vadd.f32 %v3573, %v3829
        %v4086 = vadd.f32 %v3574, %v3830
        %v4087 = vadd.f32 %v3575, %v3831
        %v4088 = vadd.f32 %v3576, %v3832
        %v4089 = vadd.f32 %v3577, %v3833
        %v4090 = vadd.f32 %v3578, %v3834
        %v4091 = vadd.f32 %v3579, %v3835
        %v4092 = vadd.f32 %v3580, %v3836
        %v4093 = vadd.f32 %v3581, %v3837
        %v4094 = vadd.f32 %v3582, %v3838
        %v4095 = vadd.f32 %v3583, %v3839
        %v4096 = vadd.f32 %v3584, %v3840
        %v4097 = vadd.f32 %v3585, %v3841
        %v4098 = vadd.f32 %v3586, %v3842
        %v4099 = vadd.f32 %v3587, %v3843
        %v4100 = vadd.f32 %v3588, %v3844
        %v4101 = vadd.f32 %v3589, %v3845
        %v4102 = vadd.f32 %v3590, %v3846
        %v4103 = vadd.f32 %v3591, %v3847
        %v4104 = vadd.f32 %v3592, %v3848
        %v4105 = vadd.f32 %v3593, %v3849
        %v4106 = vadd.f32 %v3594, %v3850
        %v4107 = vadd.f32 %v3595, %v3851
        %v4108 = vadd.f32 %v3596, %v3852
        %v4109 = vmul.f32 %v3173, 0.125
        %v4110 = vmul.f32 %v3174, 0.125
        %v4111 = vmul.f32 %v3175, 0.125
        %v4112 = vmul.f32 %v3176, 0.125
        %v4113 = vmul.f32 %v3177, 0.125
        %v4114 = vmul.f32 %v3178, 0.125
        %v4115 = vmul.f32 %v3179, 0.125
        %v4116 = vmul.f32 %v3180, 0.125
        %v4117 = vmul.f32 %v3237, 0.125
        %v4118 = vmul.f32 %v3238, 0.125
        %v4119 = vmul.f32 %v3239, 0.125
        %v4120 = vmul.f32 %v3240, 0.125
        %v4121 = vmul.f32 %v3241, 0.125
        %v4122 = vmul.f32 %v3242, 0.125
        %v4123 = vmul.f32 %v3243, 0.125
        %v4124 = vmul.f32 %v3244, 0.125
        %v4125 = vmul.f32 %v3301, 0.125
        %v4126 = vmul.f32 %v3302, 0.125
        %v4127 = vmul.f32 %v3303, 0.125
        %v4128 = vmul.f32 %v3304, 0.125
        %v4129 = vmul.f32 %v3305, 0.125
        %v4130 = vmul.f32 %v3306, 0.125
        %v4131 = vmul.f32 %v3307, 0.125
        %v4132 = vmul.f32 %v3308, 0.125
        %v4133 = vmul.f32 %v3365, 0.125
        %v4134 = vmul.f32 %v3366, 0.125
        %v4135 = vmul.f32 %v3367, 0.125
        %v4136 = vmul.f32 %v3368, 0.125
        %v4137 = vmul.f32 %v3369, 0.125
        %v4138 = vmul.f32 %v3370, 0.125
        %v4139 = vmul.f32 %v3371, 0.125
        %v4140 = vmul.f32 %v3372, 0.125
        %v4141 = vadd.f32 %v3853, %v3381
        %v4142 = vadd.f32 %v3854, %v3382
        %v4143 = vadd.f32 %v3855, %v3383
        %v4144 = vadd.f32 %v3856, %v3384
        %v4145 = vadd.f32 %v3857, %v3385
        %v4146 = vadd.f32 %v3858, %v3386
        %v4147 = vadd.f32 %v3859, %v3387
        %v4148 = vadd.f32 %v3860, %v3388
        %v4149 = vadd.f32 %v3861, %v3389
        %v4150 = vadd.f32 %v3862, %v3390
        %v4151 = vadd.f32 %v3863, %v3391
        %v4152 = vadd.f32 %v3864, %v3392
        %v4153 = vadd.f32 %v3865, %v3393
        %v4154 = vadd.f32 %v3866, %v3394
        %v4155 = vadd.f32 %v3867, %v3395
        %v4156 = vadd.f32 %v3868, %v3396
        %v4157 = vadd.f32 %v3869, %v3397
        %v4158 = vadd.f32 %v3870, %v3398
        %v4159 = vadd.f32 %v3871, %v3399
        %v4160 = vadd.f32 %v3872, %v3400
        %v4161 = vadd.f32 %v3873, %v3401
        %v4162 = vadd.f32 %v3874, %v3402
        %v4163 = vadd.f32 %v3875, %v3403
        %v4164 = vadd.f32 %v3876, %v3404
        %v4165 = vadd.f32 %v3877, %v3405
        %v4166 = vadd.f32 %v3878, %v3406
        %v4167 = vadd.f32 %v3879, %v3407
        %v4168 = vadd.f32 %v3880, %v3408
        %v4169 = vadd.f32 %v3881, %v3409
        %v4170 = vadd.f32 %v3882, %v3410
        %v4171 = vadd.f32 %v3883, %v3411
        %v4172 = vadd.f32 %v3884, %v3412
        %v4173 = vadd.f32 %v3885, %v3413
        %v4174 = vadd.f32 %v3886, %v3414
        %v4175 = vadd.f32 %v3887, %v3415
        %v4176 = vadd.f32 %v3888, %v3416
        %v4177 = vadd.f32 %v3889, %v3417
        %v4178 = vadd.f32 %v3890, %v3418
        %v4179 = vadd.f32 %v3891, %v3419
        %v4180 = vadd.f32 %v3892, %v3420
        %v4181 = vadd.f32 %v3893, %v3421
        %v4182 = vadd.f32 %v3894, %v3422
        %v4183 = vadd.f32 %v3895, %v3423
        %v4184 = vadd.f32 %v3896, %v3424
        %v4185 = vadd.f32 %v3897, %v3425
        %v4186 = vadd.f32 %v3898, %v3426
        %v4187 = vadd.f32 %v3899, %v3427
        %v4188 = vadd.f32 %v3900, %v3428
        %v4189 = vadd.f32 %v3901, %v4109
        %v4190 = vadd.f32 %v3902, %v4110
        %v4191 = vadd.f32 %v3903, %v4111
        %v4192 = vadd.f32 %v3904, %v4112
        %v4193 = vadd.f32 %v3905, %v4113
        %v4194 = vadd.f32 %v3906, %v4114
        %v4195 = vadd.f32 %v3907, %v4115
        %v4196 = vadd.f32 %v3908, %v4116
        %v4197 = vadd.f32 %v3909, %v4109
        %v4198 = vadd.f32 %v3910, %v4110
        %v4199 = vadd.f32 %v3911, %v4111
        %v4200 = vadd.f32 %v3912, %v4112
        %v4201 = vadd.f32 %v3913, %v4113
        %v4202 = vadd.f32 %v3914, %v4114
        %v4203 = vadd.f32 %v3915, %v4115
        %v4204 = vadd.f32 %v3916, %v4116
        %v4205 = vadd.f32 %v3917, %v3437
        %v4206 = vadd.f32 %v3918, %v3438
        %v4207 = vadd.f32 %v3919, %v3439
        %v4208 = vadd.f32 %v3920, %v3440
        %v4209 = vadd.f32 %v3921, %v3441
        %v4210 = vadd.f32 %v3922, %v3442
        %v4211 = vadd.f32 %v3923, %v3443
        %v4212 = vadd.f32 %v3924, %v3444
        %v4213 = vadd.f32 %v3925, %v3445
        %v4214 = vadd.f32 %v3926, %v3446
        %v4215 = vadd.f32 %v3927, %v3447
        %v4216 = vadd.f32 %v3928, %v3448
        %v4217 = vadd.f32 %v3929, %v3449
        %v4218 = vadd.f32 %v3930, %v3450
        %v4219 = vadd.f32 %v3931, %v3451
        %v4220 = vadd.f32 %v3932, %v3452
        %v4221 = vadd.f32 %v3933, %v3453
        %v4222 = vadd.f32 %v3934, %v3454
        %v4223 = vadd.f32 %v3935, %v3455
        %v4224 = vadd.f32 %v3936, %v3456
        %v4225 = vadd.f32 %v3937, %v3457
        %v4226 = vadd.f32 %v3938, %v3458
        %v4227 = vadd.f32 %v3939, %v3459
        %v4228 = vadd.f32 %v3940, %v3460
        %v4229 = vadd.f32 %v3941, %v3461
        %v4230 = vadd.f32 %v3942, %v3462
        %v4231 = vadd.f32 %v3943, %v3463
        %v4232 = vadd.f32 %v3944, %v3464
        %v4233 = vadd.f32 %v3945, %v3465
        %v4234 = vadd.f32 %v3946, %v3466
        %v4235 = vadd.f32 %v3947, %v3467
        %v4236 = vadd.f32 %v3948, %v3468
        %v4237 = vadd.f32 %v3949, %v3469
        %v4238 = vadd.f32 %v3950, %v3470
        %v4239 = vadd.f32 %v3951, %v3471
        %v4240 = vadd.f32 %v3952, %v3472
        %v4241 = vadd.f32 %v3953, %v3473
        %v4242 = vadd.f32 %v3954, %v3474
        %v4243 = vadd.f32 %v3955, %v3475
        %v4244 = vadd.f32 %v3956, %v3476
        %v4245 = vadd.f32 %v3957, %v3477
        %v4246 = vadd.f32 %v3958, %v3478
        %v4247 = vadd.f32 %v3959, %v3479
        %v4248 = vadd.f32 %v3960, %v3480
        %v4249 = vadd.f32 %v3961, %v3481
        %v4250 = vadd.f32 %v3962, %v3482
        %v4251 = vadd.f32 %v3963, %v3483
        %v4252 = vadd.f32 %v3964, %v3484
        %v4253 = vadd.f32 %v3965, %v4117
        %v4254 = vadd.f32 %v3966, %v4118
        %v4255 = vadd.f32 %v3967, %v4119
        %v4256 = vadd.f32 %v3968, %v4120
        %v4257 = vadd.f32 %v3969, %v4121
        %v4258 = vadd.f32 %v3970, %v4122
        %v4259 = vadd.f32 %v3971, %v4123
        %v4260 = vadd.f32 %v3972, %v4124
        %v4261 = vadd.f32 %v3973, %v4117
        %v4262 = vadd.f32 %v3974, %v4118
        %v4263 = vadd.f32 %v3975, %v4119
        %v4264 = vadd.f32 %v3976, %v4120
        %v4265 = vadd.f32 %v3977, %v4121
        %v4266 = vadd.f32 %v3978, %v4122
        %v4267 = vadd.f32 %v3979, %v4123
        %v4268 = vadd.f32 %v3980, %v4124
        %v4269 = vadd.f32 %v3981, %v3493
        %v4270 = vadd.f32 %v3982, %v3494
        %v4271 = vadd.f32 %v3983, %v3495
        %v4272 = vadd.f32 %v3984, %v3496
        %v4273 = vadd.f32 %v3985, %v3497
        %v4274 = vadd.f32 %v3986, %v3498
        %v4275 = vadd.f32 %v3987, %v3499
        %v4276 = vadd.f32 %v3988, %v3500
        %v4277 = vadd.f32 %v3989, %v3501
        %v4278 = vadd.f32 %v3990, %v3502
        %v4279 = vadd.f32 %v3991, %v3503
        %v4280 = vadd.f32 %v3992, %v3504
        %v4281 = vadd.f32 %v3993, %v3505
        %v4282 = vadd.f32 %v3994, %v3506
        %v4283 = vadd.f32 %v3995, %v3507
        %v4284 = vadd.f32 %v3996, %v3508
        %v4285 = vadd.f32 %v3997, %v3509
        %v4286 = vadd.f32 %v3998, %v3510
        %v4287 = vadd.f32 %v3999, %v3511
        %v4288 = vadd.f32 %v4000, %v3512
        %v4289 = vadd.f32 %v4001, %v3513
        %v4290 = vadd.f32 %v4002, %v3514
        %v4291 = vadd.f32 %v4003, %v3515
        %v4292 = vadd.f32 %v4004, %v3516
        %v4293 = vadd.f32 %v4005, %v3517
        %v4294 = vadd.f32 %v4006, %v3518
        %v4295 = vadd.f32 %v4007, %v3519
        %v4296 = vadd.f32 %v4008, %v3520
        %v4297 = vadd.f32 %v4009, %v3521
        %v4298 = vadd.f32 %v4010, %v3522
        %v4299 = vadd.f32 %v4011, %v3523
        %v4300 = vadd.f32 %v4012, %v3524
        %v4301 = vadd.f32 %v4013, %v3525
        %v4302 = vadd.f32 %v4014, %v3526
        %v4303 = vadd.f32 %v4015, %v3527
        %v4304 = vadd.f32 %v4016, %v3528
        %v4305 = vadd.f32 %v4017, %v3529
        %v4306 = vadd.f32 %v4018, %v3530
        %v4307 = vadd.f32 %v4019, %v3531
        %v4308 = vadd.f32 %v4020, %v3532
        %v4309 = vadd.f32 %v4021, %v3533
        %v4310 = vadd.f32 %v4022, %v3534
        %v4311 = vadd.f32 %v4023, %v3535
        %v4312 = vadd.f32 %v4024, %v3536
        %v4313 = vadd.f32 %v4025, %v3537
        %v4314 = vadd.f32 %v4026, %v3538
        %v4315 = vadd.f32 %v4027, %v3539
        %v4316 = vadd.f32 %v4028, %v3540
        %v4317 = vadd.f32 %v4029, %v4125
        %v4318 = vadd.f32 %v4030, %v4126
        %v4319 = vadd.f32 %v4031, %v4127
        %v4320 = vadd.f32 %v4032, %v4128
        %v4321 = vadd.f32 %v4033, %v4129
        %v4322 = vadd.f32 %v4034, %v4130
        %v4323 = vadd.f32 %v4035, %v4131
        %v4324 = vadd.f32 %v4036, %v4132
        %v4325 = vadd.f32 %v4037, %v4125
        %v4326 = vadd.f32 %v4038, %v4126
        %v4327 = vadd.f32 %v4039, %v4127
        %v4328 = vadd.f32 %v4040, %v4128
        %v4329 = vadd.f32 %v4041, %v4129
        %v4330 = vadd.f32 %v4042, %v4130
        %v4331 = vadd.f32 %v4043, %v4131
        %v4332 = vadd.f32 %v4044, %v4132
        %v4333 = vadd.f32 %v4045, %v3549
        %v4334 = vadd.f32 %v4046, %v3550
        %v4335 = vadd.f32 %v4047, %v3551
        %v4336 = vadd.f32 %v4048, %v3552
        %v4337 = vadd.f32 %v4049, %v3553
        %v4338 = vadd.f32 %v4050, %v3554
        %v4339 = vadd.f32 %v4051, %v3555
        %v4340 = vadd.f32 %v4052, %v3556
        %v4341 = vadd.f32 %v4053, %v3557
        %v4342 = vadd.f32 %v4054, %v3558
        %v4343 = vadd.f32 %v4055, %v3559
        %v4344 = vadd.f32 %v4056, %v3560
        %v4345 = vadd.f32 %v4057, %v3561
        %v4346 = vadd.f32 %v4058, %v3562
        %v4347 = vadd.f32 %v4059, %v3563
        %v4348 = vadd.f32 %v4060, %v3564
        %v4349 = vadd.f32 %v4061, %v3565
        %v4350 = vadd.f32 %v4062, %v3566
        %v4351 = vadd.f32 %v4063, %v3567
        %v4352 = vadd.f32 %v4064, %v3568
        %v4353 = vadd.f32 %v4065, %v3569
        %v4354 = vadd.f32 %v4066, %v3570
        %v4355 = vadd.f32 %v4067, %v3571
        %v4356 = vadd.f32 %v4068, %v3572
        %v4357 = vadd.f32 %v4069, %v3573
        %v4358 = vadd.f32 %v4070, %v3574
        %v4359 = vadd.f32 %v4071, %v3575
        %v4360 = vadd.f32 %v4072, %v3576
        %v4361 = vadd.f32 %v4073, %v3577
        %v4362 = vadd.f32 %v4074, %v3578
        %v4363 = vadd.f32 %v4075, %v3579
        %v4364 = vadd.f32 %v4076, %v3580
        %v4365 = vadd.f32 %v4077, %v3581
        %v4366 = vadd.f32 %v4078, %v3582
        %v4367 = vadd.f32 %v4079, %v3583
        %v4368 = vadd.f32 %v4080, %v3584
        %v4369 = vadd.f32 %v4081, %v3585
        %v4370 = vadd.f32 %v4082, %v3586
        %v4371 = vadd.f32 %v4083, %v3587
        %v4372 = vadd.f32 %v4084, %v3588
        %v4373 = vadd.f32 %v4085, %v3589
        %v4374 = vadd.f32 %v4086, %v3590
        %v4375 = vadd.f32 %v4087, %v3591
        %v4376 = vadd.f32 %v4088, %v3592
        %v4377 = vadd.f32 %v4089, %v3593
        %v4378 = vadd.f32 %v4090, %v3594
        %v4379 = vadd.f32 %v4091, %v3595
        %v4380 = vadd.f32 %v4092, %v3596
        %v4381 = vadd.f32 %v4093, %v4133
        %v4382 = vadd.f32 %v4094, %v4134
        %v4383 = vadd.f32 %v4095, %v4135
        %v4384 = vadd.f32 %v4096, %v4136
        %v4385 = vadd.f32 %v4097, %v4137
        %v4386 = vadd.f32 %v4098, %v4138
        %v4387 = vadd.f32 %v4099, %v4139
        %v4388 = vadd.f32 %v4100, %v4140
        %v4389 = vadd.f32 %v4101, %v4133
        %v4390 = vadd.f32 %v4102, %v4134
        %v4391 = vadd.f32 %v4103, %v4135
        %v4392 = vadd.f32 %v4104, %v4136
        %v4393 = vadd.f32 %v4105, %v4137
        %v4394 = vadd.f32 %v4106, %v4138
        %v4395 = vadd.f32 %v4107, %v4139
        %v4396 = vadd.f32 %v4108, %v4140
        %v4397 = vadd.f32 %v3117, %v3125
        %v4398 = vadd.f32 %v3118, %v3126
        %v4399 = vadd.f32 %v3119, %v3127
        %v4400 = vadd.f32 %v3120, %v3128
        %v4401 = vadd.f32 %v3121, %v3129
        %v4402 = vadd.f32 %v3122, %v3130
        %v4403 = vadd.f32 %v3123, %v3131
        %v4404 = vadd.f32 %v3124, %v3132
        %v4405 = vadd.f32 %v3125, %v3133
        %v4406 = vadd.f32 %v3126, %v3134
        %v4407 = vadd.f32 %v3127, %v3135
        %v4408 = vadd.f32 %v3128, %v3136
        %v4409 = vadd.f32 %v3129, %v3137
        %v4410 = vadd.f32 %v3130, %v3138
        %v4411 = vadd.f32 %v3131, %v3139
        %v4412 = vadd.f32 %v3132, %v3140
        %v4413 = vadd.f32 %v3133, %v3141
        %v4414 = vadd.f32 %v3134, %v3142
        %v4415 = vadd.f32 %v3135, %v3143
        %v4416 = vadd.f32 %v3136, %v3144
        %v4417 = vadd.f32 %v3137, %v3145
        %v4418 = vadd.f32 %v3138, %v3146
        %v4419 = vadd.f32 %v3139, %v3147
        %v4420 = vadd.f32 %v3140, %v3148
        %v4421 = vadd.f32 %v3141, %v3149
        %v4422 = vadd.f32 %v3142, %v3150
        %v4423 = vadd.f32 %v3143, %v3151
        %v4424 = vadd.f32 %v3144, %v3152
        %v4425 = vadd.f32 %v3145, %v3153
        %v4426 = vadd.f32 %v3146, %v3154
        %v4427 = vadd.f32 %v3147, %v3155
        %v4428 = vadd.f32 %v3148, %v3156
        %v4429 = vadd.f32 %v3149, %v3157
        %v4430 = vadd.f32 %v3150, %v3158
        %v4431 = vadd.f32 %v3151, %v3159
        %v4432 = vadd.f32 %v3152, %v3160
        %v4433 = vadd.f32 %v3153, %v3161
        %v4434 = vadd.f32 %v3154, %v3162
        %v4435 = vadd.f32 %v3155, %v3163
        %v4436 = vadd.f32 %v3156, %v3164
        %v4437 = vadd.f32 %v3157, %v3165
        %v4438 = vadd.f32 %v3158, %v3166
        %v4439 = vadd.f32 %v3159, %v3167
        %v4440 = vadd.f32 %v3160, %v3168
        %v4441 = vadd.f32 %v3161, %v3169
        %v4442 = vadd.f32 %v3162, %v3170
        %v4443 = vadd.f32 %v3163, %v3171
        %v4444 = vadd.f32 %v3164, %v3172
        %v4445 = vadd.f32 %v3165, %v3173
        %v4446 = vadd.f32 %v3166, %v3174
        %v4447 = vadd.f32 %v3167, %v3175
        %v4448 = vadd.f32 %v3168, %v3176
        %v4449 = vadd.f32 %v3169, %v3177
        %v4450 = vadd.f32 %v3170, %v3178
        %v4451 = vadd.f32 %v3171, %v3179
        %v4452 = vadd.f32 %v3172, %v3180
        %v4453 = vadd.f32 %v3173, %v3173
        %v4454 = vadd.f32 %v3174, %v3174
        %v4455 = vadd.f32 %v3175, %v3175
        %v4456 = vadd.f32 %v3176, %v3176
        %v4457 = vadd.f32 %v3177, %v3177
        %v4458 = vadd.f32 %v3178, %v3178
        %v4459 = vadd.f32 %v3179, %v3179
        %v4460 = vadd.f32 %v3180, %v3180
        %v4461 = vadd.f32 %v3181, %v3189
        %v4462 = vadd.f32 %v3182, %v3190
        %v4463 = vadd.f32 %v3183, %v3191
        %v4464 = vadd.f32 %v3184, %v3192
        %v4465 = vadd.f32 %v3185, %v3193
        %v4466 = vadd.f32 %v3186, %v3194
        %v4467 = vadd.f32 %v3187, %v3195
        %v4468 = vadd.f32 %v3188, %v3196
        %v4469 = vadd.f32 %v3189, %v3197
        %v4470 = vadd.f32 %v3190, %v3198
        %v4471 = vadd.f32 %v3191, %v3199
        %v4472 = vadd.f32 %v3192, %v3200
        %v4473 = vadd.f32 %v3193, %v3201
        %v4474 = vadd.f32 %v3194, %v3202
        %v4475 = vadd.f32 %v3195, %v3203
        %v4476 = vadd.f32 %v3196, %v3204
        %v4477 = vadd.f32 %v3197, %v3205
        %v4478 = vadd.f32 %v3198, %v3206
        %v4479 = vadd.f32 %v3199, %v3207
        %v4480 = vadd.f32 %v3200, %v3208
        %v4481 = vadd.f32 %v3201, %v3209
        %v4482 = vadd.f32 %v3202, %v3210
        %v4483 = vadd.f32 %v3203, %v3211
        %v4484 = vadd.f32 %v3204, %v3212
        %v4485 = vadd.f32 %v3205, %v3213
        %v4486 = vadd.f32 %v3206, %v3214
        %v4487 = vadd.f32 %v3207, %v3215
        %v4488 = vadd.f32 %v3208, %v3216
        %v4489 = vadd.f32 %v3209, %v3217
        %v4490 = vadd.f32 %v3210, %v3218
        %v4491 = vadd.f32 %v3211, %v3219
        %v4492 = vadd.f32 %v3212, %v3220
        %v4493 = vadd.f32 %v3213, %v3221
        %v4494 = vadd.f32 %v3214, %v3222
        %v4495 = vadd.f32 %v3215, %v3223
        %v4496 = vadd.f32 %v3216, %v3224
        %v4497 = vadd.f32 %v3217, %v3225
        %v4498 = vadd.f32 %v3218, %v3226
        %v4499 = vadd.f32 %v3219, %v3227
        %v4500 = vadd.f32 %v3220, %v3228
        %v4501 = vadd.f32 %v3221, %v3229
        %v4502 = vadd.f32 %v3222, %v3230
        %v4503 = vadd.f32 %v3223, %v3231
        %v4504 = vadd.f32 %v3224, %v3232
        %v4505 = vadd.f32 %v3225, %v3233
        %v4506 = vadd.f32 %v3226, %v3234
        %v4507 = vadd.f32 %v3227, %v3235
        %v4508 = vadd.f32 %v3228, %v3236
        %v4509 = vadd.f32 %v3229, %v3237
        %v4510 = vadd.f32 %v3230, %v3238
        %v4511 = vadd.f32 %v3231, %v3239
        %v4512 = vadd.f32 %v3232, %v3240
        %v4513 = vadd.f32 %v3233, %v3241
        %v4514 = vadd.f32 %v3234, %v3242
        %v4515 = vadd.f32 %v3235, %v3243
        %v4516 = vadd.f32 %v3236, %v3244
        %v4517 = vadd.f32 %v3237, %v3237
        %v4518 = vadd.f32 %v3238, %v3238
        %v4519 = vadd.f32 %v3239, %v3239
        %v4520 = vadd.f32 %v3240, %v3240
        %v4521 = vadd.f32 %v3241, %v3241
        %v4522 = vadd.f32 %v3242, %v3242
        %v4523 = vadd.f32 %v3243, %v3243
        %v4524 = vadd.f32 %v3244, %v3244
        %v4525 = vadd.f32 %v3245, %v3253
        %v4526 = vadd.f32 %v3246, %v3254
        %v4527 = vadd.f32 %v3247, %v3255
        %v4528 = vadd.f32 %v3248, %v3256
        %v4529 = vadd.f32 %v3249, %v3257
        %v4530 = vadd.f32 %v3250, %v3258
        %v4531 = vadd.f32 %v3251, %v3259
        %v4532 = vadd.f32 %v3252, %v3260
        %v4533 = vadd.f32 %v3253, %v3261
        %v4534 = vadd.f32 %v3254, %v3262
        %v4535 = vadd.f32 %v3255, %v3263
        %v4536 = vadd.f32 %v3256, %v3264
        %v4537 = vadd.f32 %v3257, %v3265
        %v4538 = vadd.f32 %v3258, %v3266
        %v4539 = vadd.f32 %v3259, %v3267
        %v4540 = vadd.f32 %v3260, %v3268
        %v4541 = vadd.f32 %v3261, %v3269
        %v4542 = vadd.f32 %v3262, %v3270
        %v4543 = vadd.f32 %v3263, %v3271
        %v4544 = vadd.f32 %v3264, %v3272
        %v4545 = vadd.f32 %v3265, %v3273
        %v4546 = vadd.f32 %v3266, %v3274
        %v4547 = vadd.f32 %v3267, %v3275
        %v4548 = vadd.f32 %v3268, %v3276
        %v4549 = vadd.f32 %v3269, %v3277
        %v4550 = vadd.f32 %v3270, %v3278
        %v4551 = vadd.f32 %v3271, %v3279
        %v4552 = vadd.f32 %v3272, %v3280
        %v4553 = vadd.f32 %v3273, %v3281
        %v4554 = vadd.f32 %v3274, %v3282
        %v4555 = vadd.f32 %v3275, %v3283
        %v4556 = vadd.f32 %v3276, %v3284
        %v4557 = vadd.f32 %v3277, %v3285
        %v4558 = vadd.f32 %v3278, %v3286
        %v4559 = vadd.f32 %v3279, %v3287
        %v4560 = vadd.f32 %v3280, %v3288
        %v4561 = vadd.f32 %v3281, %v3289
        %v4562 = vadd.f32 %v3282, %v3290
        %v4563 = vadd.f32 %v3283, %v3291
        %v4564 = vadd.f32 %v3284, %v3292
        %v4565 = vadd.f32 %v3285, %v3293
        %v4566 = vadd.f32 %v3286, %v3294
        %v4567 = vadd.f32 %v3287, %v3295
        %v4568 = vadd.f32 %v3288, %v3296
        %v4569 = vadd.f32 %v3289, %v3297
        %v4570 = vadd.f32 %v3290, %v3298
        %v4571 = vadd.f32 %v3291, %v3299
        %v4572 = vadd.f32 %v3292, %v3300
        %v4573 = vadd.f32 %v3293, %v3301
        %v4574 = vadd.f32 %v3294, %v3302
        %v4575 = vadd.f32 %v3295, %v3303
        %v4576 = vadd.f32 %v3296, %v3304
        %v4577 = vadd.f32 %v3297, %v3305
        %v4578 = vadd.f32 %v3298, %v3306
        %v4579 = vadd.f32 %v3299, %v3307
        %v4580 = vadd.f32 %v3300, %v3308
        %v4581 = vadd.f32 %v3301, %v3301
        %v4582 = vadd.f32 %v3302, %v3302
        %v4583 = vadd.f32 %v3303, %v3303
        %v4584 = vadd.f32 %v3304, %v3304
        %v4585 = vadd.f32 %v3305, %v3305
        %v4586 = vadd.f32 %v3306, %v3306
        %v4587 = vadd.f32 %v3307, %v3307
        %v4588 = vadd.f32 %v3308, %v3308
        %v4589 = vadd.f32 %v3309, %v3317
        %v4590 = vadd.f32 %v3310, %v3318
        %v4591 = vadd.f32 %v3311, %v3319
        %v4592 = vadd.f32 %v3312, %v3320
        %v4593 = vadd.f32 %v3313, %v3321
        %v4594 = vadd.f32 %v3314, %v3322
        %v4595 = vadd.f32 %v3315, %v3323
        %v4596 = vadd.f32 %v3316, %v3324
        %v4597 = vadd.f32 %v3317, %v3325
        %v4598 = vadd.f32 %v3318, %v3326
        %v4599 = vadd.f32 %v3319, %v3327
        %v4600 = vadd.f32 %v3320, %v3328
        %v4601 = vadd.f32 %v3321, %v3329
        %v4602 = vadd.f32 %v3322, %v3330
        %v4603 = vadd.f32 %v3323, %v3331
        %v4604 = vadd.f32 %v3324, %v3332
        %v4605 = vadd.f32 %v3325, %v3333
        %v4606 = vadd.f32 %v3326, %v3334
        %v4607 = vadd.f32 %v3327, %v3335
        %v4608 = vadd.f32 %v3328, %v3336
        %v4609 = vadd.f32 %v3329, %v3337
        %v4610 = vadd.f32 %v3330, %v3338
        %v4611 = vadd.f32 %v3331, %v3339
        %v4612 = vadd.f32 %v3332, %v3340
        %v4613 = vadd.f32 %v3333, %v3341
        %v4614 = vadd.f32 %v3334, %v3342
        %v4615 = vadd.f32 %v3335, %v3343
        %v4616 = vadd.f32 %v3336, %v3344
        %v4617 = vadd.f32 %v3337, %v3345
        %v4618 = vadd.f32 %v3338, %v3346
        %v4619 = vadd.f32 %v3339, %v3347
        %v4620 = vadd.f32 %v3340, %v3348
        %v4621 = vadd.f32 %v3341, %v3349
        %v4622 = vadd.f32 %v3342, %v3350
        %v4623 = vadd.f32 %v3343, %v3351
        %v4624 = vadd.f32 %v3344, %v3352
        %v4625 = vadd.f32 %v3345, %v3353
        %v4626 = vadd.f32 %v3346, %v3354
        %v4627 = vadd.f32 %v3347, %v3355
        %v4628 = vadd.f32 %v3348, %v3356
        %v4629 = vadd.f32 %v3349, %v3357
        %v4630 = vadd.f32 %v3350, %v3358
        %v4631 = vadd.f32 %v3351, %v3359
        %v4632 = vadd.f32 %v3352, %v3360
        %v4633 = vadd.f32 %v3353, %v3361
        %v4634 = vadd.f32 %v3354, %v3362
        %v4635 = vadd.f32 %v3355, %v3363
        %v4636 = vadd.f32 %v3356, %v3364
        %v4637 = vadd.f32 %v3357, %v3365
        %v4638 = vadd.f32 %v3358, %v3366
        %v4639 = vadd.f32 %v3359, %v3367
        %v4640 = vadd.f32 %v3360, %v3368
        %v4641 = vadd.f32 %v3361, %v3369
        %v4642 = vadd.f32 %v3362, %v3370
        %v4643 = vadd.f32 %v3363, %v3371
        %v4644 = vadd.f32 %v3364, %v3372
        %v4645 = vadd.f32 %v3365, %v3365
        %v4646 = vadd.f32 %v3366, %v3366
        %v4647 = vadd.f32 %v3367, %v3367
        %v4648 = vadd.f32 %v3368, %v3368
        %v4649 = vadd.f32 %v3369, %v3369
        %v4650 = vadd.f32 %v3370, %v3370
        %v4651 = vadd.f32 %v3371, %v3371
        %v4652 = vadd.f32 %v3372, %v3372
        %v4653 = vmul.f32 %v4397, 0.5
        %v4654 = vmul.f32 %v4398, 0.5
        %v4655 = vmul.f32 %v4399, 0.5
        %v4656 = vmul.f32 %v4400, 0.5
        %v4657 = vmul.f32 %v4401, 0.5
        %v4658 = vmul.f32 %v4402, 0.5
        %v4659 = vmul.f32 %v4403, 0.5
        %v4660 = vmul.f32 %v4404, 0.5
        %v4661 = vmul.f32 %v4405, 0.5
        %v4662 = vmul.f32 %v4406, 0.5
        %v4663 = vmul.f32 %v4407, 0.5
        %v4664 = vmul.f32 %v4408, 0.5
        %v4665 = vmul.f32 %v4409, 0.5
        %v4666 = vmul.f32 %v4410, 0.5
        %v4667 = vmul.f32 %v4411, 0.5
        %v4668 = vmul.f32 %v4412, 0.5
        %v4669 = vmul.f32 %v4413, 0.5
        %v4670 = vmul.f32 %v4414, 0.5
        %v4671 = vmul.f32 %v4415, 0.5
        %v4672 = vmul.f32 %v4416, 0.5
        %v4673 = vmul.f32 %v4417, 0.5
        %v4674 = vmul.f32 %v4418, 0.5
        %v4675 = vmul.f32 %v4419, 0.5
        %v4676 = vmul.f32 %v4420, 0.5
        %v4677 = vmul.f32 %v4421, 0.5
        %v4678 = vmul.f32 %v4422, 0.5
        %v4679 = vmul.f32 %v4423, 0.5
        %v4680 = vmul.f32 %v4424, 0.5
        %v4681 = vmul.f32 %v4425, 0.5
        %v4682 = vmul.f32 %v4426, 0.5
        %v4683 = vmul.f32 %v4427, 0.5
        %v4684 = vmul.f32 %v4428, 0.5
        %v4685 = vmul.f32 %v4429, 0.5
        %v4686 = vmul.f32 %v4430, 0.5
        %v4687 = vmul.f32 %v4431, 0.5
        %v4688 = vmul.f32 %v4432, 0.5
        %v4689 = vmul.f32 %v4433, 0.5
        %v4690 = vmul.f32 %v4434, 0.5
        %v4691 = vmul.f32 %v4435, 0.5
        %v4692 = vmul.f32 %v4436, 0.5
        %v4693 = vmul.f32 %v4437, 0.5
        %v4694 = vmul.f32 %v4438, 0.5
        %v4695 = vmul.f32 %v4439, 0.5
        %v4696 = vmul.f32 %v4440, 0.5
        %v4697 = vmul.f32 %v4441, 0.5
        %v4698 = vmul.f32 %v4442, 0.5
        %v4699 = vmul.f32 %v4443, 0.5
        %v4700 = vmul.f32 %v4444, 0.5
        %v4701 = vmul.f32 %v4445, 0.5
        %v4702 = vmul.f32 %v4446, 0.5
        %v4703 = vmul.f32 %v4447, 0.5
        %v4704 = vmul.f32 %v4448, 0.5
        %v4705 = vmul.f32 %v4449, 0.5
        %v4706 = vmul.f32 %v4450, 0.5
        %v4707 = vmul.f32 %v4451, 0.5
        %v4708 = vmul.f32 %v4452, 0.5
        %v4709 = vmul.f32 %v4453, 0.5
        %v4710 = vmul.f32 %v4454, 0.5
        %v4711 = vmul.f32 %v4455, 0.5
        %v4712 = vmul.f32 %v4456, 0.5
        %v4713 = vmul.f32 %v4457, 0.5
        %v4714 = vmul.f32 %v4458, 0.5
        %v4715 = vmul.f32 %v4459, 0.5
        %v4716 = vmul.f32 %v4460, 0.5
        %v4717 = vmul.f32 %v4461, 0.5
        %v4718 = vmul.f32 %v4462, 0.5
        %v4719 = vmul.f32 %v4463, 0.5
        %v4720 = vmul.f32 %v4464, 0.5
        %v4721 = vmul.f32 %v4465, 0.5
        %v4722 = vmul.f32 %v4466, 0.5
        %v4723 = vmul.f32 %v4467, 0.5
        %v4724 = vmul.f32 %v4468, 0.5
        %v4725 = vmul.f32 %v4469, 0.5
        %v4726 = vmul.f32 %v4470, 0.5
        %v4727 = vmul.f32 %v4471, 0.5
        %v4728 = vmul.f32 %v4472, 0.5
        %v4729 = vmul.f32 %v4473, 0.5
        %v4730 = vmul.f32 %v4474, 0.5
        %v4731 = vmul.f32 %v4475, 0.5
        %v4732 = vmul.f32 %v4476, 0.5
        %v4733 = vmul.f32 %v4477, 0.5
        %v4734 = vmul.f32 %v4478, 0.5
        %v4735 = vmul.f32 %v4479, 0.5
        %v4736 = vmul.f32 %v4480, 0.5
        %v4737 = vmul.f32 %v4481, 0.5
        %v4738 = vmul.f32 %v4482, 0.5
        %v4739 = vmul.f32 %v4483, 0.5
        %v4740 = vmul.f32 %v4484, 0.5
        %v4741 = vmul.f32 %v4485, 0.5
        %v4742 = vmul.f32 %v4486, 0.5
        %v4743 = vmul.f32 %v4487, 0.5
        %v4744 = vmul.f32 %v4488, 0.5
        %v4745 = vmul.f32 %v4489, 0.5
        %v4746 = vmul.f32 %v4490, 0.5
        %v4747 = vmul.f32 %v4491, 0.5
        %v4748 = vmul.f32 %v4492, 0.5
        %v4749 = vmul.f32 %v4493, 0.5
        %v4750 = vmul.f32 %v4494, 0.5
        %v4751 = vmul.f32 %v4495, 0.5
        %v4752 = vmul.f32 %v4496, 0.5
        %v4753 = vmul.f32 %v4497, 0.5
        %v4754 = vmul.f32 %v4498, 0.5
        %v4755 = vmul.f32 %v4499, 0.5
        %v4756 = vmul.f32 %v4500, 0.5
        %v4757 = vmul.f32 %v4501, 0.5
        %v4758 = vmul.f32 %v4502, 0.5
        %v4759 = vmul.f32 %v4503, 0.5
        %v4760 = vmul.f32 %v4504, 0.5
        %v4761 = vmul.f32 %v4505, 0.5
        %v4762 = vmul.f32 %v4506, 0.5
        %v4763 = vmul.f32 %v4507, 0.5
        %v4764 = vmul.f32 %v4508, 0.5
        %v4765 = vmul.f32 %v4509, 0.5
        %v4766 = vmul.f32 %v4510, 0.5
        %v4767 = vmul.f32 %v4511, 0.5
        %v4768 = vmul.f32 %v4512, 0.5
        %v4769 = vmul.f32 %v4513, 0.5
        %v4770 = vmul.f32 %v4514, 0.5
        %v4771 = vmul.f32 %v4515, 0.5
        %v4772 = vmul.f32 %v4516, 0.5
        %v4773 = vmul.f32 %v4517, 0.5
        %v4774 = vmul.f32 %v4518, 0.5
        %v4775 = vmul.f32 %v4519, 0.5
        %v4776 = vmul.f32 %v4520, 0.5
        %v4777 = vmul.f32 %v4521, 0.5
        %v4778 = vmul.f32 %v4522, 0.5
        %v4779 = vmul.f32 %v4523, 0.5
        %v4780 = vmul.f32 %v4524, 0.5
        %v4781 = vmul.f32 %v4525, 0.5
        %v4782 = vmul.f32 %v4526, 0.5
        %v4783 = vmul.f32 %v4527, 0.5
        %v4784 = vmul.f32 %v4528, 0.5
        %v4785 = vmul.f32 %v4529, 0.5
        %v4786 = vmul.f32 %v4530, 0.5
        %v4787 = vmul.f32 %v4531, 0.5
        %v4788 = vmul.f32 %v4532, 0.5
        %v4789 = vmul.f32 %v4533, 0.5
        %v4790 = vmul.f32 %v4534, 0.5
        %v4791 = vmul.f32 %v4535, 0.5
        %v4792 = vmul.f32 %v4536, 0.5
        %v4793 = vmul.f32 %v4537, 0.5
        %v4794 = vmul.f32 %v4538, 0.5
        %v4795 = vmul.f32 %v4539, 0.5
        %v4796 = vmul.f32 %v4540, 0.5
        %v4797 = vmul.f32 %v4541, 0.5
        %v4798 = vmul.f32 %v4542, 0.5
        %v4799 = vmul.f32 %v4543, 0.5
        %v4800 = vmul.f32 %v4544, 0.5
        %v4801 = vmul.f32 %v4545, 0.5
        %v4802 = vmul.f32 %v4546, 0.5
        %v4803 = vmul.f32 %v4547, 0.5
        %v4804 = vmul.f32 %v4548, 0.5
        %v4805 = vmul.f32 %v4549, 0.5
        %v4806 = vmul.f32 %v4550, 0.5
        %v4807 = vmul.f32 %v4551, 0.5
        %v4808 = vmul.f32 %v4552, 0.5
        %v4809 = vmul.f32 %v4553, 0.5
        %v4810 = vmul.f32 %v4554, 0.5
        %v4811 = vmul.f32 %v4555, 0.5
        %v4812 = vmul.f32 %v4556, 0.5
        %v4813 = vmul.f32 %v4557, 0.5
        %v4814 = vmul.f32 %v4558, 0.5
        %v4815 = vmul.f32 %v4559, 0.5
        %v4816 = vmul.f32 %v4560, 0.5
        %v4817 = vmul.f32 %v4561, 0.5
        %v4818 = vmul.f32 %v4562, 0.5
        %v4819 = vmul.f32 %v4563, 0.5
        %v4820 = vmul.f32 %v4564, 0.5
        %v4821 = vmul.f32 %v4565, 0.5
        %v4822 = vmul.f32 %v4566, 0.5
        %v4823 = vmul.f32 %v4567, 0.5
        %v4824 = vmul.f32 %v4568, 0.5
        %v4825 = vmul.f32 %v4569, 0.5
        %v4826 = vmul.f32 %v4570, 0.5
        %v4827 = vmul.f32 %v4571, 0.5
        %v4828 = vmul.f32 %v4572, 0.5
        %v4829 = vmul.f32 %v4573, 0.5
        %v4830 = vmul.f32 %v4574, 0.5
        %v4831 = vmul.f32 %v4575, 0.5
        %v4832 = vmul.f32 %v4576, 0.5
        %v4833 = vmul.f32 %v4577, 0.5
        %v4834 = vmul.f32 %v4578, 0.5
        %v4835 = vmul.f32 %v4579, 0.5
        %v4836 = vmul.f32 %v4580, 0.5
        %v4837 = vmul.f32 %v4581, 0.5
        %v4838 = vmul.f32 %v4582, 0.5
        %v4839 = vmul.f32 %v4583, 0.5
        %v4840 = vmul.f32 %v4584, 0.5
        %v4841 = vmul.f32 %v4585, 0.5
        %v4842 = vmul.f32 %v4586, 0.5
        %v4843 = vmul.f32 %v4587, 0.5
        %v4844 = vmul.f32 %v4588, 0.5
        %v4845 = vmul.f32 %v4589, 0.5
        %v4846 = vmul.f32 %v4590, 0.5
        %v4847 = vmul.f32 %v4591, 0.5
        %v4848 = vmul.f32 %v4592, 0.5
        %v4849 = vmul.f32 %v4593, 0.5
        %v4850 = vmul.f32 %v4594, 0.5
        %v4851 = vmul.f32 %v4595, 0.5
        %v4852 = vmul.f32 %v4596, 0.5
        %v4853 = vmul.f32 %v4597, 0.5
        %v4854 = vmul.f32 %v4598, 0.5
        %v4855 = vmul.f32 %v4599, 0.5
        %v4856 = vmul.f32 %v4600, 0.5
        %v4857 = vmul.f32 %v4601, 0.5
        %v4858 = vmul.f32 %v4602, 0.5
        %v4859 = vmul.f32 %v4603, 0.5
        %v4860 = vmul.f32 %v4604, 0.5
        %v4861 = vmul.f32 %v4605, 0.5
        %v4862 = vmul.f32 %v4606, 0.5
        %v4863 = vmul.f32 %v4607, 0.5
        %v4864 = vmul.f32 %v4608, 0.5
        %v4865 = vmul.f32 %v4609, 0.5
        %v4866 = vmul.f32 %v4610, 0.5
        %v4867 = vmul.f32 %v4611, 0.5
        %v4868 = vmul.f32 %v4612, 0.5
        %v4869 = vmul.f32 %v4613, 0.5
        %v4870 = vmul.f32 %v4614, 0.5
        %v4871 = vmul.f32 %v4615, 0.5
        %v4872 = vmul.f32 %v4616, 0.5
        %v4873 = vmul.f32 %v4617, 0.5
        %v4874 = vmul.f32 %v4618, 0.5
        %v4875 = vmul.f32 %v4619, 0.5
        %v4876 = vmul.f32 %v4620, 0.5
        %v4877 = vmul.f32 %v4621, 0.5
        %v4878 = vmul.f32 %v4622, 0.5
        %v4879 = vmul.f32 %v4623, 0.5
        %v4880 = vmul.f32 %v4624, 0.5
        %v4881 = vmul.f32 %v4625, 0.5
        %v4882 = vmul.f32 %v4626, 0.5
        %v4883 = vmul.f32 %v4627, 0.5
        %v4884 = vmul.f32 %v4628, 0.5
        %v4885 = vmul.f32 %v4629, 0.5
        %v4886 = vmul.f32 %v4630, 0.5
        %v4887 = vmul.f32 %v4631, 0.5
        %v4888 = vmul.f32 %v4632, 0.5
        %v4889 = vmul.f32 %v4633, 0.5
        %v4890 = vmul.f32 %v4634, 0.5
        %v4891 = vmul.f32 %v4635, 0.5
        %v4892 = vmul.f32 %v4636, 0.5
        %v4893 = vmul.f32 %v4637, 0.5
        %v4894 = vmul.f32 %v4638, 0.5
        %v4895 = vmul.f32 %v4639, 0.5
        %v4896 = vmul.f32 %v4640, 0.5
        %v4897 = vmul.f32 %v4641, 0.5
        %v4898 = vmul.f32 %v4642, 0.5
        %v4899 = vmul.f32 %v4643, 0.5
        %v4900 = vmul.f32 %v4644, 0.5
        %v4901 = vmul.f32 %v4645, 0.5
        %v4902 = vmul.f32 %v4646, 0.5
        %v4903 = vmul.f32 %v4647, 0.5
        %v4904 = vmul.f32 %v4648, 0.5
        %v4905 = vmul.f32 %v4649, 0.5
        %v4906 = vmul.f32 %v4650, 0.5
        %v4907 = vmul.f32 %v4651, 0.5
        %v4908 = vmul.f32 %v4652, 0.5
        %5421 = vst [vmem:[#allocation1] ss:$4 sm:$0xff] %v4141
        %s5422 = scalar_lea.vmem [#allocation1], 1
        %5423 = vst [vmem:[%s5422] ss:$4 sm:$0xff] %v4142
        %s5424 = scalar_lea.vmem [#allocation1], 2
        %5425 = vst [vmem:[%s5424] ss:$4 sm:$0xff] %v4143
        %s5426 = scalar_lea.vmem [#allocation1], 3
        %5427 = vst [vmem:[%s5426] ss:$4 sm:$0xff] %v4144
        %s5428 = scalar_lea.vmem [#allocation1], 32
        %5429 = vst [vmem:[%s5428] ss:$4 sm:$0xff] %v4145
        %s5430 = scalar_lea.vmem [#allocation1], 33
        %5431 = vst [vmem:[%s5430] ss:$4 sm:$0xff] %v4146
        %s5432 = scalar_lea.vmem [#allocation1], 34
        %5433 = vst [vmem:[%s5432] ss:$4 sm:$0xff] %v4147
        %s5434 = scalar_lea.vmem [#allocation1], 35
        %5435 = vst [vmem:[%s5434] ss:$4 sm:$0xff] %v4148
        %v5436 = vld.sshfl [vmem:[#allocation1] sm:$0xff pattern:$0x73625140]
        %v5437 = vld.sshfl [vmem:[#allocation1 + $0x20] sm:$0xff pattern:$0x73625140]
        %5438 = vst [vmem:[#allocation1] ss:$4 sm:$0xff] %v4653
        %5439 = vst [vmem:[%s5422] ss:$4 sm:$0xff] %v4654
        %5440 = vst [vmem:[%s5424] ss:$4 sm:$0xff] %v4655
        %5441 = vst [vmem:[%s5426] ss:$4 sm:$0xff] %v4656
        %5442 = vst [vmem:[%s5428] ss:$4 sm:$0xff] %v4657
        %5443 = vst [vmem:[%s5430] ss:$4 sm:$0xff] %v4658
        %5444 = vst [vmem:[%s5432] ss:$4 sm:$0xff] %v4659
        %5445 = vst [vmem:[%s5434] ss:$4 sm:$0xff] %v4660
        %v5446 = vld.sshfl [vmem:[#allocation1] sm:$0xff pattern:$0x73625140]
        %v5447 = vld.sshfl [vmem:[#allocation1 + $0x20] sm:$0xff pattern:$0x73625140]
        %5448 = vst [vmem:[#allocation1] ss:$4 sm:$0xff] %v4149
        %5449 = vst [vmem:[%s5422] ss:$4 sm:$0xff] %v4150
        %5450 = vst [vmem:[%s5424] ss:$4 sm:$0xff] %v4151
        %5451 = vst [vmem:[%s5426] ss:$4 sm:$0xff] %v4152
        %5452 = vst [vmem:[%s5428] ss:$4 sm:$0xff] %v4153
        %5453 = vst [vmem:[%s5430] ss:$4 sm:$0xff] %v4154
        %5454 = vst [vmem:[%s5432] ss:$4 sm:$0xff] %v4155
        %5455 = vst [vmem:[%s5434] ss:$4 sm:$0xff] %v4156
        %v5456 = vld.sshfl [vmem:[#allocation1] sm:$0xff pattern:$0x73625140]
        %v5457 = vld.sshfl [vmem:[#allocation1 + $0x20] sm:$0xff pattern:$0x73625140]
        %5458 = vst [vmem:[#allocation1] ss:$4 sm:$0xff] %v4661
        %5459 = vst [vmem:[%s5422] ss:$4 sm:$0xff] %v4662
        %5460 = vst [vmem:[%s5424] ss:$4 sm:$0xff] %v4663
        %5461 = vst [vmem:[%s5426] ss:$4 sm:$0xff] %v4664
        %5462 = vst [vmem:[%s5428] ss:$4 sm:$0xff] %v4665
        %5463 = vst [vmem:[%s5430] ss:$4 sm:$0xff] %v4666
        %5464 = vst [vmem:[%s5432] ss:$4 sm:$0xff] %v4667
        %5465 = vst [vmem:[%s5434] ss:$4 sm:$0xff] %v4668
        %v5466 = vld.sshfl [vmem:[#allocation1] sm:$0xff pattern:$0x73625140]
        %v5467 = vld.sshfl [vmem:[#allocation1 + $0x20] sm:$0xff pattern:$0x73625140]
        %5468 = vst [vmem:[#allocation1] ss:$4 sm:$0xff] %v4157
        %5469 = vst [vmem:[%s5422] ss:$4 sm:$0xff] %v4158
        %5470 = vst [vmem:[%s5424] ss:$4 sm:$0xff] %v4159
        %5471 = vst [vmem:[%s5426] ss:$4 sm:$0xff] %v4160
        %5472 = vst [vmem:[%s5428] ss:$4 sm:$0xff] %v4161
        %5473 = vst [vmem:[%s5430] ss:$4 sm:$0xff] %v4162
        %5474 = vst [vmem:[%s5432] ss:$4 sm:$0xff] %v4163
        %5475 = vst [vmem:[%s5434] ss:$4 sm:$0xff] %v4164
        %v5476 = vld.sshfl [vmem:[#allocation1] sm:$0xff pattern:$0x73625140]
        %v5477 = vld.sshfl [vmem:[#allocation1 + $0x20] sm:$0xff pattern:$0x73625140]
        %5478 = vst [vmem:[#allocation1] ss:$4 sm:$0xff] %v4669
        %5479 = vst [vmem:[%s5422] ss:$4 sm:$0xff] %v4670
        %5480 = vst [vmem:[%s5424] ss:$4 sm:$0xff] %v4671
        %5481 = vst [vmem:[%s5426] ss:$4 sm:$0xff] %v4672
        %5482 = vst [vmem:[%s5428] ss:$4 sm:$0xff] %v4673
        %5483 = vst [vmem:[%s5430] ss:$4 sm:$0xff] %v4674
        %5484 = vst [vmem:[%s5432] ss:$4 sm:$0xff] %v4675
        %5485 = vst [vmem:[%s5434] ss:$4 sm:$0xff] %v4676
        %v5486 = vld.sshfl [vmem:[#allocation1] sm:$0xff pattern:$0x73625140]
        %v5487 = vld.sshfl [vmem:[#allocation1 + $0x20] sm:$0xff pattern:$0x73625140]
        %5488 = vst [vmem:[#allocation1] ss:$4 sm:$0xff] %v4165
        %5489 = vst [vmem:[%s5422] ss:$4 sm:$0xff] %v4166
        %5490 = vst [vmem:[%s5424] ss:$4 sm:$0xff] %v4167
        %5491 = vst [vmem:[%s5426] ss:$4 sm:$0xff] %v4168
        %5492 = vst [vmem:[%s5428] ss:$4 sm:$0xff] %v4169
        %5493 = vst [vmem:[%s5430] ss:$4 sm:$0xff] %v4170
        %5494 = vst [vmem:[%s5432] ss:$4 sm:$0xff] %v4171
        %5495 = vst [vmem:[%s5434] ss:$4 sm:$0xff] %v4172
        %v5496 = vld.sshfl [vmem:[#allocation1] sm:$0xff pattern:$0x73625140]
        %v5497 = vld.sshfl [vmem:[#allocation1 + $0x20] sm:$0xff pattern:$0x73625140]
        %5498 = vst [vmem:[#allocation1] ss:$4 sm:$0xff] %v4677
        %5499 = vst [vmem:[%s5422] ss:$4 sm:$0xff] %v4678
        %5500 = vst [vmem:[%s5424] ss:$4 sm:$0xff] %v4679
        %5501 = vst [vmem:[%s5426] ss:$4 sm:$0xff] %v4680
        %5502 = vst [vmem:[%s5428] ss:$4 sm:$0xff] %v4681
        %5503 = vst [vmem:[%s5430] ss:$4 sm:$0xff] %v4682
        %5504 = vst [vmem:[%s5432] ss:$4 sm:$0xff] %v4683
        %5505 = vst [vmem:[%s5434] ss:$4 sm:$0xff] %v4684
        %v5506 = vld.sshfl [vmem:[#allocation1] sm:$0xff pattern:$0x73625140]
        %v5507 = vld.sshfl [vmem:[#allocation1 + $0x20] sm:$0xff pattern:$0x73625140]
        %5508 = vst [vmem:[#allocation1] ss:$4 sm:$0xff] %v4173
        %5509 = vst [vmem:[%s5422] ss:$4 sm:$0xff] %v4174
        %5510 = vst [vmem:[%s5424] ss:$4 sm:$0xff] %v4175
        %5511 = vst [vmem:[%s5426] ss:$4 sm:$0xff] %v4176
        %5512 = vst [vmem:[%s5428] ss:$4 sm:$0xff] %v4177
        %5513 = vst [vmem:[%s5430] ss:$4 sm:$0xff] %v4178
        %5514 = vst [vmem:[%s5432] ss:$4 sm:$0xff] %v4179
        %5515 = vst [vmem:[%s5434] ss:$4 sm:$0xff] %v4180
        %v5516 = vld.sshfl [vmem:[#allocation1] sm:$0xff pattern:$0x73625140]
        %v5517 = vld.sshfl [vmem:[#allocation1 + $0x20] sm:$0xff pattern:$0x73625140]
        %5518 = vst [vmem:[#allocation1] ss:$4 sm:$0xff] %v4685
        %5519 = vst [vmem:[%s5422] ss:$4 sm:$0xff] %v4686
        %5520 = vst [vmem:[%s5424] ss:$4 sm:$0xff] %v4687
        %5521 = vst [vmem:[%s5426] ss:$4 sm:$0xff] %v4688
        %5522 = vst [vmem:[%s5428] ss:$4 sm:$0xff] %v4689
        %5523 = vst [vmem:[%s5430] ss:$4 sm:$0xff] %v4690
        %5524 = vst [vmem:[%s5432] ss:$4 sm:$0xff] %v4691
        %5525 = vst [vmem:[%s5434] ss:$4 sm:$0xff] %v4692
        %v5526 = vld.sshfl [vmem:[#allocation1] sm:$0xff pattern:$0x73625140]
        %v5527 = vld.sshfl [vmem:[#allocation1 + $0x20] sm:$0xff pattern:$0x73625140]
        %5528 = vst [vmem:[#allocation1] ss:$4 sm:$0xff] %v4181
        %5529 = vst [vmem:[%s5422] ss:$4 sm:$0xff] %v4182
        %5530 = vst [vmem:[%s5424] ss:$4 sm:$0xff] %v4183
        %5531 = vst [vmem:[%s5426] ss:$4 sm:$0xff] %v4184
        %5532 = vst [vmem:[%s5428] ss:$4 sm:$0xff] %v4185
        %5533 = vst [vmem:[%s5430] ss:$4 sm:$0xff] %v4186
        %5534 = vst [vmem:[%s5432] ss:$4 sm:$0xff] %v4187
        %5535 = vst [vmem:[%s5434] ss:$4 sm:$0xff] %v4188
        %v5536 = vld.sshfl [vmem:[#allocation1] sm:$0xff pattern:$0x73625140]
        %v5537 = vld.sshfl [vmem:[#allocation1 + $0x20] sm:$0xff pattern:$0x73625140]
        %5538 = vst [vmem:[#allocation1] ss:$4 sm:$0xff] %v4693
        %5539 = vst [vmem:[%s5422] ss:$4 sm:$0xff] %v4694
        %5540 = vst [vmem:[%s5424] ss:$4 sm:$0xff] %v4695
        %5541 = vst [vmem:[%s5426] ss:$4 sm:$0xff] %v4696
        %5542 = vst [vmem:[%s5428] ss:$4 sm:$0xff] %v4697
        %5543 = vst [vmem:[%s5430] ss:$4 sm:$0xff] %v4698
        %5544 = vst [vmem:[%s5432] ss:$4 sm:$0xff] %v4699
        %5545 = vst [vmem:[%s5434] ss:$4 sm:$0xff] %v4700
        %v5546 = vld.sshfl [vmem:[#allocation1] sm:$0xff pattern:$0x73625140]
        %v5547 = vld.sshfl [vmem:[#allocation1 + $0x20] sm:$0xff pattern:$0x73625140]
        %5548 = vst [vmem:[#allocation1] ss:$4 sm:$0xff] %v4189
        %5549 = vst [vmem:[%s5422] ss:$4 sm:$0xff] %v4190
        %5550 = vst [vmem:[%s5424] ss:$4 sm:$0xff] %v4191
        %5551 = vst [vmem:[%s5426] ss:$4 sm:$0xff] %v4192
        %5552 = vst [vmem:[%s5428] ss:$4 sm:$0xff] %v4193
        %5553 = vst [vmem:[%s5430] ss:$4 sm:$0xff] %v4194
        %5554 = vst [vmem:[%s5432] ss:$4 sm:$0xff] %v4195
        %5555 = vst [vmem:[%s5434] ss:$4 sm:$0xff] %v4196
        %v5556 = vld.sshfl [vmem:[#allocation1] sm:$0xff pattern:$0x73625140]
        %v5557 = vld.sshfl [vmem:[#allocation1 + $0x20] sm:$0xff pattern:$0x73625140]
        %5558 = vst [vmem:[#allocation1] ss:$4 sm:$0xff] %v4701
        %5559 = vst [vmem:[%s5422] ss:$4 sm:$0xff] %v4702
        %5560 = vst [vmem:[%s5424] ss:$4 sm:$0xff] %v4703
        %5561 = vst [vmem:[%s5426] ss:$4 sm:$0xff] %v4704
        %5562 = vst [vmem:[%s5428] ss:$4 sm:$0xff] %v4705
        %5563 = vst [vmem:[%s5430] ss:$4 sm:$0xff] %v4706
        %5564 = vst [vmem:[%s5432] ss:$4 sm:$0xff] %v4707
        %5565 = vst [vmem:[%s5434] ss:$4 sm:$0xff] %v4708
        %v5566 = vld.sshfl [vmem:[#allocation1] sm:$0xff pattern:$0x73625140]
        %v5567 = vld.sshfl [vmem:[#allocation1 + $0x20] sm:$0xff pattern:$0x73625140]
        %5568 = vst [vmem:[#allocation1] ss:$4 sm:$0xff] %v4197
        %5569 = vst [vmem:[%s5422] ss:$4 sm:$0xff] %v4198
        %5570 = vst [vmem:[%s5424] ss:$4 sm:$0xff] %v4199
        %5571 = vst [vmem:[%s5426] ss:$4 sm:$0xff] %v4200
        %5572 = vst [vmem:[%s5428] ss:$4 sm:$0xff] %v4201
        %5573 = vst [vmem:[%s5430] ss:$4 sm:$0xff] %v4202
        %5574 = vst [vmem:[%s5432] ss:$4 sm:$0xff] %v4203
        %5575 = vst [vmem:[%s5434] ss:$4 sm:$0xff] %v4204
        %v5576 = vld.sshfl [vmem:[#allocation1] sm:$0xff pattern:$0x73625140]
        %v5577 = vld.sshfl [vmem:[#allocation1 + $0x20] sm:$0xff pattern:$0x73625140]
        %5578 = vst [vmem:[#allocation1] ss:$4 sm:$0xff] %v4709
        %5579 = vst [vmem:[%s5422] ss:$4 sm:$0xff] %v4710
        %5580 = vst [vmem:[%s5424] ss:$4 sm:$0xff] %v4711
        %5581 = vst [vmem:[%s5426] ss:$4 sm:$0xff] %v4712
        %5582 = vst [vmem:[%s5428] ss:$4 sm:$0xff] %v4713
        %5583 = vst [vmem:[%s5430] ss:$4 sm:$0xff] %v4714
        %5584 = vst [vmem:[%s5432] ss:$4 sm:$0xff] %v4715
        %5585 = vst [vmem:[%s5434] ss:$4 sm:$0xff] %v4716
        %v5586 = vld.sshfl [vmem:[#allocation1] sm:$0xff pattern:$0x73625140]
        %v5587 = vld.sshfl [vmem:[#allocation1 + $0x20] sm:$0xff pattern:$0x73625140]
        %5588 = vst [vmem:[#allocation1] ss:$4 sm:$0xff] %v4205
        %5589 = vst [vmem:[%s5422] ss:$4 sm:$0xff] %v4206
        %5590 = vst [vmem:[%s5424] ss:$4 sm:$0xff] %v4207
        %5591 = vst [vmem:[%s5426] ss:$4 sm:$0xff] %v4208
        %5592 = vst [vmem:[%s5428] ss:$4 sm:$0xff] %v4209
        %5593 = vst [vmem:[%s5430] ss:$4 sm:$0xff] %v4210
        %5594 = vst [vmem:[%s5432] ss:$4 sm:$0xff] %v4211
        %5595 = vst [vmem:[%s5434] ss:$4 sm:$0xff] %v4212
        %v5596 = vld.sshfl [vmem:[#allocation1] sm:$0xff pattern:$0x73625140]
        %v5597 = vld.sshfl [vmem:[#allocation1 + $0x20] sm:$0xff pattern:$0x73625140]
        %5598 = vst [vmem:[#allocation1] ss:$4 sm:$0xff] %v4717
        %5599 = vst [vmem:[%s5422] ss:$4 sm:$0xff] %v4718
        %5600 = vst [vmem:[%s5424] ss:$4 sm:$0xff] %v4719
        %5601 = vst [vmem:[%s5426] ss:$4 sm:$0xff] %v4720
        %5602 = vst [vmem:[%s5428] ss:$4 sm:$0xff] %v4721
        %5603 = vst [vmem:[%s5430] ss:$4 sm:$0xff] %v4722
        %5604 = vst [vmem:[%s5432] ss:$4 sm:$0xff] %v4723
        %5605 = vst [vmem:[%s5434] ss:$4 sm:$0xff] %v4724
        %v5606 = vld.sshfl [vmem:[#allocation1] sm:$0xff pattern:$0x73625140]
        %v5607 = vld.sshfl [vmem:[#allocation1 + $0x20] sm:$0xff pattern:$0x73625140]
        %5608 = vst [vmem:[#allocation1] ss:$4 sm:$0xff] %v4213
        %5609 = vst [vmem:[%s5422] ss:$4 sm:$0xff] %v4214
        %5610 = vst [vmem:[%s5424] ss:$4 sm:$0xff] %v4215
        %5611 = vst [vmem:[%s5426] ss:$4 sm:$0xff] %v4216
        %5612 = vst [vmem:[%s5428] ss:$4 sm:$0xff] %v4217
        %5613 = vst [vmem:[%s5430] ss:$4 sm:$0xff] %v4218
        %5614 = vst [vmem:[%s5432] ss:$4 sm:$0xff] %v4219
        %5615 = vst [vmem:[%s5434] ss:$4 sm:$0xff] %v4220
        %v5616 = vld.sshfl [vmem:[#allocation1] sm:$0xff pattern:$0x73625140]
        %v5617 = vld.sshfl [vmem:[#allocation1 + $0x20] sm:$0xff pattern:$0x73625140]
        %5618 = vst [vmem:[#allocation1] ss:$4 sm:$0xff] %v4725
        %5619 = vst [vmem:[%s5422] ss:$4 sm:$0xff] %v4726
        %5620 = vst [vmem:[%s5424] ss:$4 sm:$0xff] %v4727
        %5621 = vst [vmem:[%s5426] ss:$4 sm:$0xff] %v4728
        %5622 = vst [vmem:[%s5428] ss:$4 sm:$0xff] %v4729
        %5623 = vst [vmem:[%s5430] ss:$4 sm:$0xff] %v4730
        %5624 = vst [vmem:[%s5432] ss:$4 sm:$0xff] %v4731
        %5625 = vst [vmem:[%s5434] ss:$4 sm:$0xff] %v4732
        %v5626 = vld.sshfl [vmem:[#allocation1] sm:$0xff pattern:$0x73625140]
        %v5627 = vld.sshfl [vmem:[#allocation1 + $0x20] sm:$0xff pattern:$0x73625140]
        %5628 = vst [vmem:[#allocation1] ss:$4 sm:$0xff] %v4221
        %5629 = vst [vmem:[%s5422] ss:$4 sm:$0xff] %v4222
        %5630 = vst [vmem:[%s5424] ss:$4 sm:$0xff] %v4223
        %5631 = vst [vmem:[%s5426] ss:$4 sm:$0xff] %v4224
        %5632 = vst [vmem:[%s5428] ss:$4 sm:$0xff] %v4225
        %5633 = vst [vmem:[%s5430] ss:$4 sm:$0xff] %v4226
        %5634 = vst [vmem:[%s5432] ss:$4 sm:$0xff] %v4227
        %5635 = vst [vmem:[%s5434] ss:$4 sm:$0xff] %v4228
        %v5636 = vld.sshfl [vmem:[#allocation1] sm:$0xff pattern:$0x73625140]
        %v5637 = vld.sshfl [vmem:[#allocation1 + $0x20] sm:$0xff pattern:$0x73625140]
        %5638 = vst [vmem:[#allocation1] ss:$4 sm:$0xff] %v4733
        %5639 = vst [vmem:[%s5422] ss:$4 sm:$0xff] %v4734
        %5640 = vst [vmem:[%s5424] ss:$4 sm:$0xff] %v4735
        %5641 = vst [vmem:[%s5426] ss:$4 sm:$0xff] %v4736
        %5642 = vst [vmem:[%s5428] ss:$4 sm:$0xff] %v4737
        %5643 = vst [vmem:[%s5430] ss:$4 sm:$0xff] %v4738
        %5644 = vst [vmem:[%s5432] ss:$4 sm:$0xff] %v4739
        %5645 = vst [vmem:[%s5434] ss:$4 sm:$0xff] %v4740
        %v5646 = vld.sshfl [vmem:[#allocation1] sm:$0xff pattern:$0x73625140]
        %v5647 = vld.sshfl [vmem:[#allocation1 + $0x20] sm:$0xff pattern:$0x73625140]
        %5648 = vst [vmem:[#allocation1] ss:$4 sm:$0xff] %v4229
        %5649 = vst [vmem:[%s5422] ss:$4 sm:$0xff] %v4230
        %5650 = vst [vmem:[%s5424] ss:$4 sm:$0xff] %v4231
        %5651 = vst [vmem:[%s5426] ss:$4 sm:$0xff] %v4232
        %5652 = vst [vmem:[%s5428] ss:$4 sm:$0xff] %v4233
        %5653 = vst [vmem:[%s5430] ss:$4 sm:$0xff] %v4234
        %5654 = vst [vmem:[%s5432] ss:$4 sm:$0xff] %v4235
        %5655 = vst [vmem:[%s5434] ss:$4 sm:$0xff] %v4236
        %v5656 = vld.sshfl [vmem:[#allocation1] sm:$0xff pattern:$0x73625140]
        %v5657 = vld.sshfl [vmem:[#allocation1 + $0x20] sm:$0xff pattern:$0x73625140]
        %5658 = vst [vmem:[#allocation1] ss:$4 sm:$0xff] %v4741
        %5659 = vst [vmem:[%s5422] ss:$4 sm:$0xff] %v4742
        %5660 = vst [vmem:[%s5424] ss:$4 sm:$0xff] %v4743
        %5661 = vst [vmem:[%s5426] ss:$4 sm:$0xff] %v4744
        %5662 = vst [vmem:[%s5428] ss:$4 sm:$0xff] %v4745
        %5663 = vst [vmem:[%s5430] ss:$4 sm:$0xff] %v4746
        %5664 = vst [vmem:[%s5432] ss:$4 sm:$0xff] %v4747
        %5665 = vst [vmem:[%s5434] ss:$4 sm:$0xff] %v4748
        %v5666 = vld.sshfl [vmem:[#allocation1] sm:$0xff pattern:$0x73625140]
        %v5667 = vld.sshfl [vmem:[#allocation1 + $0x20] sm:$0xff pattern:$0x73625140]
        %5668 = vst [vmem:[#allocation1] ss:$4 sm:$0xff] %v4237
        %5669 = vst [vmem:[%s5422] ss:$4 sm:$0xff] %v4238
        %5670 = vst [vmem:[%s5424] ss:$4 sm:$0xff] %v4239
        %5671 = vst [vmem:[%s5426] ss:$4 sm:$0xff] %v4240
        %5672 = vst [vmem:[%s5428] ss:$4 sm:$0xff] %v4241
        %5673 = vst [vmem:[%s5430] ss:$4 sm:$0xff] %v4242
        %5674 = vst [vmem:[%s5432] ss:$4 sm:$0xff] %v4243
        %5675 = vst [vmem:[%s5434] ss:$4 sm:$0xff] %v4244
        %v5676 = vld.sshfl [vmem:[#allocation1] sm:$0xff pattern:$0x73625140]
        %v5677 = vld.sshfl [vmem:[#allocation1 + $0x20] sm:$0xff pattern:$0x73625140]
        %5678 = vst [vmem:[#allocation1] ss:$4 sm:$0xff] %v4749
        %5679 = vst [vmem:[%s5422] ss:$4 sm:$0xff] %v4750
        %5680 = vst [vmem:[%s5424] ss:$4 sm:$0xff] %v4751
        %5681 = vst [vmem:[%s5426] ss:$4 sm:$0xff] %v4752
        %5682 = vst [vmem:[%s5428] ss:$4 sm:$0xff] %v4753
        %5683 = vst [vmem:[%s5430] ss:$4 sm:$0xff] %v4754
        %5684 = vst [vmem:[%s5432] ss:$4 sm:$0xff] %v4755
        %5685 = vst [vmem:[%s5434] ss:$4 sm:$0xff] %v4756
        %v5686 = vld.sshfl [vmem:[#allocation1] sm:$0xff pattern:$0x73625140]
        %v5687 = vld.sshfl [vmem:[#allocation1 + $0x20] sm:$0xff pattern:$0x73625140]
        %5688 = vst [vmem:[#allocation1] ss:$4 sm:$0xff] %v4245
        %5689 = vst [vmem:[%s5422] ss:$4 sm:$0xff] %v4246
        %5690 = vst [vmem:[%s5424] ss:$4 sm:$0xff] %v4247
        %5691 = vst [vmem:[%s5426] ss:$4 sm:$0xff] %v4248
        %5692 = vst [vmem:[%s5428] ss:$4 sm:$0xff] %v4249
        %5693 = vst [vmem:[%s5430] ss:$4 sm:$0xff] %v4250
        %5694 = vst [vmem:[%s5432] ss:$4 sm:$0xff] %v4251
        %5695 = vst [vmem:[%s5434] ss:$4 sm:$0xff] %v4252
        %v5696 = vld.sshfl [vmem:[#allocation1] sm:$0xff pattern:$0x73625140]
        %v5697 = vld.sshfl [vmem:[#allocation1 + $0x20] sm:$0xff pattern:$0x73625140]
        %5698 = vst [vmem:[#allocation1] ss:$4 sm:$0xff] %v4757
        %5699 = vst [vmem:[%s5422] ss:$4 sm:$0xff] %v4758
        %5700 = vst [vmem:[%s5424] ss:$4 sm:$0xff] %v4759
        %5701 = vst [vmem:[%s5426] ss:$4 sm:$0xff] %v4760
        %5702 = vst [vmem:[%s5428] ss:$4 sm:$0xff] %v4761
        %5703 = vst [vmem:[%s5430] ss:$4 sm:$0xff] %v4762
        %5704 = vst [vmem:[%s5432] ss:$4 sm:$0xff] %v4763
        %5705 = vst [vmem:[%s5434] ss:$4 sm:$0xff] %v4764
        %v5706 = vld.sshfl [vmem:[#allocation1] sm:$0xff pattern:$0x73625140]
        %v5707 = vld.sshfl [vmem:[#allocation1 + $0x20] sm:$0xff pattern:$0x73625140]
        %5708 = vst [vmem:[#allocation1] ss:$4 sm:$0xff] %v4253
        %5709 = vst [vmem:[%s5422] ss:$4 sm:$0xff] %v4254
        %5710 = vst [vmem:[%s5424] ss:$4 sm:$0xff] %v4255
        %5711 = vst [vmem:[%s5426] ss:$4 sm:$0xff] %v4256
        %5712 = vst [vmem:[%s5428] ss:$4 sm:$0xff] %v4257
        %5713 = vst [vmem:[%s5430] ss:$4 sm:$0xff] %v4258
        %5714 = vst [vmem:[%s5432] ss:$4 sm:$0xff] %v4259
        %5715 = vst [vmem:[%s5434] ss:$4 sm:$0xff] %v4260
        %v5716 = vld.sshfl [vmem:[#allocation1] sm:$0xff pattern:$0x73625140]
        %v5717 = vld.sshfl [vmem:[#allocation1 + $0x20] sm:$0xff pattern:$0x73625140]
        %5718 = vst [vmem:[#allocation1] ss:$4 sm:$0xff] %v4765
        %5719 = vst [vmem:[%s5422] ss:$4 sm:$0xff] %v4766
        %5720 = vst [vmem:[%s5424] ss:$4 sm:$0xff] %v4767
        %5721 = vst [vmem:[%s5426] ss:$4 sm:$0xff] %v4768
        %5722 = vst [vmem:[%s5428] ss:$4 sm:$0xff] %v4769
        %5723 = vst [vmem:[%s5430] ss:$4 sm:$0xff] %v4770
        %5724 = vst [vmem:[%s5432] ss:$4 sm:$0xff] %v4771
        %5725 = vst [vmem:[%s5434] ss:$4 sm:$0xff] %v4772
        %v5726 = vld.sshfl [vmem:[#allocation1] sm:$0xff pattern:$0x73625140]
        %v5727 = vld.sshfl [vmem:[#allocation1 + $0x20] sm:$0xff pattern:$0x73625140]
        %5728 = vst [vmem:[#allocation1] ss:$4 sm:$0xff] %v4261
        %5729 = vst [vmem:[%s5422] ss:$4 sm:$0xff] %v4262
        %5730 = vst [vmem:[%s5424] ss:$4 sm:$0xff] %v4263
        %5731 = vst [vmem:[%s5426] ss:$4 sm:$0xff] %v4264
        %5732 = vst [vmem:[%s5428] ss:$4 sm:$0xff] %v4265
        %5733 = vst [vmem:[%s5430] ss:$4 sm:$0xff] %v4266
        %5734 = vst [vmem:[%s5432] ss:$4 sm:$0xff] %v4267
        %5735 = vst [vmem:[%s5434] ss:$4 sm:$0xff] %v4268
        %v5736 = vld.sshfl [vmem:[#allocation1] sm:$0xff pattern:$0x73625140]
        %v5737 = vld.sshfl [vmem:[#allocation1 + $0x20] sm:$0xff pattern:$0x73625140]
        %5738 = vst [vmem:[#allocation1] ss:$4 sm:$0xff] %v4773
        %5739 = vst [vmem:[%s5422] ss:$4 sm:$0xff] %v4774
        %5740 = vst [vmem:[%s5424] ss:$4 sm:$0xff] %v4775
        %5741 = vst [vmem:[%s5426] ss:$4 sm:$0xff] %v4776
        %5742 = vst [vmem:[%s5428] ss:$4 sm:$0xff] %v4777
        %5743 = vst [vmem:[%s5430] ss:$4 sm:$0xff] %v4778
        %5744 = vst [vmem:[%s5432] ss:$4 sm:$0xff] %v4779
        %5745 = vst [vmem:[%s5434] ss:$4 sm:$0xff] %v4780
        %v5746 = vld.sshfl [vmem:[#allocation1] sm:$0xff pattern:$0x73625140]
        %v5747 = vld.sshfl [vmem:[#allocation1 + $0x20] sm:$0xff pattern:$0x73625140]
        %5748 = vst [vmem:[#allocation1] ss:$4 sm:$0xff] %v4269
        %5749 = vst [vmem:[%s5422] ss:$4 sm:$0xff] %v4270
        %5750 = vst [vmem:[%s5424] ss:$4 sm:$0xff] %v4271
        %5751 = vst [vmem:[%s5426] ss:$4 sm:$0xff] %v4272
        %5752 = vst [vmem:[%s5428] ss:$4 sm:$0xff] %v4273
        %5753 = vst [vmem:[%s5430] ss:$4 sm:$0xff] %v4274
        %5754 = vst [vmem:[%s5432] ss:$4 sm:$0xff] %v4275
        %5755 = vst [vmem:[%s5434] ss:$4 sm:$0xff] %v4276
        %v5756 = vld.sshfl [vmem:[#allocation1] sm:$0xff pattern:$0x73625140]
        %v5757 = vld.sshfl [vmem:[#allocation1 + $0x20] sm:$0xff pattern:$0x73625140]
        %5758 = vst [vmem:[#allocation1] ss:$4 sm:$0xff] %v4781
        %5759 = vst [vmem:[%s5422] ss:$4 sm:$0xff] %v4782
        %5760 = vst [vmem:[%s5424] ss:$4 sm:$0xff] %v4783
        %5761 = vst [vmem:[%s5426] ss:$4 sm:$0xff] %v4784
        %5762 = vst [vmem:[%s5428] ss:$4 sm:$0xff] %v4785
        %5763 = vst [vmem:[%s5430] ss:$4 sm:$0xff] %v4786
        %5764 = vst [vmem:[%s5432] ss:$4 sm:$0xff] %v4787
        %5765 = vst [vmem:[%s5434] ss:$4 sm:$0xff] %v4788
        %v5766 = vld.sshfl [vmem:[#allocation1] sm:$0xff pattern:$0x73625140]
        %v5767 = vld.sshfl [vmem:[#allocation1 + $0x20] sm:$0xff pattern:$0x73625140]
        %5768 = vst [vmem:[#allocation1] ss:$4 sm:$0xff] %v4277
        %5769 = vst [vmem:[%s5422] ss:$4 sm:$0xff] %v4278
        %5770 = vst [vmem:[%s5424] ss:$4 sm:$0xff] %v4279
        %5771 = vst [vmem:[%s5426] ss:$4 sm:$0xff] %v4280
        %5772 = vst [vmem:[%s5428] ss:$4 sm:$0xff] %v4281
        %5773 = vst [vmem:[%s5430] ss:$4 sm:$0xff] %v4282
        %5774 = vst [vmem:[%s5432] ss:$4 sm:$0xff] %v4283
        %5775 = vst [vmem:[%s5434] ss:$4 sm:$0xff] %v4284
        %v5776 = vld.sshfl [vmem:[#allocation1] sm:$0xff pattern:$0x73625140]
        %v5777 = vld.sshfl [vmem:[#allocation1 + $0x20] sm:$0xff pattern:$0x73625140]
        %5778 = vst [vmem:[#allocation1] ss:$4 sm:$0xff] %v4789
        %5779 = vst [vmem:[%s5422] ss:$4 sm:$0xff] %v4790
        %5780 = vst [vmem:[%s5424] ss:$4 sm:$0xff] %v4791
        %5781 = vst [vmem:[%s5426] ss:$4 sm:$0xff] %v4792
        %5782 = vst [vmem:[%s5428] ss:$4 sm:$0xff] %v4793
        %5783 = vst [vmem:[%s5430] ss:$4 sm:$0xff] %v4794
        %5784 = vst [vmem:[%s5432] ss:$4 sm:$0xff] %v4795
        %5785 = vst [vmem:[%s5434] ss:$4 sm:$0xff] %v4796
        %v5786 = vld.sshfl [vmem:[#allocation1] sm:$0xff pattern:$0x73625140]
        %v5787 = vld.sshfl [vmem:[#allocation1 + $0x20] sm:$0xff pattern:$0x73625140]
        %5788 = vst [vmem:[#allocation1] ss:$4 sm:$0xff] %v4285
        %5789 = vst [vmem:[%s5422] ss:$4 sm:$0xff] %v4286
        %5790 = vst [vmem:[%s5424] ss:$4 sm:$0xff] %v4287
        %5791 = vst [vmem:[%s5426] ss:$4 sm:$0xff] %v4288
        %5792 = vst [vmem:[%s5428] ss:$4 sm:$0xff] %v4289
        %5793 = vst [vmem:[%s5430] ss:$4 sm:$0xff] %v4290
        %5794 = vst [vmem:[%s5432] ss:$4 sm:$0xff] %v4291
        %5795 = vst [vmem:[%s5434] ss:$4 sm:$0xff] %v4292
        %v5796 = vld.sshfl [vmem:[#allocation1] sm:$0xff pattern:$0x73625140]
        %v5797 = vld.sshfl [vmem:[#allocation1 + $0x20] sm:$0xff pattern:$0x73625140]
        %5798 = vst [vmem:[#allocation1] ss:$4 sm:$0xff] %v4797
        %5799 = vst [vmem:[%s5422] ss:$4 sm:$0xff] %v4798
        %5800 = vst [vmem:[%s5424] ss:$4 sm:$0xff] %v4799
        %5801 = vst [vmem:[%s5426] ss:$4 sm:$0xff] %v4800
        %5802 = vst [vmem:[%s5428] ss:$4 sm:$0xff] %v4801
        %5803 = vst [vmem:[%s5430] ss:$4 sm:$0xff] %v4802
        %5804 = vst [vmem:[%s5432] ss:$4 sm:$0xff] %v4803
        %5805 = vst [vmem:[%s5434] ss:$4 sm:$0xff] %v4804
        %v5806 = vld.sshfl [vmem:[#allocation1] sm:$0xff pattern:$0x73625140]
        %v5807 = vld.sshfl [vmem:[#allocation1 + $0x20] sm:$0xff pattern:$0x73625140]
        %5808 = vst [vmem:[#allocation1] ss:$4 sm:$0xff] %v4293
        %5809 = vst [vmem:[%s5422] ss:$4 sm:$0xff] %v4294
        %5810 = vst [vmem:[%s5424] ss:$4 sm:$0xff] %v4295
        %5811 = vst [vmem:[%s5426] ss:$4 sm:$0xff] %v4296
        %5812 = vst [vmem:[%s5428] ss:$4 sm:$0xff] %v4297
        %5813 = vst [vmem:[%s5430] ss:$4 sm:$0xff] %v4298
        %5814 = vst [vmem:[%s5432] ss:$4 sm:$0xff] %v4299
        %5815 = vst [vmem:[%s5434] ss:$4 sm:$0xff] %v4300
        %v5816 = vld.sshfl [vmem:[#allocation1] sm:$0xff pattern:$0x73625140]
        %v5817 = vld.sshfl [vmem:[#allocation1 + $0x20] sm:$0xff pattern:$0x73625140]
        %5818 = vst [vmem:[#allocation1] ss:$4 sm:$0xff] %v4805
        %5819 = vst [vmem:[%s5422] ss:$4 sm:$0xff] %v4806
        %5820 = vst [vmem:[%s5424] ss:$4 sm:$0xff] %v4807
        %5821 = vst [vmem:[%s5426] ss:$4 sm:$0xff] %v4808
        %5822 = vst [vmem:[%s5428] ss:$4 sm:$0xff] %v4809
        %5823 = vst [vmem:[%s5430] ss:$4 sm:$0xff] %v4810
        %5824 = vst [vmem:[%s5432] ss:$4 sm:$0xff] %v4811
        %5825 = vst [vmem:[%s5434] ss:$4 sm:$0xff] %v4812
        %v5826 = vld.sshfl [vmem:[#allocation1] sm:$0xff pattern:$0x73625140]
        %v5827 = vld.sshfl [vmem:[#allocation1 + $0x20] sm:$0xff pattern:$0x73625140]
        %5828 = vst [vmem:[#allocation1] ss:$4 sm:$0xff] %v4301
        %5829 = vst [vmem:[%s5422] ss:$4 sm:$0xff] %v4302
        %5830 = vst [vmem:[%s5424] ss:$4 sm:$0xff] %v4303
        %5831 = vst [vmem:[%s5426] ss:$4 sm:$0xff] %v4304
        %5832 = vst [vmem:[%s5428] ss:$4 sm:$0xff] %v4305
        %5833 = vst [vmem:[%s5430] ss:$4 sm:$0xff] %v4306
        %5834 = vst [vmem:[%s5432] ss:$4 sm:$0xff] %v4307
        %5835 = vst [vmem:[%s5434] ss:$4 sm:$0xff] %v4308
        %v5836 = vld.sshfl [vmem:[#allocation1] sm:$0xff pattern:$0x73625140]
        %v5837 = vld.sshfl [vmem:[#allocation1 + $0x20] sm:$0xff pattern:$0x73625140]
        %5838 = vst [vmem:[#allocation1] ss:$4 sm:$0xff] %v4813
        %5839 = vst [vmem:[%s5422] ss:$4 sm:$0xff] %v4814
        %5840 = vst [vmem:[%s5424] ss:$4 sm:$0xff] %v4815
        %5841 = vst [vmem:[%s5426] ss:$4 sm:$0xff] %v4816
        %5842 = vst [vmem:[%s5428] ss:$4 sm:$0xff] %v4817
        %5843 = vst [vmem:[%s5430] ss:$4 sm:$0xff] %v4818
        %5844 = vst [vmem:[%s5432] ss:$4 sm:$0xff] %v4819
        %5845 = vst [vmem:[%s5434] ss:$4 sm:$0xff] %v4820
        %v5846 = vld.sshfl [vmem:[#allocation1] sm:$0xff pattern:$0x73625140]
        %v5847 = vld.sshfl [vmem:[#allocation1 + $0x20] sm:$0xff pattern:$0x73625140]
        %5848 = vst [vmem:[#allocation1] ss:$4 sm:$0xff] %v4309
        %5849 = vst [vmem:[%s5422] ss:$4 sm:$0xff] %v4310
        %5850 = vst [vmem:[%s5424] ss:$4 sm:$0xff] %v4311
        %5851 = vst [vmem:[%s5426] ss:$4 sm:$0xff] %v4312
        %5852 = vst [vmem:[%s5428] ss:$4 sm:$0xff] %v4313
        %5853 = vst [vmem:[%s5430] ss:$4 sm:$0xff] %v4314
        %5854 = vst [vmem:[%s5432] ss:$4 sm:$0xff] %v4315
        %5855 = vst [vmem:[%s5434] ss:$4 sm:$0xff] %v4316
        %v5856 = vld.sshfl [vmem:[#allocation1] sm:$0xff pattern:$0x73625140]
        %v5857 = vld.sshfl [vmem:[#allocation1 + $0x20] sm:$0xff pattern:$0x73625140]
        %5858 = vst [vmem:[#allocation1] ss:$4 sm:$0xff] %v4821
        %5859 = vst [vmem:[%s5422] ss:$4 sm:$0xff] %v4822
        %5860 = vst [vmem:[%s5424] ss:$4 sm:$0xff] %v4823
        %5861 = vst [vmem:[%s5426] ss:$4 sm:$0xff] %v4824
        %5862 = vst [vmem:[%s5428] ss:$4 sm:$0xff] %v4825
        %5863 = vst [vmem:[%s5430] ss:$4 sm:$0xff] %v4826
        %5864 = vst [vmem:[%s5432] ss:$4 sm:$0xff] %v4827
        %5865 = vst [vmem:[%s5434] ss:$4 sm:$0xff] %v4828
        %v5866 = vld.sshfl [vmem:[#allocation1] sm:$0xff pattern:$0x73625140]
        %v5867 = vld.sshfl [vmem:[#allocation1 + $0x20] sm:$0xff pattern:$0x73625140]
        %5868 = vst [vmem:[#allocation1] ss:$4 sm:$0xff] %v4317
        %5869 = vst [vmem:[%s5422] ss:$4 sm:$0xff] %v4318
        %5870 = vst [vmem:[%s5424] ss:$4 sm:$0xff] %v4319
        %5871 = vst [vmem:[%s5426] ss:$4 sm:$0xff] %v4320
        %5872 = vst [vmem:[%s5428] ss:$4 sm:$0xff] %v4321
        %5873 = vst [vmem:[%s5430] ss:$4 sm:$0xff] %v4322
        %5874 = vst [vmem:[%s5432] ss:$4 sm:$0xff] %v4323
        %5875 = vst [vmem:[%s5434] ss:$4 sm:$0xff] %v4324
        %v5876 = vld.sshfl [vmem:[#allocation1] sm:$0xff pattern:$0x73625140]
        %v5877 = vld.sshfl [vmem:[#allocation1 + $0x20] sm:$0xff pattern:$0x73625140]
        %5878 = vst [vmem:[#allocation1] ss:$4 sm:$0xff] %v4829
        %5879 = vst [vmem:[%s5422] ss:$4 sm:$0xff] %v4830
        %5880 = vst [vmem:[%s5424] ss:$4 sm:$0xff] %v4831
        %5881 = vst [vmem:[%s5426] ss:$4 sm:$0xff] %v4832
        %5882 = vst [vmem:[%s5428] ss:$4 sm:$0xff] %v4833
        %5883 = vst [vmem:[%s5430] ss:$4 sm:$0xff] %v4834
        %5884 = vst [vmem:[%s5432] ss:$4 sm:$0xff] %v4835
        %5885 = vst [vmem:[%s5434] ss:$4 sm:$0xff] %v4836
        %v5886 = vld.sshfl [vmem:[#allocation1] sm:$0xff pattern:$0x73625140]
        %v5887 = vld.sshfl [vmem:[#allocation1 + $0x20] sm:$0xff pattern:$0x73625140]
        %5888 = vst [vmem:[#allocation1] ss:$4 sm:$0xff] %v4325
        %5889 = vst [vmem:[%s5422] ss:$4 sm:$0xff] %v4326
        %5890 = vst [vmem:[%s5424] ss:$4 sm:$0xff] %v4327
        %5891 = vst [vmem:[%s5426] ss:$4 sm:$0xff] %v4328
        %5892 = vst [vmem:[%s5428] ss:$4 sm:$0xff] %v4329
        %5893 = vst [vmem:[%s5430] ss:$4 sm:$0xff] %v4330
        %5894 = vst [vmem:[%s5432] ss:$4 sm:$0xff] %v4331
        %5895 = vst [vmem:[%s5434] ss:$4 sm:$0xff] %v4332
        %v5896 = vld.sshfl [vmem:[#allocation1] sm:$0xff pattern:$0x73625140]
        %v5897 = vld.sshfl [vmem:[#allocation1 + $0x20] sm:$0xff pattern:$0x73625140]
        %5898 = vst [vmem:[#allocation1] ss:$4 sm:$0xff] %v4837
        %5899 = vst [vmem:[%s5422] ss:$4 sm:$0xff] %v4838
        %5900 = vst [vmem:[%s5424] ss:$4 sm:$0xff] %v4839
        %5901 = vst [vmem:[%s5426] ss:$4 sm:$0xff] %v4840
        %5902 = vst [vmem:[%s5428] ss:$4 sm:$0xff] %v4841
        %5903 = vst [vmem:[%s5430] ss:$4 sm:$0xff] %v4842
        %5904 = vst [vmem:[%s5432] ss:$4 sm:$0xff] %v4843
        %5905 = vst [vmem:[%s5434] ss:$4 sm:$0xff] %v4844
        %v5906 = vld.sshfl [vmem:[#allocation1] sm:$0xff pattern:$0x73625140]
        %v5907 = vld.sshfl [vmem:[#allocation1 + $0x20] sm:$0xff pattern:$0x73625140]
        %5908 = vst [vmem:[#allocation1] ss:$4 sm:$0xff] %v4333
        %5909 = vst [vmem:[%s5422] ss:$4 sm:$0xff] %v4334
        %5910 = vst [vmem:[%s5424] ss:$4 sm:$0xff] %v4335
        %5911 = vst [vmem:[%s5426] ss:$4 sm:$0xff] %v4336
        %5912 = vst [vmem:[%s5428] ss:$4 sm:$0xff] %v4337
        %5913 = vst [vmem:[%s5430] ss:$4 sm:$0xff] %v4338
        %5914 = vst [vmem:[%s5432] ss:$4 sm:$0xff] %v4339
        %5915 = vst [vmem:[%s5434] ss:$4 sm:$0xff] %v4340
        %v5916 = vld.sshfl [vmem:[#allocation1] sm:$0xff pattern:$0x73625140]
        %v5917 = vld.sshfl [vmem:[#allocation1 + $0x20] sm:$0xff pattern:$0x73625140]
        %5918 = vst [vmem:[#allocation1] ss:$4 sm:$0xff] %v4845
        %5919 = vst [vmem:[%s5422] ss:$4 sm:$0xff] %v4846
        %5920 = vst [vmem:[%s5424] ss:$4 sm:$0xff] %v4847
        %5921 = vst [vmem:[%s5426] ss:$4 sm:$0xff] %v4848
        %5922 = vst [vmem:[%s5428] ss:$4 sm:$0xff] %v4849
        %5923 = vst [vmem:[%s5430] ss:$4 sm:$0xff] %v4850
        %5924 = vst [vmem:[%s5432] ss:$4 sm:$0xff] %v4851
        %5925 = vst [vmem:[%s5434] ss:$4 sm:$0xff] %v4852
        %v5926 = vld.sshfl [vmem:[#allocation1] sm:$0xff pattern:$0x73625140]
        %v5927 = vld.sshfl [vmem:[#allocation1 + $0x20] sm:$0xff pattern:$0x73625140]
        %5928 = vst [vmem:[#allocation1] ss:$4 sm:$0xff] %v4341
        %5929 = vst [vmem:[%s5422] ss:$4 sm:$0xff] %v4342
        %5930 = vst [vmem:[%s5424] ss:$4 sm:$0xff] %v4343
        %5931 = vst [vmem:[%s5426] ss:$4 sm:$0xff] %v4344
        %5932 = vst [vmem:[%s5428] ss:$4 sm:$0xff] %v4345
        %5933 = vst [vmem:[%s5430] ss:$4 sm:$0xff] %v4346
        %5934 = vst [vmem:[%s5432] ss:$4 sm:$0xff] %v4347
        %5935 = vst [vmem:[%s5434] ss:$4 sm:$0xff] %v4348
        %v5936 = vld.sshfl [vmem:[#allocation1] sm:$0xff pattern:$0x73625140]
        %v5937 = vld.sshfl [vmem:[#allocation1 + $0x20] sm:$0xff pattern:$0x73625140]
        %5938 = vst [vmem:[#allocation1] ss:$4 sm:$0xff] %v4853
        %5939 = vst [vmem:[%s5422] ss:$4 sm:$0xff] %v4854
        %5940 = vst [vmem:[%s5424] ss:$4 sm:$0xff] %v4855
        %5941 = vst [vmem:[%s5426] ss:$4 sm:$0xff] %v4856
        %5942 = vst [vmem:[%s5428] ss:$4 sm:$0xff] %v4857
        %5943 = vst [vmem:[%s5430] ss:$4 sm:$0xff] %v4858
        %5944 = vst [vmem:[%s5432] ss:$4 sm:$0xff] %v4859
        %5945 = vst [vmem:[%s5434] ss:$4 sm:$0xff] %v4860
        %v5946 = vld.sshfl [vmem:[#allocation1] sm:$0xff pattern:$0x73625140]
        %v5947 = vld.sshfl [vmem:[#allocation1 + $0x20] sm:$0xff pattern:$0x73625140]
        %5948 = vst [vmem:[#allocation1] ss:$4 sm:$0xff] %v4349
        %5949 = vst [vmem:[%s5422] ss:$4 sm:$0xff] %v4350
        %5950 = vst [vmem:[%s5424] ss:$4 sm:$0xff] %v4351
        %5951 = vst [vmem:[%s5426] ss:$4 sm:$0xff] %v4352
        %5952 = vst [vmem:[%s5428] ss:$4 sm:$0xff] %v4353
        %5953 = vst [vmem:[%s5430] ss:$4 sm:$0xff] %v4354
        %5954 = vst [vmem:[%s5432] ss:$4 sm:$0xff] %v4355
        %5955 = vst [vmem:[%s5434] ss:$4 sm:$0xff] %v4356
        %v5956 = vld.sshfl [vmem:[#allocation1] sm:$0xff pattern:$0x73625140]
        %v5957 = vld.sshfl [vmem:[#allocation1 + $0x20] sm:$0xff pattern:$0x73625140]
        %5958 = vst [vmem:[#allocation1] ss:$4 sm:$0xff] %v4861
        %5959 = vst [vmem:[%s5422] ss:$4 sm:$0xff] %v4862
        %5960 = vst [vmem:[%s5424] ss:$4 sm:$0xff] %v4863
        %5961 = vst [vmem:[%s5426] ss:$4 sm:$0xff] %v4864
        %5962 = vst [vmem:[%s5428] ss:$4 sm:$0xff] %v4865
        %5963 = vst [vmem:[%s5430] ss:$4 sm:$0xff] %v4866
        %5964 = vst [vmem:[%s5432] ss:$4 sm:$0xff] %v4867
        %5965 = vst [vmem:[%s5434] ss:$4 sm:$0xff] %v4868
        %v5966 = vld.sshfl [vmem:[#allocation1] sm:$0xff pattern:$0x73625140]
        %v5967 = vld.sshfl [vmem:[#allocation1 + $0x20] sm:$0xff pattern:$0x73625140]
        %5968 = vst [vmem:[#allocation1] ss:$4 sm:$0xff] %v4357
        %5969 = vst [vmem:[%s5422] ss:$4 sm:$0xff] %v4358
        %5970 = vst [vmem:[%s5424] ss:$4 sm:$0xff] %v4359
        %5971 = vst [vmem:[%s5426] ss:$4 sm:$0xff] %v4360
        %5972 = vst [vmem:[%s5428] ss:$4 sm:$0xff] %v4361
        %5973 = vst [vmem:[%s5430] ss:$4 sm:$0xff] %v4362
        %5974 = vst [vmem:[%s5432] ss:$4 sm:$0xff] %v4363
        %5975 = vst [vmem:[%s5434] ss:$4 sm:$0xff] %v4364
        %v5976 = vld.sshfl [vmem:[#allocation1] sm:$0xff pattern:$0x73625140]
        %v5977 = vld.sshfl [vmem:[#allocation1 + $0x20] sm:$0xff pattern:$0x73625140]
        %5978 = vst [vmem:[#allocation1] ss:$4 sm:$0xff] %v4869
        %5979 = vst [vmem:[%s5422] ss:$4 sm:$0xff] %v4870
        %5980 = vst [vmem:[%s5424] ss:$4 sm:$0xff] %v4871
        %5981 = vst [vmem:[%s5426] ss:$4 sm:$0xff] %v4872
        %5982 = vst [vmem:[%s5428] ss:$4 sm:$0xff] %v4873
        %5983 = vst [vmem:[%s5430] ss:$4 sm:$0xff] %v4874
        %5984 = vst [vmem:[%s5432] ss:$4 sm:$0xff] %v4875
        %5985 = vst [vmem:[%s5434] ss:$4 sm:$0xff] %v4876
        %v5986 = vld.sshfl [vmem:[#allocation1] sm:$0xff pattern:$0x73625140]
        %v5987 = vld.sshfl [vmem:[#allocation1 + $0x20] sm:$0xff pattern:$0x73625140]
        %5988 = vst [vmem:[#allocation1] ss:$4 sm:$0xff] %v4365
        %5989 = vst [vmem:[%s5422] ss:$4 sm:$0xff] %v4366
        %5990 = vst [vmem:[%s5424] ss:$4 sm:$0xff] %v4367
        %5991 = vst [vmem:[%s5426] ss:$4 sm:$0xff] %v4368
        %5992 = vst [vmem:[%s5428] ss:$4 sm:$0xff] %v4369
        %5993 = vst [vmem:[%s5430] ss:$4 sm:$0xff] %v4370
        %5994 = vst [vmem:[%s5432] ss:$4 sm:$0xff] %v4371
        %5995 = vst [vmem:[%s5434] ss:$4 sm:$0xff] %v4372
        %v5996 = vld.sshfl [vmem:[#allocation1] sm:$0xff pattern:$0x73625140]
        %v5997 = vld.sshfl [vmem:[#allocation1 + $0x20] sm:$0xff pattern:$0x73625140]
        %5998 = vst [vmem:[#allocation1] ss:$4 sm:$0xff] %v4877
        %5999 = vst [vmem:[%s5422] ss:$4 sm:$0xff] %v4878
        %6000 = vst [vmem:[%s5424] ss:$4 sm:$0xff] %v4879
        %6001 = vst [vmem:[%s5426] ss:$4 sm:$0xff] %v4880
        %6002 = vst [vmem:[%s5428] ss:$4 sm:$0xff] %v4881
        %6003 = vst [vmem:[%s5430] ss:$4 sm:$0xff] %v4882
        %6004 = vst [vmem:[%s5432] ss:$4 sm:$0xff] %v4883
        %6005 = vst [vmem:[%s5434] ss:$4 sm:$0xff] %v4884
        %v6006 = vld.sshfl [vmem:[#allocation1] sm:$0xff pattern:$0x73625140]
        %v6007 = vld.sshfl [vmem:[#allocation1 + $0x20] sm:$0xff pattern:$0x73625140]
        %6008 = vst [vmem:[#allocation1] ss:$4 sm:$0xff] %v4373
        %6009 = vst [vmem:[%s5422] ss:$4 sm:$0xff] %v4374
        %6010 = vst [vmem:[%s5424] ss:$4 sm:$0xff] %v4375
        %6011 = vst [vmem:[%s5426] ss:$4 sm:$0xff] %v4376
        %6012 = vst [vmem:[%s5428] ss:$4 sm:$0xff] %v4377
        %6013 = vst [vmem:[%s5430] ss:$4 sm:$0xff] %v4378
        %6014 = vst [vmem:[%s5432] ss:$4 sm:$0xff] %v4379
        %6015 = vst [vmem:[%s5434] ss:$4 sm:$0xff] %v4380
        %v6016 = vld.sshfl [vmem:[#allocation1] sm:$0xff pattern:$0x73625140]
        %v6017 = vld.sshfl [vmem:[#allocation1 + $0x20] sm:$0xff pattern:$0x73625140]
        %6018 = vst [vmem:[#allocation1] ss:$4 sm:$0xff] %v4885
        %6019 = vst [vmem:[%s5422] ss:$4 sm:$0xff] %v4886
        %6020 = vst [vmem:[%s5424] ss:$4 sm:$0xff] %v4887
        %6021 = vst [vmem:[%s5426] ss:$4 sm:$0xff] %v4888
        %6022 = vst [vmem:[%s5428] ss:$4 sm:$0xff] %v4889
        %6023 = vst [vmem:[%s5430] ss:$4 sm:$0xff] %v4890
        %6024 = vst [vmem:[%s5432] ss:$4 sm:$0xff] %v4891
        %6025 = vst [vmem:[%s5434] ss:$4 sm:$0xff] %v4892
        %v6026 = vld.sshfl [vmem:[#allocation1] sm:$0xff pattern:$0x73625140]
        %v6027 = vld.sshfl [vmem:[#allocation1 + $0x20] sm:$0xff pattern:$0x73625140]
        %6028 = vst [vmem:[#allocation1] ss:$4 sm:$0xff] %v4381
        %6029 = vst [vmem:[%s5422] ss:$4 sm:$0xff] %v4382
        %6030 = vst [vmem:[%s5424] ss:$4 sm:$0xff] %v4383
        %6031 = vst [vmem:[%s5426] ss:$4 sm:$0xff] %v4384
        %6032 = vst [vmem:[%s5428] ss:$4 sm:$0xff] %v4385
        %6033 = vst [vmem:[%s5430] ss:$4 sm:$0xff] %v4386
        %6034 = vst [vmem:[%s5432] ss:$4 sm:$0xff] %v4387
        %6035 = vst [vmem:[%s5434] ss:$4 sm:$0xff] %v4388
        %v6036 = vld.sshfl [vmem:[#allocation1] sm:$0xff pattern:$0x73625140]
        %v6037 = vld.sshfl [vmem:[#allocation1 + $0x20] sm:$0xff pattern:$0x73625140]
        %6038 = vst [vmem:[#allocation1] ss:$4 sm:$0xff] %v4893
        %6039 = vst [vmem:[%s5422] ss:$4 sm:$0xff] %v4894
        %6040 = vst [vmem:[%s5424] ss:$4 sm:$0xff] %v4895
        %6041 = vst [vmem:[%s5426] ss:$4 sm:$0xff] %v4896
        %6042 = vst [vmem:[%s5428] ss:$4 sm:$0xff] %v4897
        %6043 = vst [vmem:[%s5430] ss:$4 sm:$0xff] %v4898
        %6044 = vst [vmem:[%s5432] ss:$4 sm:$0xff] %v4899
        %6045 = vst [vmem:[%s5434] ss:$4 sm:$0xff] %v4900
        %v6046 = vld.sshfl [vmem:[#allocation1] sm:$0xff pattern:$0x73625140]
        %v6047 = vld.sshfl [vmem:[#allocation1 + $0x20] sm:$0xff pattern:$0x73625140]
        %6048 = vst [vmem:[#allocation1] ss:$4 sm:$0xff] %v4389
        %6049 = vst [vmem:[%s5422] ss:$4 sm:$0xff] %v4390
        %6050 = vst [vmem:[%s5424] ss:$4 sm:$0xff] %v4391
        %6051 = vst [vmem:[%s5426] ss:$4 sm:$0xff] %v4392
        %6052 = vst [vmem:[%s5428] ss:$4 sm:$0xff] %v4393
        %6053 = vst [vmem:[%s5430] ss:$4 sm:$0xff] %v4394
        %6054 = vst [vmem:[%s5432] ss:$4 sm:$0xff] %v4395
        %6055 = vst [vmem:[%s5434] ss:$4 sm:$0xff] %v4396
        %v6056 = vld.sshfl [vmem:[#allocation1] sm:$0xff pattern:$0x73625140]
        %v6057 = vld.sshfl [vmem:[#allocation1 + $0x20] sm:$0xff pattern:$0x73625140]
        %6058 = vst [vmem:[#allocation1] ss:$4 sm:$0xff] %v4901
        %6059 = vst [vmem:[%s5422] ss:$4 sm:$0xff] %v4902
        %6060 = vst [vmem:[%s5424] ss:$4 sm:$0xff] %v4903
        %6061 = vst [vmem:[%s5426] ss:$4 sm:$0xff] %v4904
        %6062 = vst [vmem:[%s5428] ss:$4 sm:$0xff] %v4905
        %6063 = vst [vmem:[%s5430] ss:$4 sm:$0xff] %v4906
        %6064 = vst [vmem:[%s5432] ss:$4 sm:$0xff] %v4907
        %6065 = vst [vmem:[%s5434] ss:$4 sm:$0xff] %v4908
        %v6066 = vld.sshfl [vmem:[#allocation1] sm:$0xff pattern:$0x73625140]
        %v6067 = vld.sshfl [vmem:[#allocation1 + $0x20] sm:$0xff pattern:$0x73625140]
        %vm6196 = vcmask 130048
        %6197 = vst.msk [vmem:[%s179] sm:$0xff] %vm6196, %v5436
        %6198 = vst.msk [vmem:[%s179 + $0x8] sm:$0xff] %vm6196, %v5437
        %6199 = vst.msk [vmem:[%s179 + $0x10] sm:$0xff] %vm6196, %v5446
        %6200 = vst.msk [vmem:[%s179 + $0x18] sm:$0xff] %vm6196, %v5447
        %6201 = vst.msk [vmem:[%s179 + $0x20] sm:$0xff] %vm6196, %v5456
        %6202 = vst.msk [vmem:[%s179 + $0x28] sm:$0xff] %vm6196, %v5457
        %6203 = vst.msk [vmem:[%s179 + $0x30] sm:$0xff] %vm6196, %v5466
        %6204 = vst.msk [vmem:[%s179 + $0x38] sm:$0xff] %vm6196, %v5467
        %6205 = vst.msk [vmem:[%s179 + $0x40] sm:$0xff] %vm6196, %v5476
        %6206 = vst.msk [vmem:[%s179 + $0x48] sm:$0xff] %vm6196, %v5477
        %6207 = vst.msk [vmem:[%s179 + $0x50] sm:$0xff] %vm6196, %v5486
        %6208 = vst.msk [vmem:[%s179 + $0x58] sm:$0xff] %vm6196, %v5487
        %6209 = vst.msk [vmem:[%s179 + $0x60] sm:$0xff] %vm6196, %v5496
        %6210 = vst.msk [vmem:[%s179 + $0x68] sm:$0xff] %vm6196, %v5497
        %6211 = vst.msk [vmem:[%s179 + $0x70] sm:$0xff] %vm6196, %v5506
        %6212 = vst.msk [vmem:[%s179 + $0x78] sm:$0xff] %vm6196, %v5507
        %6213 = vst.msk [vmem:[%s179 + $0x80] sm:$0xff] %vm6196, %v5516
        %6214 = vst.msk [vmem:[%s179 + $0x88] sm:$0xff] %vm6196, %v5517
        %6215 = vst.msk [vmem:[%s179 + $0x90] sm:$0xff] %vm6196, %v5526
        %6216 = vst.msk [vmem:[%s179 + $0x98] sm:$0xff] %vm6196, %v5527
        %6217 = vst.msk [vmem:[%s179 + $0xa0] sm:$0xff] %vm6196, %v5536
        %6218 = vst.msk [vmem:[%s179 + $0xa8] sm:$0xff] %vm6196, %v5537
        %6219 = vst.msk [vmem:[%s179 + $0xb0] sm:$0xff] %vm6196, %v5546
        %6220 = vst.msk [vmem:[%s179 + $0xb8] sm:$0xff] %vm6196, %v5547
        %6221 = vst.msk [vmem:[%s179 + $0xc0] sm:$0xff] %vm6196, %v5556
        %6222 = vst.msk [vmem:[%s179 + $0xc8] sm:$0xff] %vm6196, %v5557
        %6223 = vst.msk [vmem:[%s179 + $0xd0] sm:$0xff] %vm6196, %v5566
        %6224 = vst.msk [vmem:[%s179 + $0xd8] sm:$0xff] %vm6196, %v5567
        %6225 = vst.msk [vmem:[%s179 + $0xe0] sm:$0xff] %vm6196, %v5576
        %6226 = vst.msk [vmem:[%s179 + $0xe8] sm:$0xff] %vm6196, %v5577
        %6227 = vst.msk [vmem:[%s179 + $0xf0] sm:$0xff] %vm6196, %v5586
        %6228 = vst.msk [vmem:[%s179 + $0xf8] sm:$0xff] %vm6196, %v5587
        %6229 = vst.msk [vmem:[%s179 + $0x100] sm:$0xff] %vm6196, %v5596
        %6230 = vst.msk [vmem:[%s179 + $0x108] sm:$0xff] %vm6196, %v5597
        %6231 = vst.msk [vmem:[%s179 + $0x110] sm:$0xff] %vm6196, %v5606
        %6232 = vst.msk [vmem:[%s179 + $0x118] sm:$0xff] %vm6196, %v5607
        %6233 = vst.msk [vmem:[%s179 + $0x120] sm:$0xff] %vm6196, %v5616
        %6234 = vst.msk [vmem:[%s179 + $0x128] sm:$0xff] %vm6196, %v5617
        %6235 = vst.msk [vmem:[%s179 + $0x130] sm:$0xff] %vm6196, %v5626
        %6236 = vst.msk [vmem:[%s179 + $0x138] sm:$0xff] %vm6196, %v5627
        %6237 = vst.msk [vmem:[%s179 + $0x140] sm:$0xff] %vm6196, %v5636
        %6238 = vst.msk [vmem:[%s179 + $0x148] sm:$0xff] %vm6196, %v5637
        %6239 = vst.msk [vmem:[%s179 + $0x150] sm:$0xff] %vm6196, %v5646
        %6240 = vst.msk [vmem:[%s179 + $0x158] sm:$0xff] %vm6196, %v5647
        %6241 = vst.msk [vmem:[%s179 + $0x160] sm:$0xff] %vm6196, %v5656
        %6242 = vst.msk [vmem:[%s179 + $0x168] sm:$0xff] %vm6196, %v5657
        %6243 = vst.msk [vmem:[%s179 + $0x170] sm:$0xff] %vm6196, %v5666
        %6244 = vst.msk [vmem:[%s179 + $0x178] sm:$0xff] %vm6196, %v5667
        %6245 = vst.msk [vmem:[%s179 + $0x180] sm:$0xff] %vm6196, %v5676
        %6246 = vst.msk [vmem:[%s179 + $0x188] sm:$0xff] %vm6196, %v5677
        %6247 = vst.msk [vmem:[%s179 + $0x190] sm:$0xff] %vm6196, %v5686
        %6248 = vst.msk [vmem:[%s179 + $0x198] sm:$0xff] %vm6196, %v5687
        %6249 = vst.msk [vmem:[%s179 + $0x1a0] sm:$0xff] %vm6196, %v5696
        %6250 = vst.msk [vmem:[%s179 + $0x1a8] sm:$0xff] %vm6196, %v5697
        %6251 = vst.msk [vmem:[%s179 + $0x1b0] sm:$0xff] %vm6196, %v5706
        %6252 = vst.msk [vmem:[%s179 + $0x1b8] sm:$0xff] %vm6196, %v5707
        %6253 = vst.msk [vmem:[%s179 + $0x1c0] sm:$0xff] %vm6196, %v5716
        %6254 = vst.msk [vmem:[%s179 + $0x1c8] sm:$0xff] %vm6196, %v5717
        %6255 = vst.msk [vmem:[%s179 + $0x1d0] sm:$0xff] %vm6196, %v5726
        %6256 = vst.msk [vmem:[%s179 + $0x1d8] sm:$0xff] %vm6196, %v5727
        %6257 = vst.msk [vmem:[%s179 + $0x1e0] sm:$0xff] %vm6196, %v5736
        %6258 = vst.msk [vmem:[%s179 + $0x1e8] sm:$0xff] %vm6196, %v5737
        %6259 = vst.msk [vmem:[%s179 + $0x1f0] sm:$0xff] %vm6196, %v5746
        %6260 = vst.msk [vmem:[%s179 + $0x1f8] sm:$0xff] %vm6196, %v5747
        %6261 = vst.msk [vmem:[%s179 + $0x200] sm:$0xff] %vm6196, %v5756
        %6262 = vst.msk [vmem:[%s179 + $0x208] sm:$0xff] %vm6196, %v5757
        %6263 = vst.msk [vmem:[%s179 + $0x210] sm:$0xff] %vm6196, %v5766
        %6264 = vst.msk [vmem:[%s179 + $0x218] sm:$0xff] %vm6196, %v5767
        %6265 = vst.msk [vmem:[%s179 + $0x220] sm:$0xff] %vm6196, %v5776
        %6266 = vst.msk [vmem:[%s179 + $0x228] sm:$0xff] %vm6196, %v5777
        %6267 = vst.msk [vmem:[%s179 + $0x230] sm:$0xff] %vm6196, %v5786
        %6268 = vst.msk [vmem:[%s179 + $0x238] sm:$0xff] %vm6196, %v5787
        %6269 = vst.msk [vmem:[%s179 + $0x240] sm:$0xff] %vm6196, %v5796
        %6270 = vst.msk [vmem:[%s179 + $0x248] sm:$0xff] %vm6196, %v5797
        %6271 = vst.msk [vmem:[%s179 + $0x250] sm:$0xff] %vm6196, %v5806
        %6272 = vst.msk [vmem:[%s179 + $0x258] sm:$0xff] %vm6196, %v5807
        %6273 = vst.msk [vmem:[%s179 + $0x260] sm:$0xff] %vm6196, %v5816
        %6274 = vst.msk [vmem:[%s179 + $0x268] sm:$0xff] %vm6196, %v5817
        %6275 = vst.msk [vmem:[%s179 + $0x270] sm:$0xff] %vm6196, %v5826
        %6276 = vst.msk [vmem:[%s179 + $0x278] sm:$0xff] %vm6196, %v5827
        %6277 = vst.msk [vmem:[%s179 + $0x280] sm:$0xff] %vm6196, %v5836
        %6278 = vst.msk [vmem:[%s179 + $0x288] sm:$0xff] %vm6196, %v5837
        %6279 = vst.msk [vmem:[%s179 + $0x290] sm:$0xff] %vm6196, %v5846
        %6280 = vst.msk [vmem:[%s179 + $0x298] sm:$0xff] %vm6196, %v5847
        %6281 = vst.msk [vmem:[%s179 + $0x2a0] sm:$0xff] %vm6196, %v5856
        %6282 = vst.msk [vmem:[%s179 + $0x2a8] sm:$0xff] %vm6196, %v5857
        %6283 = vst.msk [vmem:[%s179 + $0x2b0] sm:$0xff] %vm6196, %v5866
        %6284 = vst.msk [vmem:[%s179 + $0x2b8] sm:$0xff] %vm6196, %v5867
        %6285 = vst.msk [vmem:[%s179 + $0x2c0] sm:$0xff] %vm6196, %v5876
        %6286 = vst.msk [vmem:[%s179 + $0x2c8] sm:$0xff] %vm6196, %v5877
        %6287 = vst.msk [vmem:[%s179 + $0x2d0] sm:$0xff] %vm6196, %v5886
        %6288 = vst.msk [vmem:[%s179 + $0x2d8] sm:$0xff] %vm6196, %v5887
        %6289 = vst.msk [vmem:[%s179 + $0x2e0] sm:$0xff] %vm6196, %v5896
        %6290 = vst.msk [vmem:[%s179 + $0x2e8] sm:$0xff] %vm6196, %v5897
        %6291 = vst.msk [vmem:[%s179 + $0x2f0] sm:$0xff] %vm6196, %v5906
        %6292 = vst.msk [vmem:[%s179 + $0x2f8] sm:$0xff] %vm6196, %v5907
        %6293 = vst.msk [vmem:[%s179 + $0x300] sm:$0xff] %vm6196, %v5916
        %6294 = vst.msk [vmem:[%s179 + $0x308] sm:$0xff] %vm6196, %v5917
        %6295 = vst.msk [vmem:[%s179 + $0x310] sm:$0xff] %vm6196, %v5926
        %6296 = vst.msk [vmem:[%s179 + $0x318] sm:$0xff] %vm6196, %v5927
        %6297 = vst.msk [vmem:[%s179 + $0x320] sm:$0xff] %vm6196, %v5936
        %6298 = vst.msk [vmem:[%s179 + $0x328] sm:$0xff] %vm6196, %v5937
        %6299 = vst.msk [vmem:[%s179 + $0x330] sm:$0xff] %vm6196, %v5946
        %6300 = vst.msk [vmem:[%s179 + $0x338] sm:$0xff] %vm6196, %v5947
        %6301 = vst.msk [vmem:[%s179 + $0x340] sm:$0xff] %vm6196, %v5956
        %6302 = vst.msk [vmem:[%s179 + $0x348] sm:$0xff] %vm6196, %v5957
        %6303 = vst.msk [vmem:[%s179 + $0x350] sm:$0xff] %vm6196, %v5966
        %6304 = vst.msk [vmem:[%s179 + $0x358] sm:$0xff] %vm6196, %v5967
        %6305 = vst.msk [vmem:[%s179 + $0x360] sm:$0xff] %vm6196, %v5976
        %6306 = vst.msk [vmem:[%s179 + $0x368] sm:$0xff] %vm6196, %v5977
        %6307 = vst.msk [vmem:[%s179 + $0x370] sm:$0xff] %vm6196, %v5986
        %6308 = vst.msk [vmem:[%s179 + $0x378] sm:$0xff] %vm6196, %v5987
        %6309 = vst.msk [vmem:[%s179 + $0x380] sm:$0xff] %vm6196, %v5996
        %6310 = vst.msk [vmem:[%s179 + $0x388] sm:$0xff] %vm6196, %v5997
        %6311 = vst.msk [vmem:[%s179 + $0x390] sm:$0xff] %vm6196, %v6006
        %6312 = vst.msk [vmem:[%s179 + $0x398] sm:$0xff] %vm6196, %v6007
        %6313 = vst.msk [vmem:[%s179 + $0x3a0] sm:$0xff] %vm6196, %v6016
        %6314 = vst.msk [vmem:[%s179 + $0x3a8] sm:$0xff] %vm6196, %v6017
        %6315 = vst.msk [vmem:[%s179 + $0x3b0] sm:$0xff] %vm6196, %v6026
        %6316 = vst.msk [vmem:[%s179 + $0x3b8] sm:$0xff] %vm6196, %v6027
        %6317 = vst.msk [vmem:[%s179 + $0x3c0] sm:$0xff] %vm6196, %v6036
        %6318 = vst.msk [vmem:[%s179 + $0x3c8] sm:$0xff] %vm6196, %v6037
        %6319 = vst.msk [vmem:[%s179 + $0x3d0] sm:$0xff] %vm6196, %v6046
        %6320 = vst.msk [vmem:[%s179 + $0x3d8] sm:$0xff] %vm6196, %v6047
        %6321 = vst.msk [vmem:[%s179 + $0x3e0] sm:$0xff] %vm6196, %v6056
        %6322 = vst.msk [vmem:[%s179 + $0x3e8] sm:$0xff] %vm6196, %v6057
        %6323 = vst.msk [vmem:[%s179 + $0x3f0] sm:$0xff] %vm6196, %v6066
        %6324 = vst.msk [vmem:[%s179 + $0x3f8] sm:$0xff] %vm6196, %v6067
        %s6325 = sand.u32 %s75, 1
        %s6326 = scalar_lea.sflag [#allocation4], %s6325
        %s6327 = sand.u32 %s75, 1
        %s6328 = smul.addr %s6327, 1024
        %s6329 = scalar_lea.vmem [#allocation7], %s6328
        // Predicated region
        $region37: #{tpu_custom_call.1} parent=27 // pred_check
          %p6330 = pneg %p85
        $region38: #{tpu_custom_call.1} parent=27 // pred_check_branch
          %6332 = sbr.rel (%p6330) target = $region40
        $region39: #{tpu_custom_call.1} parent=27 // pred_region
          %s6333 = smul.u32 4, %s20
          %6335 = vsyncadd %s6326, 0
          %s6336 = smul.addr %s6333, 32
          %s6337 = smul.addr %s6336, 8
          %s6338 = scalar_lea.hbm %s2, %s6337
          %s6339 = sshll.u32 %s6329, 4
          %s6340 = int_to_ptr.vmem [resolvable:$true] %s6339
          %s6341 = sshll.u32 %s6338, 4
          %s6342 = int_to_ptr.hbm [resolvable:$true] %s6341
          %6347 = dma.vmem_to_hbm [thread:$0]  %s6340, 16384, %s6342, %s6326, 128, 128, 8
        $region40: #{tpu_custom_call.1} parent=27 // pred_fallthru
          _
      $region28: #{tpu_custom_call.1} parent=5 // pred_fallthru
        _
      %p6348 = scmp.le.s32.totalorder 2, %s15
      // Predicated region
      $region41: #{tpu_custom_call.1} parent=5 // pred_check
        %p6349 = pneg %p6348
      $region42: #{tpu_custom_call.1} parent=5 // pred_check_branch
        %6351 = sbr.rel (%p6349) target = $region44
      $region43: #{tpu_custom_call.1} parent=5 // pred_region
        %s6352 = ssub.s32 %s15, 2
        // Predicated region
        $region45: #{tpu_custom_call.1} parent=43 // pred_check
          %p6353 = pneg %p91
        $region46: #{tpu_custom_call.1} parent=43 // pred_check_branch
          %6355 = sbr.rel (%p6353) target = $region48
        $region47: #{tpu_custom_call.1} parent=43 // pred_region
          %s6356 = sand.u32 %s76, 1
          %s6357 = scalar_lea.sflag [#allocation4], %s6356
          %s6358 = sand.u32 %s76, 1
          %s6359 = smul.addr %s6358, 1024
          %s6360 = scalar_lea.vmem [#allocation7], %s6359
          %6362 = dma.done %s6357, 16384
        $region48: #{tpu_custom_call.1} parent=43 // pred_fallthru
          _
      $region44: #{tpu_custom_call.1} parent=5 // pred_fallthru
        _
    $region6: #{tpu_custom_call.1} parent=1 // loop_footer
      %s19 = sadd.s32 1, %s15
    $region7: #{tpu_custom_call.1} parent=1 // loop_footer_branch
      %14 = sbr.rel target = $region3
    $region8: #{tpu_custom_call.1} parent=1 // loop_exit
      _
    %6363 = vsyncpa [#allocation3], 1
    %s6364 = scalar_lea.sflag [#allocation3], 1
    %6365 = vsyncpa %s6364, 1
    %6366 = vsyncpa [#allocation6], 1
    %6367 = vsyncpa [#allocation4], 1
    %s6368 = scalar_lea.sflag [#allocation4], 1
    %6369 = vsyncpa %s6368, 1

</llo_original>
